<compile_context>
chip_gen: v7x
topology: tpu7x:2x2x1
jax: 0.10.0
libtpu: 0.0.40
codegen_flags: <defaults>
</compile_context>

<pallas_src>
import functools
import math

import jax
import jax.numpy as jnp
from jax.experimental import pallas as pl
from jax.experimental.pallas import tpu as pltpu

TARGET = 224       # MiVOLO forward resizes any non-224 input to 224x224
PATCH = 8          # synthetic patch-embed kernel/stride (stem stand-in)
EMBED_DIM = 32     # embed_dim (divisible by num_heads=8 -> head_dim=4)
NUM_HEADS = 8
K2 = 9             # 3x3 outlook window
NUM_OUT = 3        # synthetic MiVOLO head size (gender logits + age)

# ONNXOutlookAttention: attn = softmax(eye(9), axis=-1); only row 0 is used.
_W_DIAG = math.exp(1.0) / (math.exp(1.0) + (K2 - 1))   # weight of window pos 0
_W_OFF = 1.0 / (math.exp(1.0) + (K2 - 1))              # weight of the other 8


# -----------------------------------------------------------------------------
# Kernel 1: bilinear resize (align_corners=False) as two matmuls, grid over B.
#   Stage 1 (W-resize) is one (C*Hin, Win) @ (Win, 224) matmul -> 224-lane dense.
#   Stage 2 (H-resize) is one (224, Hin) @ (Hin, 224) matmul per channel.
# -----------------------------------------------------------------------------
def _resize_kernel(x_ref, ct_ref, r_ref, o_ref):
    # x_ref: (1, C, Hin, Win)  ct_ref: (Win, Wout)  r_ref: (Hout, Hin)
    # o_ref: (1, C, Hout, Wout)
    C, Hin, _ = x_ref.shape[1], x_ref.shape[2], x_ref.shape[3]
    x_all = x_ref[0].reshape(C * Hin, x_ref.shape[3])         # leading-dim merge
    tmp = jnp.dot(x_all, ct_ref[...], preferred_element_type=jnp.float32)
    for c in range(C):                                        # static unroll
        o_ref[0, c] = jnp.dot(r_ref[...], tmp[c * Hin:(c + 1) * Hin],
                              preferred_element_type=jnp.float32)


def _interp_matrix(out_size, in_size):
    # Exact PyTorch F.interpolate(mode="bilinear", align_corners=False) weights
    # (antialias=False default).
    scale = in_size / out_size
    i = jnp.arange(out_size, dtype=jnp.float32)
    src = jnp.clip((i + 0.5) * scale - 0.5, 0.0, float(in_size - 1))
    i0 = jnp.floor(src).astype(jnp.int32)
    i1 = jnp.minimum(i0 + 1, in_size - 1)
    frac = src - i0.astype(jnp.float32)
    rows = jnp.arange(out_size)
    m = jnp.zeros((out_size, in_size), jnp.float32)
    m = m.at[rows, i0].add(1.0 - frac)
    m = m.at[rows, i1].add(frac)
    return m


def bilinear_resize(x, out_h, out_w):
    B, C, Hin, Win = x.shape
    ct = _interp_matrix(out_w, Win).T        # (Win, Wout)
    r = _interp_matrix(out_h, Hin)           # (Hout, Hin)
    return pl.pallas_call(
        _resize_kernel,
        out_shape=jax.ShapeDtypeStruct((B, C, out_h, out_w), jnp.float32),
        grid=(B,),
        in_specs=[
            pl.BlockSpec((1, C, Hin, Win), lambda b: (b, 0, 0, 0)),
            pl.BlockSpec((Win, out_w), lambda b: (0, 0)),
            pl.BlockSpec((out_h, Hin), lambda b: (0, 0)),
        ],
        out_specs=pl.BlockSpec((1, C, out_h, out_w), lambda b: (b, 0, 0, 0)),
        compiler_params=pltpu.CompilerParams(dimension_semantics=("parallel",)),
    )(x, ct, r)


# -----------------------------------------------------------------------------
# Kernel 2: fused backbone — stem matmul -> outlook attention -> GAP -> head.
#   grid over B ("parallel" -> both TensorCores on v7x), everything stays in
#   VMEM; the 3x3 halo lives in a VMEM scratch (no external jnp.pad / HBM copy).
# -----------------------------------------------------------------------------
def _backbone_kernel(p_ref, w2d_ref, sb_ref, wc_ref, pb_ref, hw_ref, hb_ref,
                     o_ref, pad_ref, *, H, W, D):
    # p_ref: (1, H*W, K)  w2d: (K, D)  sb/pb: (1, D)  wc: (D, D)
    # hw: (D, n_out)  hb: (1, n_out)  o_ref: (1, 1, n_out)
    # pad_ref (scratch): (H+2, W+2, D) zero-haloed feature map.

    # --- patch-embed stem (Conv2d k=stride=8 expressed as one matmul) ---
    feats = jnp.dot(p_ref[0], w2d_ref[...],
                    preferred_element_type=jnp.float32) + sb_ref[...]   # (H*W, D)

    # --- build zero-padded feature map in VMEM (halo handled in-kernel) ---
    pad_ref[...] = jnp.zeros_like(pad_ref)
    pad_ref[1:H + 1, 1:W + 1, :] = feats.reshape(H, W, D)

    # --- ONNXOutlookAttention ---
    # attn row 0 of softmax(eye(9)): weight _W_DIAG on window pos 0 (offset
    # (-1,-1), i.e. pad_ref[h, w]) and _W_OFF on the other 8 positions.
    # Separable box filter: 3-tap along W, then 3-tap along H, + corrected term.
    rs = pad_ref[:, 0:W, :] + pad_ref[:, 1:W + 1, :] + pad_ref[:, 2:W + 2, :]
    box = rs[0:H] + rs[1:H + 1] + rs[2:H + 2]            # sum of the 3x3 window
    tl = pad_ref[0:H, 0:W, :]                            # window position 0
    acc = _W_OFF * box + (_W_DIAG - _W_OFF) * tl         # (H, W, D)

    # v and proj fused: out = acc @ (Wv^T Wproj^T) + b_proj  (v is bias-free)
    y = jnp.dot(acc.reshape(H * W, D), wc_ref[...],
                preferred_element_type=jnp.float32) + pb_ref[...]       # (H*W, D)

    # --- global average pool + linear head ---
    pooled = jnp.mean(y, axis=0, keepdims=True)                         # (1, D)
    o_ref[0] = jnp.dot(pooled, hw_ref[...],
                       preferred_element_type=jnp.float32) + hb_ref[...]


def fused_backbone(patches, w2d, stem_b, wcomb, proj_b, head_wT, head_b):
    B, N, K = patches.shape
    D = w2d.shape[1]
    n_out = head_wT.shape[1]
    H = W = int(math.isqrt(N))
    kernel = functools.partial(_backbone_kernel, H=H, W=W, D=D)
    out = pl.pallas_call(
        kernel,
        out_shape=jax.ShapeDtypeStruct((B, 1, n_out), jnp.float32),
        grid=(B,),
        in_specs=[
            pl.BlockSpec((1, N, K), lambda b: (b, 0, 0)),
            pl.BlockSpec((K, D), lambda b: (0, 0)),
            pl.BlockSpec((1, D), lambda b: (0, 0)),
            pl.BlockSpec((D, D), lambda b: (0, 0)),
            pl.BlockSpec((1, D), lambda b: (0, 0)),
            pl.BlockSpec((D, n_out), lambda b: (0, 0)),
            pl.BlockSpec((1, n_out), lambda b: (0, 0)),
        ],
        out_specs=pl.BlockSpec((1, 1, n_out), lambda b: (b, 0, 0)),
        scratch_shapes=[pltpu.VMEM((H + 2, W + 2, D), jnp.float32)],
        compiler_params=pltpu.CompilerParams(dimension_semantics=("parallel",)),
    )(patches, w2d, stem_b.reshape(1, D), wcomb, proj_b.reshape(1, D),
      head_wT, head_b.reshape(1, n_out))
    return out.reshape(B, n_out)


# -----------------------------------------------------------------------------
# Parameters (deterministic, synthetic) and full forward.
# -----------------------------------------------------------------------------
def init_params(key):
    ks = jax.random.split(key, 6)
    std = 0.02
    return {
        # stem: Conv2d(3, D, kernel_size=PATCH, stride=PATCH) weight/bias
        "stem_w": std * jax.random.normal(ks[0], (EMBED_DIM, 3, PATCH, PATCH), jnp.float32),
        "stem_b": std * jax.random.normal(ks[1], (EMBED_DIM,), jnp.float32),
        # ONNXOutlookAttention: v = Linear(D, D, bias=False), proj = Linear(D, D)
        "v_w": std * jax.random.normal(ks[2], (EMBED_DIM, EMBED_DIM), jnp.float32),
        "proj_w": std * jax.random.normal(ks[3], (EMBED_DIM, EMBED_DIM), jnp.float32),
        "proj_b": std * jax.random.normal(ks[4], (EMBED_DIM,), jnp.float32),
        # head: Linear(D, NUM_OUT)
        "head_w": std * jax.random.normal(ks[5], (NUM_OUT, EMBED_DIM), jnp.float32),
        "head_b": jnp.zeros((NUM_OUT,), jnp.float32),
    }


def mivolo_forward(params, x):
    # ONNXCompatibleMiVOLO.forward
    assert x.ndim == 4
    B, C, H, W = x.shape
    if H != TARGET or W != TARGET:
        x = bilinear_resize(x, TARGET, TARGET)               # NCHW 224x224

    # self.model(x): synthetic MiVOLO stand-in.
    # TODO(synk): the full MiVOLO/VOLO backbone (residuals, MLP blocks,
    # downsample stages, class attention) is not reproducible without the
    # original checkpointed model; only the replaced ONNXOutlookAttention and
    # the resize path are reproduced exactly.
    # TODO(synk): the NCHW->patches im2col below stays as one XLA transpose;
    # folding it into a kernel would need stride-8 lane gathers.
    Hp, Wp = TARGET // PATCH, TARGET // PATCH
    xh = jnp.transpose(x, (0, 2, 3, 1))                      # NHWC
    patches = xh.reshape(B, Hp, PATCH, Wp, PATCH, C)
    patches = jnp.transpose(patches, (0, 1, 3, 2, 4, 5))     # (B, Hp, Wp, kh, kw, c)
    patches = patches.reshape(B, Hp * Wp, PATCH * PATCH * C)

    # Conv2d weight (D, Cin, kh, kw) -> matmul weight flattened as (kh, kw, c)
    w2d = jnp.transpose(params["stem_w"], (2, 3, 1, 0)).reshape(PATCH * PATCH * C, EMBED_DIM)
    # Exact fusion of bias-free v with proj (row-0 attention folded into the
    # neighbour sum inside the kernel):  out = acc @ (Wv^T Wproj^T) + b_proj.
    wcomb = params["v_w"].T @ params["proj_w"].T

    return fused_backbone(patches, w2d, params["stem_b"], wcomb,
                          params["proj_b"], params["head_w"].T, params["head_b"])


if __name__ == "__main__":
    key = jax.random.PRNGKey(0)
    kx, kp = jax.random.split(key)
    # Small non-224 input so the resize branch of the forward is exercised.
    x = jax.random.normal(kx, (2, 3, 64, 64), jnp.float32)
    params = init_params(kp)

    fwd = jax.jit(mivolo_forward)
    out = fwd(params, x)
    out = jax.block_until_ready(out)
    assert out.shape == (2, NUM_OUT) and out.dtype == jnp.float32
    assert bool(jnp.all(jnp.isfinite(out)))
    print("KERNEL_OK")
</pallas_src>

<mosaic_0001>
module attributes {stable_mosaic.version = 11 : i64} {
  func.func private @main(%arg0: i32) attributes {dimension_semantics = [#tpu.dimension_semantics<core_parallel>], iteration_bounds = array<i64: 2>, tpu.core_type = #tpu.core_type<sc_scalar_subcore>, window_params = []} {
    return
  }
}

module attributes {stable_mosaic.version = 11 : i64} {
  func.func private @main(%arg0: i32) attributes {dimension_semantics = [#tpu.dimension_semantics<core_parallel>], iteration_bounds = array<i64: 2>, tpu.core_type = #tpu.core_type<sc_scalar_subcore>, window_params = []} {
    return
  }
}

module attributes {stable_mosaic.version = 11 : i64} {
  func.func @_resize_kernel(%arg0: i32, %arg1: memref<1x3x64x64xf32, #tpu.memory_space<vmem>>, %arg2: memref<64x224xf32, #tpu.memory_space<vmem>>, %arg3: memref<224x64xf32, #tpu.memory_space<vmem>>, %arg4: memref<1x3x224x224xf32, #tpu.memory_space<vmem>>) attributes {dimension_semantics = [#tpu.dimension_semantics<parallel>], iteration_bounds = array<i64: 2>, scalar_prefetch = 0 : i64, scratch_operands = 0 : i64, tpu.core_type = #tpu.core_type<tc>, window_params = [{transform_indices = @transform_0, window_bounds = array<i64: 1, 3, 64, 64>}, {pipeline_mode = #tpu.pipeline_mode<synchronous>, transform_indices = @transform_1, window_bounds = array<i64: 64, 224>}, {pipeline_mode = #tpu.pipeline_mode<synchronous>, transform_indices = @transform_2, window_bounds = array<i64: 224, 64>}, {transform_indices = @transform_3, window_bounds = array<i64: 1, 3, 224, 224>}]} {
    %c0 = arith.constant 0 : index
    %c0_0 = arith.constant 0 : index
    %c0_1 = arith.constant 0 : index
    %c0_2 = arith.constant 0 : index
    %0 = vector.load %arg1[%c0, %c0_0, %c0_1, %c0_2] : memref<1x3x64x64xf32, #tpu.memory_space<vmem>>, vector<1x3x64x64xf32>
    %1 = vector.shape_cast %0 : vector<1x3x64x64xf32> to vector<3x64x64xf32>
    %2 = vector.shape_cast %1 : vector<3x64x64xf32> to vector<192x64xf32>
    %c0_3 = arith.constant 0 : index
    %c0_4 = arith.constant 0 : index
    %3 = vector.load %arg2[%c0_3, %c0_4] : memref<64x224xf32, #tpu.memory_space<vmem>>, vector<64x224xf32>
    %cst = arith.constant dense<0.000000e+00> : vector<192x224xf32>
    %4 = tpu.matmul %2, %3, %cst {dimension_numbers = #tpu.dot_dimension_numbers<[1], [0], [0], [1], [0, 0, 1, 1], [], []>} : vector<192x64xf32>, vector<64x224xf32>, vector<192x224xf32> -> vector<192x224xf32>
    %c0_5 = arith.constant 0 : index
    %c0_6 = arith.constant 0 : index
    %5 = vector.load %arg3[%c0_5, %c0_6] : memref<224x64xf32, #tpu.memory_space<vmem>>, vector<224x64xf32>
    %6 = vector.extract_strided_slice %4 {offsets = [0, 0], sizes = [64, 224], strides = [1, 1]} : vector<192x224xf32> to vector<64x224xf32>
    %cst_7 = arith.constant dense<0.000000e+00> : vector<224x224xf32>
    %7 = tpu.matmul %5, %6, %cst_7 {dimension_numbers = #tpu.dot_dimension_numbers<[1], [0], [0], [1], [0, 0, 1, 1], [], []>} : vector<224x64xf32>, vector<64x224xf32>, vector<224x224xf32> -> vector<224x224xf32>
    %c0_8 = arith.constant 0 : index
    %c0_9 = arith.constant 0 : index
    %c0_10 = arith.constant 0 : index
    %c0_11 = arith.constant 0 : index
    %8 = vector.load %arg4[%c0_8, %c0_9, %c0_10, %c0_11] : memref<1x3x224x224xf32, #tpu.memory_space<vmem>>, vector<1x1x224x224xf32>
    %9 = vector.shape_cast %8 : vector<1x1x224x224xf32> to vector<224x224xf32>
    %10 = vector.shape_cast %7 : vector<224x224xf32> to vector<1x1x224x224xf32>
    tpu.vector_store %arg4[%c0_8, %c0_9, %c0_10, %c0_11], %10 {strides = array<i32>} : memref<1x3x224x224xf32, #tpu.memory_space<vmem>>, vector<1x1x224x224xf32>,
    %c0_12 = arith.constant 0 : index
    %c0_13 = arith.constant 0 : index
    %11 = vector.load %arg3[%c0_12, %c0_13] : memref<224x64xf32, #tpu.memory_space<vmem>>, vector<224x64xf32>
    %12 = vector.extract_strided_slice %4 {offsets = [64, 0], sizes = [64, 224], strides = [1, 1]} : vector<192x224xf32> to vector<64x224xf32>
    %cst_14 = arith.constant dense<0.000000e+00> : vector<224x224xf32>
    %13 = tpu.matmul %11, %12, %cst_14 {dimension_numbers = #tpu.dot_dimension_numbers<[1], [0], [0], [1], [0, 0, 1, 1], [], []>} : vector<224x64xf32>, vector<64x224xf32>, vector<224x224xf32> -> vector<224x224xf32>
    %c0_15 = arith.constant 0 : index
    %c1 = arith.constant 1 : index
    %c0_16 = arith.constant 0 : index
    %c0_17 = arith.constant 0 : index
    %14 = vector.load %arg4[%c0_15, %c1, %c0_16, %c0_17] : memref<1x3x224x224xf32, #tpu.memory_space<vmem>>, vector<1x1x224x224xf32>
    %15 = vector.shape_cast %14 : vector<1x1x224x224xf32> to vector<224x224xf32>
    %16 = vector.shape_cast %13 : vector<224x224xf32> to vector<1x1x224x224xf32>
    tpu.vector_store %arg4[%c0_15, %c1, %c0_16, %c0_17], %16 {strides = array<i32>} : memref<1x3x224x224xf32, #tpu.memory_space<vmem>>, vector<1x1x224x224xf32>,
    %c0_18 = arith.constant 0 : index
    %c0_19 = arith.constant 0 : index
    %17 = vector.load %arg3[%c0_18, %c0_19] : memref<224x64xf32, #tpu.memory_space<vmem>>, vector<224x64xf32>
    %18 = vector.extract_strided_slice %4 {offsets = [128, 0], sizes = [64, 224], strides = [1, 1]} : vector<192x224xf32> to vector<64x224xf32>
    %cst_20 = arith.constant dense<0.000000e+00> : vector<224x224xf32>
    %19 = tpu.matmul %17, %18, %cst_20 {dimension_numbers = #tpu.dot_dimension_numbers<[1], [0], [0], [1], [0, 0, 1, 1], [], []>} : vector<224x64xf32>, vector<64x224xf32>, vector<224x224xf32> -> vector<224x224xf32>
    %c0_21 = arith.constant 0 : index
    %c2 = arith.constant 2 : index
    %c0_22 = arith.constant 0 : index
    %c0_23 = arith.constant 0 : index
    %20 = vector.load %arg4[%c0_21, %c2, %c0_22, %c0_23] : memref<1x3x224x224xf32, #tpu.memory_space<vmem>>, vector<1x1x224x224xf32>
    %21 = vector.shape_cast %20 : vector<1x1x224x224xf32> to vector<224x224xf32>
    %22 = vector.shape_cast %19 : vector<224x224xf32> to vector<1x1x224x224xf32>
    tpu.vector_store %arg4[%c0_21, %c2, %c0_22, %c0_23], %22 {strides = array<i32>} : memref<1x3x224x224xf32, #tpu.memory_space<vmem>>, vector<1x1x224x224xf32>,
    return
  }
  func.func @transform_0(%arg0: i32) -> (i32, i32, i32, i32) {
    %c0_i32 = arith.constant 0 : i32
    %c0_i32_0 = arith.constant 0 : i32
    %c0_i32_1 = arith.constant 0 : i32
    %c0_i32_2 = arith.constant 0 : i32
    return %arg0, %c0_i32, %c0_i32_0, %c0_i32_1 : i32, i32, i32, i32
  }
  func.func @transform_1(%arg0: i32) -> (i32, i32) {
    %c0_i32 = arith.constant 0 : i32
    %c0_i32_0 = arith.constant 0 : i32
    %c0_i32_1 = arith.constant 0 : i32
    return %c0_i32, %c0_i32_0 : i32, i32
  }
  func.func @transform_2(%arg0: i32) -> (i32, i32) {
    %c0_i32 = arith.constant 0 : i32
    %c0_i32_0 = arith.constant 0 : i32
    %c0_i32_1 = arith.constant 0 : i32
    return %c0_i32, %c0_i32_0 : i32, i32
  }
  func.func @transform_3(%arg0: i32) -> (i32, i32, i32, i32) {
    %c0_i32 = arith.constant 0 : i32
    %c0_i32_0 = arith.constant 0 : i32
    %c0_i32_1 = arith.constant 0 : i32
    %c0_i32_2 = arith.constant 0 : i32
    return %arg0, %c0_i32, %c0_i32_0, %c0_i32_1 : i32, i32, i32, i32
  }
}

module attributes {stable_mosaic.version = 11 : i64} {
  func.func @_backbone_kernel(%arg0: i32, %arg1: memref<1x784x192xf32, #tpu.memory_space<vmem>>, %arg2: memref<192x32xf32, #tpu.memory_space<vmem>>, %arg3: memref<1x32xf32, #tpu.memory_space<vmem>>, %arg4: memref<32x32xf32, #tpu.memory_space<vmem>>, %arg5: memref<1x32xf32, #tpu.memory_space<vmem>>, %arg6: memref<32x3xf32, #tpu.memory_space<vmem>>, %arg7: memref<1x3xf32, #tpu.memory_space<vmem>>, %arg8: memref<1x1x3xf32, #tpu.memory_space<vmem>>, %arg9: memref<30x30x32xf32, #tpu.memory_space<vmem>>) attributes {dimension_semantics = [#tpu.dimension_semantics<parallel>], iteration_bounds = array<i64: 2>, scalar_prefetch = 0 : i64, scratch_operands = 1 : i64, tpu.core_type = #tpu.core_type<tc>, window_params = [{transform_indices = @transform_0, window_bounds = array<i64: 1, 784, 192>}, {pipeline_mode = #tpu.pipeline_mode<synchronous>, transform_indices = @transform_1, window_bounds = array<i64: 192, 32>}, {pipeline_mode = #tpu.pipeline_mode<synchronous>, transform_indices = @transform_2, window_bounds = array<i64: 1, 32>}, {pipeline_mode = #tpu.pipeline_mode<synchronous>, transform_indices = @transform_3, window_bounds = array<i64: 32, 32>}, {pipeline_mode = #tpu.pipeline_mode<synchronous>, transform_indices = @transform_4, window_bounds = array<i64: 1, 32>}, {pipeline_mode = #tpu.pipeline_mode<synchronous>, transform_indices = @transform_5, window_bounds = array<i64: 32, 3>}, {pipeline_mode = #tpu.pipeline_mode<synchronous>, transform_indices = @transform_6, window_bounds = array<i64: 1, 3>}, {transform_indices = @transform_7, window_bounds = array<i64: 1, 1, 3>}]} {
    %c0 = arith.constant 0 : index
    %c0_0 = arith.constant 0 : index
    %c0_1 = arith.constant 0 : index
    %0 = vector.load %arg1[%c0, %c0_0, %c0_1] : memref<1x784x192xf32, #tpu.memory_space<vmem>>, vector<1x784x192xf32>
    %1 = vector.shape_cast %0 : vector<1x784x192xf32> to vector<784x192xf32>
    %c0_2 = arith.constant 0 : index
    %c0_3 = arith.constant 0 : index
    %2 = vector.load %arg2[%c0_2, %c0_3] : memref<192x32xf32, #tpu.memory_space<vmem>>, vector<192x32xf32>
    %cst = arith.constant dense<0.000000e+00> : vector<784x32xf32>
    %3 = tpu.matmul %1, %2, %cst {dimension_numbers = #tpu.dot_dimension_numbers<[1], [0], [0], [1], [0, 0, 1, 1], [], []>} : vector<784x192xf32>, vector<192x32xf32>, vector<784x32xf32> -> vector<784x32xf32>
    %c0_4 = arith.constant 0 : index
    %c0_5 = arith.constant 0 : index
    %4 = vector.load %arg3[%c0_4, %c0_5] : memref<1x32xf32, #tpu.memory_space<vmem>>, vector<1x32xf32>
    %5 = vector.broadcast %4 : vector<1x32xf32> to vector<784x32xf32>
    %6 = arith.addf %3, %5 : vector<784x32xf32>
    %cst_6 = arith.constant 0.000000e+00 : f32
    %7 = vector.broadcast %cst_6 : f32 to vector<30x30x32xf32>
    %c0_7 = arith.constant 0 : index
    %c0_8 = arith.constant 0 : index
    %c0_9 = arith.constant 0 : index
    %8 = vector.load %arg9[%c0_7, %c0_8, %c0_9] : memref<30x30x32xf32, #tpu.memory_space<vmem>>, vector<30x30x32xf32>
    tpu.vector_store %arg9[%c0_7, %c0_8, %c0_9], %7 {strides = array<i32>} : memref<30x30x32xf32, #tpu.memory_space<vmem>>, vector<30x30x32xf32>,
    %9 = vector.shape_cast %6 : vector<784x32xf32> to vector<28x28x32xf32>
    %c1 = arith.constant 1 : index
    %c1_10 = arith.constant 1 : index
    %c0_11 = arith.constant 0 : index
    %10 = vector.load %arg9[%c1, %c1_10, %c0_11] : memref<30x30x32xf32, #tpu.memory_space<vmem>>, vector<28x28x32xf32>
    tpu.vector_store %arg9[%c1, %c1_10, %c0_11], %9 {strides = array<i32>} : memref<30x30x32xf32, #tpu.memory_space<vmem>>, vector<28x28x32xf32>,
    %c0_12 = arith.constant 0 : index
    %c0_13 = arith.constant 0 : index
    %c0_14 = arith.constant 0 : index
    %11 = vector.load %arg9[%c0_12, %c0_13, %c0_14] : memref<30x30x32xf32, #tpu.memory_space<vmem>>, vector<30x28x32xf32>
    %c0_15 = arith.constant 0 : index
    %c1_16 = arith.constant 1 : index
    %c0_17 = arith.constant 0 : index
    %12 = vector.load %arg9[%c0_15, %c1_16, %c0_17] : memref<30x30x32xf32, #tpu.memory_space<vmem>>, vector<30x28x32xf32>
    %13 = arith.addf %11, %12 : vector<30x28x32xf32>
    %c0_18 = arith.constant 0 : index
    %c2 = arith.constant 2 : index
    %c0_19 = arith.constant 0 : index
    %14 = vector.load %arg9[%c0_18, %c2, %c0_19] : memref<30x30x32xf32, #tpu.memory_space<vmem>>, vector<30x28x32xf32>
    %15 = arith.addf %13, %14 : vector<30x28x32xf32>
    %16 = vector.extract_strided_slice %15 {offsets = [0, 0, 0], sizes = [28, 28, 32], strides = [1, 1, 1]} : vector<30x28x32xf32> to vector<28x28x32xf32>
    %17 = vector.extract_strided_slice %15 {offsets = [1, 0, 0], sizes = [28, 28, 32], strides = [1, 1, 1]} : vector<30x28x32xf32> to vector<28x28x32xf32>
    %18 = arith.addf %16, %17 : vector<28x28x32xf32>
    %19 = vector.extract_strided_slice %15 {offsets = [2, 0, 0], sizes = [28, 28, 32], strides = [1, 1, 1]} : vector<30x28x32xf32> to vector<28x28x32xf32>
    %20 = arith.addf %18, %19 : vector<28x28x32xf32>
    %c0_20 = arith.constant 0 : index
    %c0_21 = arith.constant 0 : index
    %c0_22 = arith.constant 0 : index
    %21 = vector.load %arg9[%c0_20, %c0_21, %c0_22] : memref<30x30x32xf32, #tpu.memory_space<vmem>>, vector<28x28x32xf32>
    %cst_23 = arith.constant 0.093298532 : f32
    %22 = vector.broadcast %cst_23 : f32 to vector<28x28x32xf32>
    %23 = arith.mulf %22, %20 : vector<28x28x32xf32>
    %cst_24 = arith.constant 0.160313174 : f32
    %24 = vector.broadcast %cst_24 : f32 to vector<28x28x32xf32>
    %25 = arith.mulf %24, %21 : vector<28x28x32xf32>
    %26 = arith.addf %23, %25 : vector<28x28x32xf32>
    %27 = vector.shape_cast %26 : vector<28x28x32xf32> to vector<784x32xf32>
    %c0_25 = arith.constant 0 : index
    %c0_26 = arith.constant 0 : index
    %28 = vector.load %arg4[%c0_25, %c0_26] : memref<32x32xf32, #tpu.memory_space<vmem>>, vector<32x32xf32>
    %cst_27 = arith.constant dense<0.000000e+00> : vector<784x32xf32>
    %29 = tpu.matmul %27, %28, %cst_27 {dimension_numbers = #tpu.dot_dimension_numbers<[1], [0], [0], [1], [0, 0, 1, 1], [], []>} : vector<784x32xf32>, vector<32x32xf32>, vector<784x32xf32> -> vector<784x32xf32>
    %c0_28 = arith.constant 0 : index
    %c0_29 = arith.constant 0 : index
    %30 = vector.load %arg5[%c0_28, %c0_29] : memref<1x32xf32, #tpu.memory_space<vmem>>, vector<1x32xf32>
    %31 = vector.broadcast %30 : vector<1x32xf32> to vector<784x32xf32>
    %32 = arith.addf %29, %31 : vector<784x32xf32>
    %cst_30 = arith.constant dense<0.000000e+00> : vector<32xf32>
    %33 = vector.multi_reduction <add>, %32, %cst_30 [0] : vector<784x32xf32> to vector<32xf32>
    %34 = vector.shape_cast %33 : vector<32xf32> to vector<1x32xf32>
    %cst_31 = arith.constant 7.840000e+02 : f32
    %35 = vector.broadcast %cst_31 : f32 to vector<1x32xf32>
    %36 = arith.divf %34, %35 : vector<1x32xf32>
    %c0_32 = arith.constant 0 : index
    %c0_33 = arith.constant 0 : index
    %37 = vector.load %arg6[%c0_32, %c0_33] : memref<32x3xf32, #tpu.memory_space<vmem>>, vector<32x3xf32>
    %cst_34 = arith.constant dense<0.000000e+00> : vector<1x3xf32>
    %38 = tpu.matmul %36, %37, %cst_34 {dimension_numbers = #tpu.dot_dimension_numbers<[1], [0], [0], [1], [0, 0, 1, 1], [], []>} : vector<1x32xf32>, vector<32x3xf32>, vector<1x3xf32> -> vector<1x3xf32>
    %c0_35 = arith.constant 0 : index
    %c0_36 = arith.constant 0 : index
    %39 = vector.load %arg7[%c0_35, %c0_36] : memref<1x3xf32, #tpu.memory_space<vmem>>, vector<1x3xf32>
    %40 = arith.addf %38, %39 : vector<1x3xf32>
    %c0_37 = arith.constant 0 : index
    %c0_38 = arith.constant 0 : index
    %c0_39 = arith.constant 0 : index
    %41 = vector.load %arg8[%c0_37, %c0_38, %c0_39] : memref<1x1x3xf32, #tpu.memory_space<vmem>>, vector<1x1x3xf32>
    %42 = vector.shape_cast %41 : vector<1x1x3xf32> to vector<1x3xf32>
    %43 = vector.shape_cast %40 : vector<1x3xf32> to vector<1x1x3xf32>
    tpu.vector_store %arg8[%c0_37, %c0_38, %c0_39], %43 {strides = array<i32>} : memref<1x1x3xf32, #tpu.memory_space<vmem>>, vector<1x1x3xf32>,
    return
  }
  func.func @transform_0(%arg0: i32) -> (i32, i32, i32) {
    %c0_i32 = arith.constant 0 : i32
    %c0_i32_0 = arith.constant 0 : i32
    %c0_i32_1 = arith.constant 0 : i32
    return %arg0, %c0_i32, %c0_i32_0 : i32, i32, i32
  }
  func.func @transform_1(%arg0: i32) -> (i32, i32) {
    %c0_i32 = arith.constant 0 : i32
    %c0_i32_0 = arith.constant 0 : i32
    %c0_i32_1 = arith.constant 0 : i32
    return %c0_i32, %c0_i32_0 : i32, i32
  }
  func.func @transform_2(%arg0: i32) -> (i32, i32) {
    %c0_i32 = arith.constant 0 : i32
    %c0_i32_0 = arith.constant 0 : i32
    %c0_i32_1 = arith.constant 0 : i32
    return %c0_i32, %c0_i32_0 : i32, i32
  }
  func.func @transform_3(%arg0: i32) -> (i32, i32) {
    %c0_i32 = arith.constant 0 : i32
    %c0_i32_0 = arith.constant 0 : i32
    %c0_i32_1 = arith.constant 0 : i32
    return %c0_i32, %c0_i32_0 : i32, i32
  }
  func.func @transform_4(%arg0: i32) -> (i32, i32) {
    %c0_i32 = arith.constant 0 : i32
    %c0_i32_0 = arith.constant 0 : i32
    %c0_i32_1 = arith.constant 0 : i32
    return %c0_i32, %c0_i32_0 : i32, i32
  }
  func.func @transform_5(%arg0: i32) -> (i32, i32) {
    %c0_i32 = arith.constant 0 : i32
    %c0_i32_0 = arith.constant 0 : i32
    %c0_i32_1 = arith.constant 0 : i32
    return %c0_i32, %c0_i32_0 : i32, i32
  }
  func.func @transform_6(%arg0: i32) -> (i32, i32) {
    %c0_i32 = arith.constant 0 : i32
    %c0_i32_0 = arith.constant 0 : i32
    %c0_i32_1 = arith.constant 0 : i32
    return %c0_i32, %c0_i32_0 : i32, i32
  }
  func.func @transform_7(%arg0: i32) -> (i32, i32, i32) {
    %c0_i32 = arith.constant 0 : i32
    %c0_i32_0 = arith.constant 0 : i32
    %c0_i32_1 = arith.constant 0 : i32
    return %arg0, %c0_i32, %c0_i32_0 : i32, i32, i32
  }
}

</mosaic_0001>

<llo_original>
// kernel: mivolo_forward.2
$region0: #{mivolo_forward.2}
  #allocation0 [shape = 'u32[]', space=smem, size = 0x4, offset = 0x4, fixed_abs, tag = 'smem constant byte address 0x4 - core index']
  #allocation1 [shape = 'u32[144,128]{1,0:T(1,128)}', space=vmem, size = 0x12000, scoped, tag = 'internal scratch']
  %s0 = inlined_call_operand.vmem [shape: f32[2,3,64,64], index: 0, kind: input, shape index: {}]
  %s1 = inlined_call_operand.hbm [shape: f32[64,224], index: 1, kind: input, shape index: {}]
  %s2 = inlined_call_operand.vmem [shape: f32[224,64], index: 2, kind: input, shape index: {}]
  %s3 = inlined_call_operand.vmem [shape: f32[2,3,224,224], index: 3, kind: output, shape index: {}]
  %s4 = sld [smem:[#allocation0]]
  $region49: #{mivolo_forward.2} parent=0
    _
  %s6 = ssub.s32 1, %s4
  %s7 = scalar_select 0, %s6, %s4
  $region1: #{mivolo_forward.2} parent=0
    #allocation2 [shape = 'u8[65536]{0}', space=vmem, size = 0x10000, scoped, tag = 'input window, operand 1, single buffered']
    #allocation3 [shape = 's32[2]{0}', space=sflag, size = 0x8, scoped, tag = 'scoped memory for mivolo_forward.2']
    %8 = vsyncpa [#allocation3], 0
    loop: start=0, step=1, limit=4
    $region2: #{mivolo_forward.2} parent=1 // loop_pre_header
      _
    $region3: #{mivolo_forward.2} parent=1 // loop_header
      %s10 = sphi 0, %s14
      %p11 = scmp.ge.s32.totalorder %s10, 4
      %s20 = sphi 0, %s22
      %s23 = sphi 0, %s20
      %s24 = sphi 0, %s23
      %s40 = sphi 0, %s24
      %s44 = sphi 0, %s44
      %s46 = sphi 0, %s44
      %s47 = sphi 0, %s46
      %s61 = sphi 0, %s47
      %s65 = sphi 0, %s65
      %s67 = sphi 0, %s65
      %s68 = sphi 0, %s67
      %s82 = sphi 0, %s68
      %s88 = sphi 0, %s90
      %s91 = sphi 0, %s88
      %s92 = sphi 0, %s91
      %s108 = sphi 0, %s92
    $region4: #{mivolo_forward.2} parent=1 // loop_header_branch
      %13 = sbr.rel (%p11) target = $region8
    $region5: #{mivolo_forward.2} parent=1 // loop_body
      %s15 = ssub.s32 %s10, 1
      %s16 = ssub.s32 %s10, 2
      %s17 = sadd.s32 %s10, 1
      %s18 = ssub.s32 %s10, %s17
      %p19 = scmp.eq.s32.totalorder %s18, 0
      %s21 = sadd.s32 %s20, 1
      %s22 = scalar_select %p19, %s20, %s21
      %p25 = pneg %p19
      %p26 = scmp.eq.s32.totalorder %s10, 1
      %p27 = por %p25, %p26
      %p28 = scmp.ne.s32.totalorder %s20, %s23
      %p29 = scmp.eq.s32.totalorder %s10, 0
      %p30 = por %p28, %p29
      %p31 = scmp.ne.s32.totalorder %s20, %s23
      %p32 = scmp.eq.s32.totalorder %s15, 1
      %p33 = por %p31, %p32
      %p34 = scmp.ne.s32.totalorder %s23, %s24
      %p35 = scmp.eq.s32.totalorder %s15, 0
      %p36 = por %p34, %p35
      %p37 = scmp.ne.s32.totalorder %s23, %s24
      %p38 = scmp.eq.s32.totalorder %s16, 1
      %p39 = por %p37, %p38
      %p41 = scmp.ne.s32.totalorder %s24, %s40
      %p42 = scmp.eq.s32.totalorder %s16, 0
      %p43 = por %p41, %p42
      %s45 = sadd.s32 %s44, 1
      %p48 = scmp.eq.s32.totalorder %s10, 1
      %p49 = scmp.ne.s32.totalorder %s44, %s46
      %p50 = scmp.eq.s32.totalorder %s10, 0
      %p51 = por %p49, %p50
      %p52 = scmp.ne.s32.totalorder %s44, %s46
      %p53 = scmp.eq.s32.totalorder %s15, 1
      %p54 = por %p52, %p53
      %p55 = scmp.ne.s32.totalorder %s46, %s47
      %p56 = scmp.eq.s32.totalorder %s15, 0
      %p57 = por %p55, %p56
      %p58 = scmp.ne.s32.totalorder %s46, %s47
      %p59 = scmp.eq.s32.totalorder %s16, 1
      %p60 = por %p58, %p59
      %p62 = scmp.ne.s32.totalorder %s47, %s61
      %p63 = scmp.eq.s32.totalorder %s16, 0
      %p64 = por %p62, %p63
      %s66 = sadd.s32 %s65, 1
      %p69 = scmp.eq.s32.totalorder %s10, 1
      %p70 = scmp.ne.s32.totalorder %s65, %s67
      %p71 = scmp.eq.s32.totalorder %s10, 0
      %p72 = por %p70, %p71
      %p73 = scmp.ne.s32.totalorder %s65, %s67
      %p74 = scmp.eq.s32.totalorder %s15, 1
      %p75 = por %p73, %p74
      %p76 = scmp.ne.s32.totalorder %s67, %s68
      %p77 = scmp.eq.s32.totalorder %s15, 0
      %p78 = por %p76, %p77
      %p79 = scmp.ne.s32.totalorder %s67, %s68
      %p80 = scmp.eq.s32.totalorder %s16, 1
      %p81 = por %p79, %p80
      %p83 = scmp.ne.s32.totalorder %s68, %s82
      %p84 = scmp.eq.s32.totalorder %s16, 0
      %p85 = por %p83, %p84
      %s86 = ssub.s32 %s10, %s17
      %p87 = scmp.eq.s32.totalorder %s86, 0
      %s89 = sadd.s32 %s88, 1
      %s90 = scalar_select %p87, %s88, %s89
      %p93 = pneg %p87
      %p94 = scmp.eq.s32.totalorder %s10, 1
      %p95 = por %p93, %p94
      %p96 = scmp.ne.s32.totalorder %s88, %s91
      %p97 = scmp.eq.s32.totalorder %s10, 0
      %p98 = por %p96, %p97
      %p99 = scmp.ne.s32.totalorder %s88, %s91
      %p100 = scmp.eq.s32.totalorder %s15, 1
      %p101 = por %p99, %p100
      %p102 = scmp.ne.s32.totalorder %s91, %s92
      %p103 = scmp.eq.s32.totalorder %s15, 0
      %p104 = por %p102, %p103
      %p105 = scmp.ne.s32.totalorder %s91, %s92
      %p106 = scmp.eq.s32.totalorder %s16, 1
      %p107 = por %p105, %p106
      %p109 = scmp.ne.s32.totalorder %s92, %s108
      %p110 = scmp.eq.s32.totalorder %s16, 0
      %p111 = por %p109, %p110
      %p112 = scmp.le.s32.totalorder 1, %s10
      %p113 = scmp.lt.s32.totalorder %s10, 3
      %p114 = pnand %p112, %p113
      %p115 = pneg %p114
      // Predicated region
      $region9: #{mivolo_forward.2} parent=5 // pred_check
        _
      $region10: #{mivolo_forward.2} parent=5 // pred_check_branch
        %117 = sbr.rel (%p114) target = $region12
      $region11: #{mivolo_forward.2} parent=5 // pred_region
        %s118 = ssub.s32 %s10, 1
        // Predicated region
        $region13: #{mivolo_forward.2} parent=11 // pred_check
          %p119 = pneg %p57
        $region14: #{mivolo_forward.2} parent=11 // pred_check_branch
          %121 = sbr.rel (%p119) target = $region16
        $region15: #{mivolo_forward.2} parent=11 // pred_region
          %s123 = ssub.s32 2048, 2048
          %124 = vsyncadd [#allocation3], %s123
          %s125 = sshll.u32 [#allocation2], 4
          %s126 = int_to_ptr.vmem [resolvable:$true] %s125
          %131 = dma.hbm_to_vmem [thread:$0]  %s1, 2048, %s126, [#allocation3], 256, 256, 16
        $region16: #{mivolo_forward.2} parent=11 // pred_fallthru
          _
        // Predicated region
        $region17: #{mivolo_forward.2} parent=11 // pred_check
          %p132 = pneg %p78
        $region18: #{mivolo_forward.2} parent=11 // pred_check_branch
          %134 = sbr.rel (%p132) target = $region20
        $region19: #{mivolo_forward.2} parent=11 // pred_region
          _
        $region20: #{mivolo_forward.2} parent=11 // pred_fallthru
          _
      $region12: #{mivolo_forward.2} parent=5 // pred_fallthru
        _
      %p135 = scmp.lt.s32.totalorder %s10, 2
      // Predicated region
      $region21: #{mivolo_forward.2} parent=5 // pred_check
        %p136 = pneg %p135
      $region22: #{mivolo_forward.2} parent=5 // pred_check_branch
        %138 = sbr.rel (%p136) target = $region24
      $region23: #{mivolo_forward.2} parent=5 // pred_region
        // Predicated region
        $region25: #{mivolo_forward.2} parent=23 // pred_check
          %p139 = pneg %p30
        $region26: #{mivolo_forward.2} parent=23 // pred_check_branch
          %141 = sbr.rel (%p139) target = $region28
        $region27: #{mivolo_forward.2} parent=23 // pred_region
          %p142 = scmp.lt.s32.totalorder %s10, 1
          %s143 = scalar_select %p142, %s10, 1
          %s144 = smul.addr %s143, 24
          %s145 = smul.addr %s144, 8
          %s146 = scalar_lea.vmem %s0, %s145
        $region28: #{mivolo_forward.2} parent=23 // pred_fallthru
          _
      $region24: #{mivolo_forward.2} parent=5 // pred_fallthru
        _
      %p147 = scmp.le.s32.totalorder 1, %s10
      %p148 = scmp.lt.s32.totalorder %s10, 3
      %p149 = pnand %p147, %p148
      %p150 = pneg %p149
      // Predicated region
      $region29: #{mivolo_forward.2} parent=5 // pred_check
        _
      $region30: #{mivolo_forward.2} parent=5 // pred_check_branch
        %152 = sbr.rel (%p149) target = $region32
      $region31: #{mivolo_forward.2} parent=5 // pred_region
        %s153 = ssub.s32 %s10, 1
        // Predicated region
        $region33: #{mivolo_forward.2} parent=31 // pred_check
          %p154 = pneg %p57
        $region34: #{mivolo_forward.2} parent=31 // pred_check_branch
          %156 = sbr.rel (%p154) target = $region36
        $region35: #{mivolo_forward.2} parent=31 // pred_region
          %157 = dma.done [#allocation3], 2048
        $region36: #{mivolo_forward.2} parent=31 // pred_fallthru
          _
        %p158 = scmp.lt.s32.totalorder %s15, 1
        %s159 = scalar_select %p158, %s15, 1
        %s160 = smul.addr %s159, 24
        %s161 = smul.addr %s160, 8
        %s162 = scalar_lea.vmem %s0, %s161
        %p163 = pneg %p36
        %p164 = pneg %p33
        %p165 = pneg %p57
        %p166 = pneg %p54
        %p167 = pneg %p78
        %p168 = pneg %p75
        %p169 = pneg %p104
        %p170 = pneg %p101
        %p171 = scmp.lt.s32.totalorder %s15, 1
        %s172 = scalar_select %p171, %s15, 1
        %s173 = smul.addr %s172, 168
        %s174 = smul.addr %s173, 8
        %s175 = scalar_lea.vmem %s3, %s174
        %p176 = scmp.lt.s32.totalorder %s15, 1
        %s177 = scalar_select %p176, %s15, 1
        %s178 = smul.addr %s177, 24
        %s179 = smul.addr %s178, 8
        %s180 = scalar_lea.vmem %s0, %s179
        %p181 = scmp.lt.s32.totalorder %s15, 1
        %s182 = scalar_select %p181, %s15, 1
        %s183 = smul.addr %s182, 168
        %s184 = smul.addr %s183, 8
        %s185 = scalar_lea.vmem %s3, %s184
        %v186 = vld [vmem:[%s180] sm:$0xff]
        %v187 = vld [vmem:[%s180 + $0x8] sm:$0xff]
        %v188 = vld [vmem:[%s180 + $0x10] sm:$0xff]
        %v189 = vld [vmem:[%s180 + $0x18] sm:$0xff]
        %v190 = vld [vmem:[%s180 + $0x20] sm:$0xff]
        %v191 = vld [vmem:[%s180 + $0x28] sm:$0xff]
        %v192 = vld [vmem:[%s180 + $0x30] sm:$0xff]
        %v193 = vld [vmem:[%s180 + $0x38] sm:$0xff]
        %v194 = vld [vmem:[%s180 + $0x40] sm:$0xff]
        %v195 = vld [vmem:[%s180 + $0x48] sm:$0xff]
        %v196 = vld [vmem:[%s180 + $0x50] sm:$0xff]
        %v197 = vld [vmem:[%s180 + $0x58] sm:$0xff]
        %v198 = vld [vmem:[%s180 + $0x60] sm:$0xff]
        %v199 = vld [vmem:[%s180 + $0x68] sm:$0xff]
        %v200 = vld [vmem:[%s180 + $0x70] sm:$0xff]
        %v201 = vld [vmem:[%s180 + $0x78] sm:$0xff]
        %v202 = vld [vmem:[%s180 + $0x80] sm:$0xff]
        %v203 = vld [vmem:[%s180 + $0x88] sm:$0xff]
        %v204 = vld [vmem:[%s180 + $0x90] sm:$0xff]
        %v205 = vld [vmem:[%s180 + $0x98] sm:$0xff]
        %v206 = vld [vmem:[%s180 + $0xa0] sm:$0xff]
        %v207 = vld [vmem:[%s180 + $0xa8] sm:$0xff]
        %v208 = vld [vmem:[%s180 + $0xb0] sm:$0xff]
        %v209 = vld [vmem:[%s180 + $0xb8] sm:$0xff]
        %v210 = vld [vmem:[#allocation2] sm:$0xff]
        %v211 = vld [vmem:[#allocation2 + $0x8] sm:$0xff]
        %v212 = vld [vmem:[#allocation2 + $0x10] sm:$0xff]
        %v213 = vld [vmem:[#allocation2 + $0x18] sm:$0xff]
        %v214 = vld [vmem:[#allocation2 + $0x20] sm:$0xff]
        %v215 = vld [vmem:[#allocation2 + $0x28] sm:$0xff]
        %v216 = vld [vmem:[#allocation2 + $0x30] sm:$0xff]
        %v217 = vld [vmem:[#allocation2 + $0x38] sm:$0xff]
        %v218 = vld [vmem:[#allocation2 + $0x40] sm:$0xff]
        %v219 = vld [vmem:[#allocation2 + $0x48] sm:$0xff]
        %v220 = vld [vmem:[#allocation2 + $0x50] sm:$0xff]
        %v221 = vld [vmem:[#allocation2 + $0x58] sm:$0xff]
        %v222 = vld [vmem:[#allocation2 + $0x60] sm:$0xff]
        %v223 = vld [vmem:[#allocation2 + $0x68] sm:$0xff]
        %v224 = vld [vmem:[#allocation2 + $0x70] sm:$0xff]
        %v225 = vld [vmem:[#allocation2 + $0x78] sm:$0xff]
        %vm226 = vcmask 523264
        %v228 = vsel %vm226, %v186, 0
        %v231 = vsel %vm226, %v187, 0
        %v234 = vsel %vm226, %v188, 0
        %v237 = vsel %vm226, %v189, 0
        %v240 = vsel %vm226, %v190, 0
        %v243 = vsel %vm226, %v191, 0
        %v246 = vsel %vm226, %v192, 0
        %v249 = vsel %vm226, %v193, 0
        %v252 = vsel %vm226, %v194, 0
        %v255 = vsel %vm226, %v195, 0
        %v258 = vsel %vm226, %v196, 0
        %v261 = vsel %vm226, %v197, 0
        %v264 = vsel %vm226, %v198, 0
        %v267 = vsel %vm226, %v199, 0
        %v270 = vsel %vm226, %v200, 0
        %v273 = vsel %vm226, %v201, 0
        %v276 = vsel %vm226, %v202, 0
        %v279 = vsel %vm226, %v203, 0
        %v282 = vsel %vm226, %v204, 0
        %v285 = vsel %vm226, %v205, 0
        %v288 = vsel %vm226, %v206, 0
        %v291 = vsel %vm226, %v207, 0
        %v294 = vsel %vm226, %v208, 0
        %v297 = vsel %vm226, %v209, 0
        %299 = vmatprep.subr.mxu0 %v211
        %300 = vmatpush1.msra.mxu0 %v210
        %301 = vmatprep.subr.mxu0 %v213
        %302 = vmatpush1.msra.mxu0 %v212
        %303 = vmatprep.subr.mxu0 %v215
        %304 = vmatpush1.msra.mxu0 %v214
        %305 = vmatprep.subr.mxu0 %v217
        %306 = vmatpush1.msra.mxu0 %v216
        %307 = vmatprep.subr.mxu0 %v219
        %308 = vmatpush1.msra.mxu0 %v218
        %309 = vmatprep.subr.mxu0 %v221
        %310 = vmatpush1.msra.mxu0 %v220
        %311 = vmatprep.subr.mxu0 %v223
        %312 = vmatpush1.msra.mxu0 %v222
        %313 = vmatprep.subr.mxu0 %v225
        %314 = vmatpush1.msra.mxu0 %v224
        %315 = vmatprep.subr.mxu0 0.0
        %316 = vmatpush1.msra.mxu0 0.0
        %317 = vmatprep.subr.mxu0 0.0
        %318 = vmatpush1.msra.mxu0 0.0
        %319 = vmatprep.subr.mxu0 0.0
        %320 = vmatpush1.msra.mxu0 0.0
        %321 = vmatprep.subr.mxu0 0.0
        %322 = vmatpush1.msra.mxu0 0.0
        %323 = vmatprep.subr.mxu0 0.0
        %324 = vmatpush1.msra.mxu0 0.0
        %325 = vmatprep.subr.mxu0 0.0
        %326 = vmatpush1.msra.mxu0 0.0
        %327 = vmatprep.subr.mxu0 0.0
        %328 = vmatpush1.msra.mxu0 0.0
        %329 = vmatprep.subr.mxu0 0.0
        %330 = vmatpush1.msra.mxu0 0.0
        %331 = vmatprep.subr.mxu0 0.0
        %332 = vmatpush1.msra.mxu0 0.0
        %333 = vmatprep.subr.mxu0 0.0
        %334 = vmatpush1.msra.mxu0 0.0
        %335 = vmatprep.subr.mxu0 0.0
        %336 = vmatpush1.msra.mxu0 0.0
        %337 = vmatprep.subr.mxu0 0.0
        %338 = vmatpush1.msra.mxu0 0.0
        %339 = vmatprep.subr.mxu0 0.0
        %340 = vmatpush1.msra.mxu0 0.0
        %341 = vmatprep.subr.mxu0 0.0
        %342 = vmatpush1.msra.mxu0 0.0
        %343 = vmatprep.subr.mxu0 0.0
        %344 = vmatpush1.msra.mxu0 0.0
        %345 = vmatprep.subr.mxu0 0.0
        %346 = vmatpush1.msra.mxu0 0.0
        %347 = vmatprep.subr.mxu0 0.0
        %348 = vmatpush1.msra.mxu0 0.0
        %349 = vmatprep.subr.mxu0 0.0
        %350 = vmatpush1.msra.mxu0 0.0
        %351 = vmatprep.subr.mxu0 0.0
        %352 = vmatpush1.msra.mxu0 0.0
        %353 = vmatprep.subr.mxu0 0.0
        %354 = vmatpush1.msra.mxu0 0.0
        %355 = vmatprep.subr.mxu0 0.0
        %356 = vmatpush1.msra.mxu0 0.0
        %357 = vmatprep.subr.mxu0 0.0
        %358 = vmatpush1.msra.mxu0 0.0
        %359 = vmatprep.subr.mxu0 0.0
        %360 = vmatpush1.msra.mxu0 0.0
        %361 = vmatprep.subr.mxu0 0.0
        %362 = vmatpush1.msra.mxu0 0.0
        %363 = vmatprep.mubr.f32.mxu0 0.0
        %364 = vmatmul.mubr.f32.gmra.mrb[0].mxu0 %v228
        %v365 = vpop.f32.mrb[0].mxu0
        %v366 = vadd.f32 0.0, %v365
        %v367 = vpop.f32.mrb[0].mxu0
        %v368 = vadd.f32 0.0, %v367
        %369 = vmatprep.mubr.f32.mxu0 0.0
        %370 = vmatmul.mubr.f32.gmra.mrb[0].mxu0 %v231
        %v371 = vpop.f32.mrb[0].mxu0
        %v372 = vadd.f32 0.0, %v371
        %v373 = vpop.f32.mrb[0].mxu0
        %v374 = vadd.f32 0.0, %v373
        %375 = vmatprep.mubr.f32.mxu0 0.0
        %376 = vmatmul.mubr.f32.gmra.mrb[0].mxu0 %v234
        %v377 = vpop.f32.mrb[0].mxu0
        %v378 = vadd.f32 0.0, %v377
        %v379 = vpop.f32.mrb[0].mxu0
        %v380 = vadd.f32 0.0, %v379
        %381 = vmatprep.mubr.f32.mxu0 0.0
        %382 = vmatmul.mubr.f32.gmra.mrb[0].mxu0 %v237
        %v383 = vpop.f32.mrb[0].mxu0
        %v384 = vadd.f32 0.0, %v383
        %v385 = vpop.f32.mrb[0].mxu0
        %v386 = vadd.f32 0.0, %v385
        %387 = vmatprep.mubr.f32.mxu0 0.0
        %388 = vmatmul.mubr.f32.gmra.mrb[0].mxu0 %v240
        %v389 = vpop.f32.mrb[0].mxu0
        %v390 = vadd.f32 0.0, %v389
        %v391 = vpop.f32.mrb[0].mxu0
        %v392 = vadd.f32 0.0, %v391
        %393 = vmatprep.mubr.f32.mxu0 0.0
        %394 = vmatmul.mubr.f32.gmra.mrb[0].mxu0 %v243
        %v395 = vpop.f32.mrb[0].mxu0
        %v396 = vadd.f32 0.0, %v395
        %v397 = vpop.f32.mrb[0].mxu0
        %v398 = vadd.f32 0.0, %v397
        %399 = vmatprep.mubr.f32.mxu0 0.0
        %400 = vmatmul.mubr.f32.gmra.mrb[0].mxu0 %v246
        %v401 = vpop.f32.mrb[0].mxu0
        %v402 = vadd.f32 0.0, %v401
        %v403 = vpop.f32.mrb[0].mxu0
        %v404 = vadd.f32 0.0, %v403
        %405 = vmatprep.mubr.f32.mxu0 0.0
        %406 = vmatmul.mubr.f32.gmra.mrb[0].mxu0 %v249
        %v407 = vpop.f32.mrb[0].mxu0
        %v408 = vadd.f32 0.0, %v407
        %v409 = vpop.f32.mrb[0].mxu0
        %v410 = vadd.f32 0.0, %v409
        %411 = vmatprep.mubr.f32.mxu0 0.0
        %412 = vmatmul.mubr.f32.gmra.mrb[0].mxu0 %v252
        %v413 = vpop.f32.mrb[0].mxu0
        %v414 = vadd.f32 0.0, %v413
        %v415 = vpop.f32.mrb[0].mxu0
        %v416 = vadd.f32 0.0, %v415
        %417 = vmatprep.mubr.f32.mxu0 0.0
        %418 = vmatmul.mubr.f32.gmra.mrb[0].mxu0 %v255
        %v419 = vpop.f32.mrb[0].mxu0
        %v420 = vadd.f32 0.0, %v419
        %v421 = vpop.f32.mrb[0].mxu0
        %v422 = vadd.f32 0.0, %v421
        %423 = vmatprep.mubr.f32.mxu0 0.0
        %424 = vmatmul.mubr.f32.gmra.mrb[0].mxu0 %v258
        %v425 = vpop.f32.mrb[0].mxu0
        %v426 = vadd.f32 0.0, %v425
        %v427 = vpop.f32.mrb[0].mxu0
        %v428 = vadd.f32 0.0, %v427
        %429 = vmatprep.mubr.f32.mxu0 0.0
        %430 = vmatmul.mubr.f32.gmra.mrb[0].mxu0 %v261
        %v431 = vpop.f32.mrb[0].mxu0
        %v432 = vadd.f32 0.0, %v431
        %v433 = vpop.f32.mrb[0].mxu0
        %v434 = vadd.f32 0.0, %v433
        %435 = vmatprep.mubr.f32.mxu0 0.0
        %436 = vmatmul.mubr.f32.gmra.mrb[0].mxu0 %v264
        %v437 = vpop.f32.mrb[0].mxu0
        %v438 = vadd.f32 0.0, %v437
        %v439 = vpop.f32.mrb[0].mxu0
        %v440 = vadd.f32 0.0, %v439
        %441 = vmatprep.mubr.f32.mxu0 0.0
        %442 = vmatmul.mubr.f32.gmra.mrb[0].mxu0 %v267
        %v443 = vpop.f32.mrb[0].mxu0
        %v444 = vadd.f32 0.0, %v443
        %v445 = vpop.f32.mrb[0].mxu0
        %v446 = vadd.f32 0.0, %v445
        %447 = vmatprep.mubr.f32.mxu0 0.0
        %448 = vmatmul.mubr.f32.gmra.mrb[0].mxu0 %v270
        %v449 = vpop.f32.mrb[0].mxu0
        %v450 = vadd.f32 0.0, %v449
        %v451 = vpop.f32.mrb[0].mxu0
        %v452 = vadd.f32 0.0, %v451
        %453 = vmatprep.mubr.f32.mxu0 0.0
        %454 = vmatmul.mubr.f32.gmra.mrb[0].mxu0 %v273
        %v455 = vpop.f32.mrb[0].mxu0
        %v456 = vadd.f32 0.0, %v455
        %v457 = vpop.f32.mrb[0].mxu0
        %v458 = vadd.f32 0.0, %v457
        %459 = vmatprep.mubr.f32.mxu0 0.0
        %460 = vmatmul.mubr.f32.gmra.mrb[0].mxu0 %v276
        %v461 = vpop.f32.mrb[0].mxu0
        %v462 = vadd.f32 0.0, %v461
        %v463 = vpop.f32.mrb[0].mxu0
        %v464 = vadd.f32 0.0, %v463
        %465 = vmatprep.mubr.f32.mxu0 0.0
        %466 = vmatmul.mubr.f32.gmra.mrb[0].mxu0 %v279
        %v467 = vpop.f32.mrb[0].mxu0
        %v468 = vadd.f32 0.0, %v467
        %v469 = vpop.f32.mrb[0].mxu0
        %v470 = vadd.f32 0.0, %v469
        %471 = vmatprep.mubr.f32.mxu0 0.0
        %472 = vmatmul.mubr.f32.gmra.mrb[0].mxu0 %v282
        %v473 = vpop.f32.mrb[0].mxu0
        %v474 = vadd.f32 0.0, %v473
        %v475 = vpop.f32.mrb[0].mxu0
        %v476 = vadd.f32 0.0, %v475
        %477 = vmatprep.mubr.f32.mxu0 0.0
        %478 = vmatmul.mubr.f32.gmra.mrb[0].mxu0 %v285
        %v479 = vpop.f32.mrb[0].mxu0
        %v480 = vadd.f32 0.0, %v479
        %v481 = vpop.f32.mrb[0].mxu0
        %v482 = vadd.f32 0.0, %v481
        %483 = vmatprep.mubr.f32.mxu0 0.0
        %484 = vmatmul.mubr.f32.gmra.mrb[0].mxu0 %v288
        %v485 = vpop.f32.mrb[0].mxu0
        %v486 = vadd.f32 0.0, %v485
        %v487 = vpop.f32.mrb[0].mxu0
        %v488 = vadd.f32 0.0, %v487
        %489 = vmatprep.mubr.f32.mxu0 0.0
        %490 = vmatmul.mubr.f32.gmra.mrb[0].mxu0 %v291
        %v491 = vpop.f32.mrb[0].mxu0
        %v492 = vadd.f32 0.0, %v491
        %v493 = vpop.f32.mrb[0].mxu0
        %v494 = vadd.f32 0.0, %v493
        %495 = vmatprep.mubr.f32.mxu0 0.0
        %496 = vmatmul.mubr.f32.gmra.mrb[0].mxu0 %v294
        %v497 = vpop.f32.mrb[0].mxu0
        %v498 = vadd.f32 0.0, %v497
        %v499 = vpop.f32.mrb[0].mxu0
        %v500 = vadd.f32 0.0, %v499
        %501 = vmatprep.mubr.f32.mxu0 0.0
        %502 = vmatmul.mubr.f32.gmra.mrb[0].mxu0 %v297
        %v503 = vpop.f32.mrb[0].mxu0
        %v504 = vadd.f32 0.0, %v503
        %v505 = vpop.f32.mrb[0].mxu0
        %v506 = vadd.f32 0.0, %v505
        %507 = vdwg.mxu0
        %v508 = vld [vmem:[%s2] sm:$0xff]
        %v509 = vld [vmem:[%s2 + $0x8] sm:$0xff]
        %v510 = vld [vmem:[%s2 + $0x10] sm:$0xff]
        %v511 = vld [vmem:[%s2 + $0x18] sm:$0xff]
        %v512 = vld [vmem:[%s2 + $0x20] sm:$0xff]
        %v513 = vld [vmem:[%s2 + $0x28] sm:$0xff]
        %v514 = vld [vmem:[%s2 + $0x30] sm:$0xff]
        %v515 = vld [vmem:[%s2 + $0x38] sm:$0xff]
        %v516 = vld [vmem:[%s2 + $0x40] sm:$0xff]
        %v517 = vld [vmem:[%s2 + $0x48] sm:$0xff]
        %v518 = vld [vmem:[%s2 + $0x50] sm:$0xff]
        %v519 = vld [vmem:[%s2 + $0x58] sm:$0xff]
        %v520 = vld [vmem:[%s2 + $0x60] sm:$0xff]
        %v521 = vld [vmem:[%s2 + $0x68] sm:$0xff]
        %v522 = vld [vmem:[%s2 + $0x70] sm:$0xff]
        %v523 = vld [vmem:[%s2 + $0x78] sm:$0xff]
        %v524 = vld [vmem:[%s2 + $0x80] sm:$0xff]
        %v525 = vld [vmem:[%s2 + $0x88] sm:$0xff]
        %v526 = vld [vmem:[%s2 + $0x90] sm:$0xff]
        %v527 = vld [vmem:[%s2 + $0x98] sm:$0xff]
        %v528 = vld [vmem:[%s2 + $0xa0] sm:$0xff]
        %v529 = vld [vmem:[%s2 + $0xa8] sm:$0xff]
        %v530 = vld [vmem:[%s2 + $0xb0] sm:$0xff]
        %v531 = vld [vmem:[%s2 + $0xb8] sm:$0xff]
        %v532 = vld [vmem:[%s2 + $0xc0] sm:$0xff]
        %v533 = vld [vmem:[%s2 + $0xc8] sm:$0xff]
        %v534 = vld [vmem:[%s2 + $0xd0] sm:$0xff]
        %v535 = vld [vmem:[%s2 + $0xd8] sm:$0xff]
        %v537 = vsel %vm226, %v508, 0
        %v540 = vsel %vm226, %v509, 0
        %v543 = vsel %vm226, %v510, 0
        %v546 = vsel %vm226, %v511, 0
        %v549 = vsel %vm226, %v512, 0
        %v552 = vsel %vm226, %v513, 0
        %v555 = vsel %vm226, %v514, 0
        %v558 = vsel %vm226, %v515, 0
        %v561 = vsel %vm226, %v516, 0
        %v564 = vsel %vm226, %v517, 0
        %v567 = vsel %vm226, %v518, 0
        %v570 = vsel %vm226, %v519, 0
        %v573 = vsel %vm226, %v520, 0
        %v576 = vsel %vm226, %v521, 0
        %v579 = vsel %vm226, %v522, 0
        %v582 = vsel %vm226, %v523, 0
        %v585 = vsel %vm226, %v524, 0
        %v588 = vsel %vm226, %v525, 0
        %v591 = vsel %vm226, %v526, 0
        %v594 = vsel %vm226, %v527, 0
        %v597 = vsel %vm226, %v528, 0
        %v600 = vsel %vm226, %v529, 0
        %v603 = vsel %vm226, %v530, 0
        %v606 = vsel %vm226, %v531, 0
        %v609 = vsel %vm226, %v532, 0
        %v612 = vsel %vm226, %v533, 0
        %v615 = vsel %vm226, %v534, 0
        %v618 = vsel %vm226, %v535, 0
        %620 = vmatprep.subr.mxu0 %v368
        %621 = vmatpush1.msra.mxu0 %v366
        %622 = vmatprep.subr.mxu0 %v374
        %623 = vmatpush1.msra.mxu0 %v372
        %624 = vmatprep.subr.mxu0 %v380
        %625 = vmatpush1.msra.mxu0 %v378
        %626 = vmatprep.subr.mxu0 %v386
        %627 = vmatpush1.msra.mxu0 %v384
        %628 = vmatprep.subr.mxu0 %v392
        %629 = vmatpush1.msra.mxu0 %v390
        %630 = vmatprep.subr.mxu0 %v398
        %631 = vmatpush1.msra.mxu0 %v396
        %632 = vmatprep.subr.mxu0 %v404
        %633 = vmatpush1.msra.mxu0 %v402
        %634 = vmatprep.subr.mxu0 %v410
        %635 = vmatpush1.msra.mxu0 %v408
        %636 = vmatprep.subr.mxu0 0.0
        %637 = vmatpush1.msra.mxu0 0.0
        %638 = vmatprep.subr.mxu0 0.0
        %639 = vmatpush1.msra.mxu0 0.0
        %640 = vmatprep.subr.mxu0 0.0
        %641 = vmatpush1.msra.mxu0 0.0
        %642 = vmatprep.subr.mxu0 0.0
        %643 = vmatpush1.msra.mxu0 0.0
        %644 = vmatprep.subr.mxu0 0.0
        %645 = vmatpush1.msra.mxu0 0.0
        %646 = vmatprep.subr.mxu0 0.0
        %647 = vmatpush1.msra.mxu0 0.0
        %648 = vmatprep.subr.mxu0 0.0
        %649 = vmatpush1.msra.mxu0 0.0
        %650 = vmatprep.subr.mxu0 0.0
        %651 = vmatpush1.msra.mxu0 0.0
        %652 = vmatprep.subr.mxu0 0.0
        %653 = vmatpush1.msra.mxu0 0.0
        %654 = vmatprep.subr.mxu0 0.0
        %655 = vmatpush1.msra.mxu0 0.0
        %656 = vmatprep.subr.mxu0 0.0
        %657 = vmatpush1.msra.mxu0 0.0
        %658 = vmatprep.subr.mxu0 0.0
        %659 = vmatpush1.msra.mxu0 0.0
        %660 = vmatprep.subr.mxu0 0.0
        %661 = vmatpush1.msra.mxu0 0.0
        %662 = vmatprep.subr.mxu0 0.0
        %663 = vmatpush1.msra.mxu0 0.0
        %664 = vmatprep.subr.mxu0 0.0
        %665 = vmatpush1.msra.mxu0 0.0
        %666 = vmatprep.subr.mxu0 0.0
        %667 = vmatpush1.msra.mxu0 0.0
        %668 = vmatprep.subr.mxu0 0.0
        %669 = vmatpush1.msra.mxu0 0.0
        %670 = vmatprep.subr.mxu0 0.0
        %671 = vmatpush1.msra.mxu0 0.0
        %672 = vmatprep.subr.mxu0 0.0
        %673 = vmatpush1.msra.mxu0 0.0
        %674 = vmatprep.subr.mxu0 0.0
        %675 = vmatpush1.msra.mxu0 0.0
        %676 = vmatprep.subr.mxu0 0.0
        %677 = vmatpush1.msra.mxu0 0.0
        %678 = vmatprep.subr.mxu0 0.0
        %679 = vmatpush1.msra.mxu0 0.0
        %680 = vmatprep.subr.mxu0 0.0
        %681 = vmatpush1.msra.mxu0 0.0
        %682 = vmatprep.subr.mxu0 0.0
        %683 = vmatpush1.msra.mxu0 0.0
        %684 = vmatprep.mubr.f32.mxu0 0.0
        %685 = vmatmul.mubr.f32.gmra.mrb[0].mxu0 %v537
        %v686 = vpop.f32.mrb[0].mxu0
        %v687 = vadd.f32 0.0, %v686
        %v688 = vpop.f32.mrb[0].mxu0
        %v689 = vadd.f32 0.0, %v688
        %690 = vmatprep.mubr.f32.mxu0 0.0
        %691 = vmatmul.mubr.f32.gmra.mrb[0].mxu0 %v540
        %v692 = vpop.f32.mrb[0].mxu0
        %v693 = vadd.f32 0.0, %v692
        %v694 = vpop.f32.mrb[0].mxu0
        %v695 = vadd.f32 0.0, %v694
        %696 = vmatprep.mubr.f32.mxu0 0.0
        %697 = vmatmul.mubr.f32.gmra.mrb[0].mxu0 %v543
        %v698 = vpop.f32.mrb[0].mxu0
        %v699 = vadd.f32 0.0, %v698
        %v700 = vpop.f32.mrb[0].mxu0
        %v701 = vadd.f32 0.0, %v700
        %702 = vmatprep.mubr.f32.mxu0 0.0
        %703 = vmatmul.mubr.f32.gmra.mrb[0].mxu0 %v546
        %v704 = vpop.f32.mrb[0].mxu0
        %v705 = vadd.f32 0.0, %v704
        %v706 = vpop.f32.mrb[0].mxu0
        %v707 = vadd.f32 0.0, %v706
        %708 = vmatprep.mubr.f32.mxu0 0.0
        %709 = vmatmul.mubr.f32.gmra.mrb[0].mxu0 %v549
        %v710 = vpop.f32.mrb[0].mxu0
        %v711 = vadd.f32 0.0, %v710
        %v712 = vpop.f32.mrb[0].mxu0
        %v713 = vadd.f32 0.0, %v712
        %714 = vmatprep.mubr.f32.mxu0 0.0
        %715 = vmatmul.mubr.f32.gmra.mrb[0].mxu0 %v552
        %v716 = vpop.f32.mrb[0].mxu0
        %v717 = vadd.f32 0.0, %v716
        %v718 = vpop.f32.mrb[0].mxu0
        %v719 = vadd.f32 0.0, %v718
        %720 = vmatprep.mubr.f32.mxu0 0.0
        %721 = vmatmul.mubr.f32.gmra.mrb[0].mxu0 %v555
        %v722 = vpop.f32.mrb[0].mxu0
        %v723 = vadd.f32 0.0, %v722
        %v724 = vpop.f32.mrb[0].mxu0
        %v725 = vadd.f32 0.0, %v724
        %726 = vmatprep.mubr.f32.mxu0 0.0
        %727 = vmatmul.mubr.f32.gmra.mrb[0].mxu0 %v558
        %v728 = vpop.f32.mrb[0].mxu0
        %v729 = vadd.f32 0.0, %v728
        %v730 = vpop.f32.mrb[0].mxu0
        %v731 = vadd.f32 0.0, %v730
        %732 = vmatprep.mubr.f32.mxu0 0.0
        %733 = vmatmul.mubr.f32.gmra.mrb[0].mxu0 %v561
        %v734 = vpop.f32.mrb[0].mxu0
        %v735 = vadd.f32 0.0, %v734
        %v736 = vpop.f32.mrb[0].mxu0
        %v737 = vadd.f32 0.0, %v736
        %738 = vmatprep.mubr.f32.mxu0 0.0
        %739 = vmatmul.mubr.f32.gmra.mrb[0].mxu0 %v564
        %v740 = vpop.f32.mrb[0].mxu0
        %v741 = vadd.f32 0.0, %v740
        %v742 = vpop.f32.mrb[0].mxu0
        %v743 = vadd.f32 0.0, %v742
        %744 = vmatprep.mubr.f32.mxu0 0.0
        %745 = vmatmul.mubr.f32.gmra.mrb[0].mxu0 %v567
        %v746 = vpop.f32.mrb[0].mxu0
        %v747 = vadd.f32 0.0, %v746
        %v748 = vpop.f32.mrb[0].mxu0
        %v749 = vadd.f32 0.0, %v748
        %750 = vmatprep.mubr.f32.mxu0 0.0
        %751 = vmatmul.mubr.f32.gmra.mrb[0].mxu0 %v570
        %v752 = vpop.f32.mrb[0].mxu0
        %v753 = vadd.f32 0.0, %v752
        %v754 = vpop.f32.mrb[0].mxu0
        %v755 = vadd.f32 0.0, %v754
        %756 = vmatprep.mubr.f32.mxu0 0.0
        %757 = vmatmul.mubr.f32.gmra.mrb[0].mxu0 %v573
        %v758 = vpop.f32.mrb[0].mxu0
        %v759 = vadd.f32 0.0, %v758
        %v760 = vpop.f32.mrb[0].mxu0
        %v761 = vadd.f32 0.0, %v760
        %762 = vmatprep.mubr.f32.mxu0 0.0
        %763 = vmatmul.mubr.f32.gmra.mrb[0].mxu0 %v576
        %v764 = vpop.f32.mrb[0].mxu0
        %v765 = vadd.f32 0.0, %v764
        %v766 = vpop.f32.mrb[0].mxu0
        %v767 = vadd.f32 0.0, %v766
        %768 = vmatprep.mubr.f32.mxu0 0.0
        %769 = vmatmul.mubr.f32.gmra.mrb[0].mxu0 %v579
        %v770 = vpop.f32.mrb[0].mxu0
        %v771 = vadd.f32 0.0, %v770
        %v772 = vpop.f32.mrb[0].mxu0
        %v773 = vadd.f32 0.0, %v772
        %774 = vmatprep.mubr.f32.mxu0 0.0
        %775 = vmatmul.mubr.f32.gmra.mrb[0].mxu0 %v582
        %v776 = vpop.f32.mrb[0].mxu0
        %v777 = vadd.f32 0.0, %v776
        %v778 = vpop.f32.mrb[0].mxu0
        %v779 = vadd.f32 0.0, %v778
        %780 = vmatprep.mubr.f32.mxu0 0.0
        %781 = vmatmul.mubr.f32.gmra.mrb[0].mxu0 %v585
        %v782 = vpop.f32.mrb[0].mxu0
        %v783 = vadd.f32 0.0, %v782
        %v784 = vpop.f32.mrb[0].mxu0
        %v785 = vadd.f32 0.0, %v784
        %786 = vmatprep.mubr.f32.mxu0 0.0
        %787 = vmatmul.mubr.f32.gmra.mrb[0].mxu0 %v588
        %v788 = vpop.f32.mrb[0].mxu0
        %v789 = vadd.f32 0.0, %v788
        %v790 = vpop.f32.mrb[0].mxu0
        %v791 = vadd.f32 0.0, %v790
        %792 = vmatprep.mubr.f32.mxu0 0.0
        %793 = vmatmul.mubr.f32.gmra.mrb[0].mxu0 %v591
        %v794 = vpop.f32.mrb[0].mxu0
        %v795 = vadd.f32 0.0, %v794
        %v796 = vpop.f32.mrb[0].mxu0
        %v797 = vadd.f32 0.0, %v796
        %798 = vmatprep.mubr.f32.mxu0 0.0
        %799 = vmatmul.mubr.f32.gmra.mrb[0].mxu0 %v594
        %v800 = vpop.f32.mrb[0].mxu0
        %v801 = vadd.f32 0.0, %v800
        %v802 = vpop.f32.mrb[0].mxu0
        %v803 = vadd.f32 0.0, %v802
        %804 = vmatprep.mubr.f32.mxu0 0.0
        %805 = vmatmul.mubr.f32.gmra.mrb[0].mxu0 %v597
        %v806 = vpop.f32.mrb[0].mxu0
        %v807 = vadd.f32 0.0, %v806
        %v808 = vpop.f32.mrb[0].mxu0
        %v809 = vadd.f32 0.0, %v808
        %810 = vmatprep.mubr.f32.mxu0 0.0
        %811 = vmatmul.mubr.f32.gmra.mrb[0].mxu0 %v600
        %v812 = vpop.f32.mrb[0].mxu0
        %v813 = vadd.f32 0.0, %v812
        %v814 = vpop.f32.mrb[0].mxu0
        %v815 = vadd.f32 0.0, %v814
        %816 = vmatprep.mubr.f32.mxu0 0.0
        %817 = vmatmul.mubr.f32.gmra.mrb[0].mxu0 %v603
        %v818 = vpop.f32.mrb[0].mxu0
        %v819 = vadd.f32 0.0, %v818
        %v820 = vpop.f32.mrb[0].mxu0
        %v821 = vadd.f32 0.0, %v820
        %822 = vmatprep.mubr.f32.mxu0 0.0
        %823 = vmatmul.mubr.f32.gmra.mrb[0].mxu0 %v606
        %v824 = vpop.f32.mrb[0].mxu0
        %v825 = vadd.f32 0.0, %v824
        %v826 = vpop.f32.mrb[0].mxu0
        %v827 = vadd.f32 0.0, %v826
        %828 = vmatprep.mubr.f32.mxu0 0.0
        %829 = vmatmul.mubr.f32.gmra.mrb[0].mxu0 %v609
        %v830 = vpop.f32.mrb[0].mxu0
        %v831 = vadd.f32 0.0, %v830
        %v832 = vpop.f32.mrb[0].mxu0
        %v833 = vadd.f32 0.0, %v832
        %834 = vmatprep.mubr.f32.mxu0 0.0
        %835 = vmatmul.mubr.f32.gmra.mrb[0].mxu0 %v612
        %v836 = vpop.f32.mrb[0].mxu0
        %v837 = vadd.f32 0.0, %v836
        %v838 = vpop.f32.mrb[0].mxu0
        %v839 = vadd.f32 0.0, %v838
        %840 = vmatprep.mubr.f32.mxu0 0.0
        %841 = vmatmul.mubr.f32.gmra.mrb[0].mxu0 %v615
        %v842 = vpop.f32.mrb[0].mxu0
        %v843 = vadd.f32 0.0, %v842
        %v844 = vpop.f32.mrb[0].mxu0
        %v845 = vadd.f32 0.0, %v844
        %846 = vmatprep.mubr.f32.mxu0 0.0
        %847 = vmatmul.mubr.f32.gmra.mrb[0].mxu0 %v618
        %v848 = vpop.f32.mrb[0].mxu0
        %v849 = vadd.f32 0.0, %v848
        %v850 = vpop.f32.mrb[0].mxu0
        %v851 = vadd.f32 0.0, %v850
        %852 = vdwg.mxu0
        %853 = vst [vmem:[%s185] sm:$0xff] %v687
        %vm854 = vcmask 785408
        %855 = vst.msk [vmem:[%s185 + $0x8] sm:$0xff] %vm854, %v689
        %856 = vst [vmem:[%s185 + $0x10] sm:$0xff] %v693
        %857 = vst.msk [vmem:[%s185 + $0x18] sm:$0xff] %vm854, %v695
        %858 = vst [vmem:[%s185 + $0x20] sm:$0xff] %v699
        %859 = vst.msk [vmem:[%s185 + $0x28] sm:$0xff] %vm854, %v701
        %860 = vst [vmem:[%s185 + $0x30] sm:$0xff] %v705
        %861 = vst.msk [vmem:[%s185 + $0x38] sm:$0xff] %vm854, %v707
        %862 = vst [vmem:[%s185 + $0x40] sm:$0xff] %v711
        %863 = vst.msk [vmem:[%s185 + $0x48] sm:$0xff] %vm854, %v713
        %864 = vst [vmem:[%s185 + $0x50] sm:$0xff] %v717
        %865 = vst.msk [vmem:[%s185 + $0x58] sm:$0xff] %vm854, %v719
        %866 = vst [vmem:[%s185 + $0x60] sm:$0xff] %v723
        %867 = vst.msk [vmem:[%s185 + $0x68] sm:$0xff] %vm854, %v725
        %868 = vst [vmem:[%s185 + $0x70] sm:$0xff] %v729
        %869 = vst.msk [vmem:[%s185 + $0x78] sm:$0xff] %vm854, %v731
        %870 = vst [vmem:[%s185 + $0x80] sm:$0xff] %v735
        %871 = vst.msk [vmem:[%s185 + $0x88] sm:$0xff] %vm854, %v737
        %872 = vst [vmem:[%s185 + $0x90] sm:$0xff] %v741
        %873 = vst.msk [vmem:[%s185 + $0x98] sm:$0xff] %vm854, %v743
        %874 = vst [vmem:[%s185 + $0xa0] sm:$0xff] %v747
        %875 = vst.msk [vmem:[%s185 + $0xa8] sm:$0xff] %vm854, %v749
        %876 = vst [vmem:[%s185 + $0xb0] sm:$0xff] %v753
        %877 = vst.msk [vmem:[%s185 + $0xb8] sm:$0xff] %vm854, %v755
        %878 = vst [vmem:[%s185 + $0xc0] sm:$0xff] %v759
        %879 = vst.msk [vmem:[%s185 + $0xc8] sm:$0xff] %vm854, %v761
        %880 = vst [vmem:[%s185 + $0xd0] sm:$0xff] %v765
        %881 = vst.msk [vmem:[%s185 + $0xd8] sm:$0xff] %vm854, %v767
        %882 = vst [vmem:[%s185 + $0xe0] sm:$0xff] %v771
        %883 = vst.msk [vmem:[%s185 + $0xe8] sm:$0xff] %vm854, %v773
        %884 = vst [vmem:[%s185 + $0xf0] sm:$0xff] %v777
        %885 = vst.msk [vmem:[%s185 + $0xf8] sm:$0xff] %vm854, %v779
        %886 = vst [vmem:[%s185 + $0x100] sm:$0xff] %v783
        %887 = vst.msk [vmem:[%s185 + $0x108] sm:$0xff] %vm854, %v785
        %888 = vst [vmem:[%s185 + $0x110] sm:$0xff] %v789
        %889 = vst.msk [vmem:[%s185 + $0x118] sm:$0xff] %vm854, %v791
        %890 = vst [vmem:[%s185 + $0x120] sm:$0xff] %v795
        %891 = vst.msk [vmem:[%s185 + $0x128] sm:$0xff] %vm854, %v797
        %892 = vst [vmem:[%s185 + $0x130] sm:$0xff] %v801
        %893 = vst.msk [vmem:[%s185 + $0x138] sm:$0xff] %vm854, %v803
        %894 = vst [vmem:[%s185 + $0x140] sm:$0xff] %v807
        %895 = vst.msk [vmem:[%s185 + $0x148] sm:$0xff] %vm854, %v809
        %896 = vst [vmem:[%s185 + $0x150] sm:$0xff] %v813
        %897 = vst.msk [vmem:[%s185 + $0x158] sm:$0xff] %vm854, %v815
        %898 = vst [vmem:[%s185 + $0x160] sm:$0xff] %v819
        %899 = vst.msk [vmem:[%s185 + $0x168] sm:$0xff] %vm854, %v821
        %900 = vst [vmem:[%s185 + $0x170] sm:$0xff] %v825
        %901 = vst.msk [vmem:[%s185 + $0x178] sm:$0xff] %vm854, %v827
        %902 = vst [vmem:[%s185 + $0x180] sm:$0xff] %v831
        %903 = vst.msk [vmem:[%s185 + $0x188] sm:$0xff] %vm854, %v833
        %904 = vst [vmem:[%s185 + $0x190] sm:$0xff] %v837
        %905 = vst.msk [vmem:[%s185 + $0x198] sm:$0xff] %vm854, %v839
        %906 = vst [vmem:[%s185 + $0x1a0] sm:$0xff] %v843
        %907 = vst.msk [vmem:[%s185 + $0x1a8] sm:$0xff] %vm854, %v845
        %908 = vst [vmem:[%s185 + $0x1b0] sm:$0xff] %v849
        %909 = vst.msk [vmem:[%s185 + $0x1b8] sm:$0xff] %vm854, %v851
        %v910 = vld [vmem:[%s2] sm:$0xff]
        %v911 = vld [vmem:[%s2 + $0x8] sm:$0xff]
        %v912 = vld [vmem:[%s2 + $0x10] sm:$0xff]
        %v913 = vld [vmem:[%s2 + $0x18] sm:$0xff]
        %v914 = vld [vmem:[%s2 + $0x20] sm:$0xff]
        %v915 = vld [vmem:[%s2 + $0x28] sm:$0xff]
        %v916 = vld [vmem:[%s2 + $0x30] sm:$0xff]
        %v917 = vld [vmem:[%s2 + $0x38] sm:$0xff]
        %v918 = vld [vmem:[%s2 + $0x40] sm:$0xff]
        %v919 = vld [vmem:[%s2 + $0x48] sm:$0xff]
        %v920 = vld [vmem:[%s2 + $0x50] sm:$0xff]
        %v921 = vld [vmem:[%s2 + $0x58] sm:$0xff]
        %v922 = vld [vmem:[%s2 + $0x60] sm:$0xff]
        %v923 = vld [vmem:[%s2 + $0x68] sm:$0xff]
        %v924 = vld [vmem:[%s2 + $0x70] sm:$0xff]
        %v925 = vld [vmem:[%s2 + $0x78] sm:$0xff]
        %v926 = vld [vmem:[%s2 + $0x80] sm:$0xff]
        %v927 = vld [vmem:[%s2 + $0x88] sm:$0xff]
        %v928 = vld [vmem:[%s2 + $0x90] sm:$0xff]
        %v929 = vld [vmem:[%s2 + $0x98] sm:$0xff]
        %v930 = vld [vmem:[%s2 + $0xa0] sm:$0xff]
        %v931 = vld [vmem:[%s2 + $0xa8] sm:$0xff]
        %v932 = vld [vmem:[%s2 + $0xb0] sm:$0xff]
        %v933 = vld [vmem:[%s2 + $0xb8] sm:$0xff]
        %v934 = vld [vmem:[%s2 + $0xc0] sm:$0xff]
        %v935 = vld [vmem:[%s2 + $0xc8] sm:$0xff]
        %v936 = vld [vmem:[%s2 + $0xd0] sm:$0xff]
        %v937 = vld [vmem:[%s2 + $0xd8] sm:$0xff]
        %v939 = vsel %vm226, %v910, 0
        %v942 = vsel %vm226, %v911, 0
        %v945 = vsel %vm226, %v912, 0
        %v948 = vsel %vm226, %v913, 0
        %v951 = vsel %vm226, %v914, 0
        %v954 = vsel %vm226, %v915, 0
        %v957 = vsel %vm226, %v916, 0
        %v960 = vsel %vm226, %v917, 0
        %v963 = vsel %vm226, %v918, 0
        %v966 = vsel %vm226, %v919, 0
        %v969 = vsel %vm226, %v920, 0
        %v972 = vsel %vm226, %v921, 0
        %v975 = vsel %vm226, %v922, 0
        %v978 = vsel %vm226, %v923, 0
        %v981 = vsel %vm226, %v924, 0
        %v984 = vsel %vm226, %v925, 0
        %v987 = vsel %vm226, %v926, 0
        %v990 = vsel %vm226, %v927, 0
        %v993 = vsel %vm226, %v928, 0
        %v996 = vsel %vm226, %v929, 0
        %v999 = vsel %vm226, %v930, 0
        %v1002 = vsel %vm226, %v931, 0
        %v1005 = vsel %vm226, %v932, 0
        %v1008 = vsel %vm226, %v933, 0
        %v1011 = vsel %vm226, %v934, 0
        %v1014 = vsel %vm226, %v935, 0
        %v1017 = vsel %vm226, %v936, 0
        %v1020 = vsel %vm226, %v937, 0
        %1022 = vmatprep.subr.mxu0 %v416
        %1023 = vmatpush1.msra.mxu0 %v414
        %1024 = vmatprep.subr.mxu0 %v422
        %1025 = vmatpush1.msra.mxu0 %v420
        %1026 = vmatprep.subr.mxu0 %v428
        %1027 = vmatpush1.msra.mxu0 %v426
        %1028 = vmatprep.subr.mxu0 %v434
        %1029 = vmatpush1.msra.mxu0 %v432
        %1030 = vmatprep.subr.mxu0 %v440
        %1031 = vmatpush1.msra.mxu0 %v438
        %1032 = vmatprep.subr.mxu0 %v446
        %1033 = vmatpush1.msra.mxu0 %v444
        %1034 = vmatprep.subr.mxu0 %v452
        %1035 = vmatpush1.msra.mxu0 %v450
        %1036 = vmatprep.subr.mxu0 %v458
        %1037 = vmatpush1.msra.mxu0 %v456
        %1038 = vmatprep.subr.mxu0 0.0
        %1039 = vmatpush1.msra.mxu0 0.0
        %1040 = vmatprep.subr.mxu0 0.0
        %1041 = vmatpush1.msra.mxu0 0.0
        %1042 = vmatprep.subr.mxu0 0.0
        %1043 = vmatpush1.msra.mxu0 0.0
        %1044 = vmatprep.subr.mxu0 0.0
        %1045 = vmatpush1.msra.mxu0 0.0
        %1046 = vmatprep.subr.mxu0 0.0
        %1047 = vmatpush1.msra.mxu0 0.0
        %1048 = vmatprep.subr.mxu0 0.0
        %1049 = vmatpush1.msra.mxu0 0.0
        %1050 = vmatprep.subr.mxu0 0.0
        %1051 = vmatpush1.msra.mxu0 0.0
        %1052 = vmatprep.subr.mxu0 0.0
        %1053 = vmatpush1.msra.mxu0 0.0
        %1054 = vmatprep.subr.mxu0 0.0
        %1055 = vmatpush1.msra.mxu0 0.0
        %1056 = vmatprep.subr.mxu0 0.0
        %1057 = vmatpush1.msra.mxu0 0.0
        %1058 = vmatprep.subr.mxu0 0.0
        %1059 = vmatpush1.msra.mxu0 0.0
        %1060 = vmatprep.subr.mxu0 0.0
        %1061 = vmatpush1.msra.mxu0 0.0
        %1062 = vmatprep.subr.mxu0 0.0
        %1063 = vmatpush1.msra.mxu0 0.0
        %1064 = vmatprep.subr.mxu0 0.0
        %1065 = vmatpush1.msra.mxu0 0.0
        %1066 = vmatprep.subr.mxu0 0.0
        %1067 = vmatpush1.msra.mxu0 0.0
        %1068 = vmatprep.subr.mxu0 0.0
        %1069 = vmatpush1.msra.mxu0 0.0
        %1070 = vmatprep.subr.mxu0 0.0
        %1071 = vmatpush1.msra.mxu0 0.0
        %1072 = vmatprep.subr.mxu0 0.0
        %1073 = vmatpush1.msra.mxu0 0.0
        %1074 = vmatprep.subr.mxu0 0.0
        %1075 = vmatpush1.msra.mxu0 0.0
        %1076 = vmatprep.subr.mxu0 0.0
        %1077 = vmatpush1.msra.mxu0 0.0
        %1078 = vmatprep.subr.mxu0 0.0
        %1079 = vmatpush1.msra.mxu0 0.0
        %1080 = vmatprep.subr.mxu0 0.0
        %1081 = vmatpush1.msra.mxu0 0.0
        %1082 = vmatprep.subr.mxu0 0.0
        %1083 = vmatpush1.msra.mxu0 0.0
        %1084 = vmatprep.subr.mxu0 0.0
        %1085 = vmatpush1.msra.mxu0 0.0
        %1086 = vmatprep.mubr.f32.mxu0 0.0
        %1087 = vmatmul.mubr.f32.gmra.mrb[0].mxu0 %v939
        %v1088 = vpop.f32.mrb[0].mxu0
        %v1089 = vadd.f32 0.0, %v1088
        %v1090 = vpop.f32.mrb[0].mxu0
        %v1091 = vadd.f32 0.0, %v1090
        %1092 = vmatprep.mubr.f32.mxu0 0.0
        %1093 = vmatmul.mubr.f32.gmra.mrb[0].mxu0 %v942
        %v1094 = vpop.f32.mrb[0].mxu0
        %v1095 = vadd.f32 0.0, %v1094
        %v1096 = vpop.f32.mrb[0].mxu0
        %v1097 = vadd.f32 0.0, %v1096
        %1098 = vmatprep.mubr.f32.mxu0 0.0
        %1099 = vmatmul.mubr.f32.gmra.mrb[0].mxu0 %v945
        %v1100 = vpop.f32.mrb[0].mxu0
        %v1101 = vadd.f32 0.0, %v1100
        %v1102 = vpop.f32.mrb[0].mxu0
        %v1103 = vadd.f32 0.0, %v1102
        %1104 = vmatprep.mubr.f32.mxu0 0.0
        %1105 = vmatmul.mubr.f32.gmra.mrb[0].mxu0 %v948
        %v1106 = vpop.f32.mrb[0].mxu0
        %v1107 = vadd.f32 0.0, %v1106
        %v1108 = vpop.f32.mrb[0].mxu0
        %v1109 = vadd.f32 0.0, %v1108
        %1110 = vmatprep.mubr.f32.mxu0 0.0
        %1111 = vmatmul.mubr.f32.gmra.mrb[0].mxu0 %v951
        %v1112 = vpop.f32.mrb[0].mxu0
        %v1113 = vadd.f32 0.0, %v1112
        %v1114 = vpop.f32.mrb[0].mxu0
        %v1115 = vadd.f32 0.0, %v1114
        %1116 = vmatprep.mubr.f32.mxu0 0.0
        %1117 = vmatmul.mubr.f32.gmra.mrb[0].mxu0 %v954
        %v1118 = vpop.f32.mrb[0].mxu0
        %v1119 = vadd.f32 0.0, %v1118
        %v1120 = vpop.f32.mrb[0].mxu0
        %v1121 = vadd.f32 0.0, %v1120
        %1122 = vmatprep.mubr.f32.mxu0 0.0
        %1123 = vmatmul.mubr.f32.gmra.mrb[0].mxu0 %v957
        %v1124 = vpop.f32.mrb[0].mxu0
        %v1125 = vadd.f32 0.0, %v1124
        %v1126 = vpop.f32.mrb[0].mxu0
        %v1127 = vadd.f32 0.0, %v1126
        %1128 = vmatprep.mubr.f32.mxu0 0.0
        %1129 = vmatmul.mubr.f32.gmra.mrb[0].mxu0 %v960
        %v1130 = vpop.f32.mrb[0].mxu0
        %v1131 = vadd.f32 0.0, %v1130
        %v1132 = vpop.f32.mrb[0].mxu0
        %v1133 = vadd.f32 0.0, %v1132
        %1134 = vmatprep.mubr.f32.mxu0 0.0
        %1135 = vmatmul.mubr.f32.gmra.mrb[0].mxu0 %v963
        %v1136 = vpop.f32.mrb[0].mxu0
        %v1137 = vadd.f32 0.0, %v1136
        %v1138 = vpop.f32.mrb[0].mxu0
        %v1139 = vadd.f32 0.0, %v1138
        %1140 = vmatprep.mubr.f32.mxu0 0.0
        %1141 = vmatmul.mubr.f32.gmra.mrb[0].mxu0 %v966
        %v1142 = vpop.f32.mrb[0].mxu0
        %v1143 = vadd.f32 0.0, %v1142
        %v1144 = vpop.f32.mrb[0].mxu0
        %v1145 = vadd.f32 0.0, %v1144
        %1146 = vmatprep.mubr.f32.mxu0 0.0
        %1147 = vmatmul.mubr.f32.gmra.mrb[0].mxu0 %v969
        %v1148 = vpop.f32.mrb[0].mxu0
        %v1149 = vadd.f32 0.0, %v1148
        %v1150 = vpop.f32.mrb[0].mxu0
        %v1151 = vadd.f32 0.0, %v1150
        %1152 = vmatprep.mubr.f32.mxu0 0.0
        %1153 = vmatmul.mubr.f32.gmra.mrb[0].mxu0 %v972
        %v1154 = vpop.f32.mrb[0].mxu0
        %v1155 = vadd.f32 0.0, %v1154
        %v1156 = vpop.f32.mrb[0].mxu0
        %v1157 = vadd.f32 0.0, %v1156
        %1158 = vmatprep.mubr.f32.mxu0 0.0
        %1159 = vmatmul.mubr.f32.gmra.mrb[0].mxu0 %v975
        %v1160 = vpop.f32.mrb[0].mxu0
        %v1161 = vadd.f32 0.0, %v1160
        %v1162 = vpop.f32.mrb[0].mxu0
        %v1163 = vadd.f32 0.0, %v1162
        %1164 = vmatprep.mubr.f32.mxu0 0.0
        %1165 = vmatmul.mubr.f32.gmra.mrb[0].mxu0 %v978
        %v1166 = vpop.f32.mrb[0].mxu0
        %v1167 = vadd.f32 0.0, %v1166
        %v1168 = vpop.f32.mrb[0].mxu0
        %v1169 = vadd.f32 0.0, %v1168
        %1170 = vmatprep.mubr.f32.mxu0 0.0
        %1171 = vmatmul.mubr.f32.gmra.mrb[0].mxu0 %v981
        %v1172 = vpop.f32.mrb[0].mxu0
        %v1173 = vadd.f32 0.0, %v1172
        %v1174 = vpop.f32.mrb[0].mxu0
        %v1175 = vadd.f32 0.0, %v1174
        %1176 = vmatprep.mubr.f32.mxu0 0.0
        %1177 = vmatmul.mubr.f32.gmra.mrb[0].mxu0 %v984
        %v1178 = vpop.f32.mrb[0].mxu0
        %v1179 = vadd.f32 0.0, %v1178
        %v1180 = vpop.f32.mrb[0].mxu0
        %v1181 = vadd.f32 0.0, %v1180
        %1182 = vmatprep.mubr.f32.mxu0 0.0
        %1183 = vmatmul.mubr.f32.gmra.mrb[0].mxu0 %v987
        %v1184 = vpop.f32.mrb[0].mxu0
        %v1185 = vadd.f32 0.0, %v1184
        %v1186 = vpop.f32.mrb[0].mxu0
        %v1187 = vadd.f32 0.0, %v1186
        %1188 = vmatprep.mubr.f32.mxu0 0.0
        %1189 = vmatmul.mubr.f32.gmra.mrb[0].mxu0 %v990
        %v1190 = vpop.f32.mrb[0].mxu0
        %v1191 = vadd.f32 0.0, %v1190
        %v1192 = vpop.f32.mrb[0].mxu0
        %v1193 = vadd.f32 0.0, %v1192
        %1194 = vmatprep.mubr.f32.mxu0 0.0
        %1195 = vmatmul.mubr.f32.gmra.mrb[0].mxu0 %v993
        %v1196 = vpop.f32.mrb[0].mxu0
        %v1197 = vadd.f32 0.0, %v1196
        %v1198 = vpop.f32.mrb[0].mxu0
        %v1199 = vadd.f32 0.0, %v1198
        %1200 = vmatprep.mubr.f32.mxu0 0.0
        %1201 = vmatmul.mubr.f32.gmra.mrb[0].mxu0 %v996
        %v1202 = vpop.f32.mrb[0].mxu0
        %v1203 = vadd.f32 0.0, %v1202
        %v1204 = vpop.f32.mrb[0].mxu0
        %v1205 = vadd.f32 0.0, %v1204
        %1206 = vmatprep.mubr.f32.mxu0 0.0
        %1207 = vmatmul.mubr.f32.gmra.mrb[0].mxu0 %v999
        %v1208 = vpop.f32.mrb[0].mxu0
        %v1209 = vadd.f32 0.0, %v1208
        %v1210 = vpop.f32.mrb[0].mxu0
        %v1211 = vadd.f32 0.0, %v1210
        %1212 = vmatprep.mubr.f32.mxu0 0.0
        %1213 = vmatmul.mubr.f32.gmra.mrb[0].mxu0 %v1002
        %v1214 = vpop.f32.mrb[0].mxu0
        %v1215 = vadd.f32 0.0, %v1214
        %v1216 = vpop.f32.mrb[0].mxu0
        %v1217 = vadd.f32 0.0, %v1216
        %1218 = vmatprep.mubr.f32.mxu0 0.0
        %1219 = vmatmul.mubr.f32.gmra.mrb[0].mxu0 %v1005
        %v1220 = vpop.f32.mrb[0].mxu0
        %v1221 = vadd.f32 0.0, %v1220
        %v1222 = vpop.f32.mrb[0].mxu0
        %v1223 = vadd.f32 0.0, %v1222
        %1224 = vmatprep.mubr.f32.mxu0 0.0
        %1225 = vmatmul.mubr.f32.gmra.mrb[0].mxu0 %v1008
        %v1226 = vpop.f32.mrb[0].mxu0
        %v1227 = vadd.f32 0.0, %v1226
        %v1228 = vpop.f32.mrb[0].mxu0
        %v1229 = vadd.f32 0.0, %v1228
        %1230 = vmatprep.mubr.f32.mxu0 0.0
        %1231 = vmatmul.mubr.f32.gmra.mrb[0].mxu0 %v1011
        %v1232 = vpop.f32.mrb[0].mxu0
        %v1233 = vadd.f32 0.0, %v1232
        %v1234 = vpop.f32.mrb[0].mxu0
        %v1235 = vadd.f32 0.0, %v1234
        %1236 = vmatprep.mubr.f32.mxu0 0.0
        %1237 = vmatmul.mubr.f32.gmra.mrb[0].mxu0 %v1014
        %v1238 = vpop.f32.mrb[0].mxu0
        %v1239 = vadd.f32 0.0, %v1238
        %v1240 = vpop.f32.mrb[0].mxu0
        %v1241 = vadd.f32 0.0, %v1240
        %1242 = vmatprep.mubr.f32.mxu0 0.0
        %1243 = vmatmul.mubr.f32.gmra.mrb[0].mxu0 %v1017
        %v1244 = vpop.f32.mrb[0].mxu0
        %v1245 = vadd.f32 0.0, %v1244
        %v1246 = vpop.f32.mrb[0].mxu0
        %v1247 = vadd.f32 0.0, %v1246
        %1248 = vmatprep.mubr.f32.mxu0 0.0
        %1249 = vmatmul.mubr.f32.gmra.mrb[0].mxu0 %v1020
        %v1250 = vpop.f32.mrb[0].mxu0
        %v1251 = vadd.f32 0.0, %v1250
        %v1252 = vpop.f32.mrb[0].mxu0
        %v1253 = vadd.f32 0.0, %v1252
        %1254 = vdwg.mxu0
        %s1255 = scalar_lea.vmem %s185, 448
        %1256 = vst [vmem:[%s1255] sm:$0xff] %v1089
        %1257 = vst.msk [vmem:[%s1255 + $0x8] sm:$0xff] %vm854, %v1091
        %1258 = vst [vmem:[%s1255 + $0x10] sm:$0xff] %v1095
        %1259 = vst.msk [vmem:[%s1255 + $0x18] sm:$0xff] %vm854, %v1097
        %1260 = vst [vmem:[%s1255 + $0x20] sm:$0xff] %v1101
        %1261 = vst.msk [vmem:[%s1255 + $0x28] sm:$0xff] %vm854, %v1103
        %1262 = vst [vmem:[%s1255 + $0x30] sm:$0xff] %v1107
        %1263 = vst.msk [vmem:[%s1255 + $0x38] sm:$0xff] %vm854, %v1109
        %1264 = vst [vmem:[%s1255 + $0x40] sm:$0xff] %v1113
        %1265 = vst.msk [vmem:[%s1255 + $0x48] sm:$0xff] %vm854, %v1115
        %1266 = vst [vmem:[%s1255 + $0x50] sm:$0xff] %v1119
        %1267 = vst.msk [vmem:[%s1255 + $0x58] sm:$0xff] %vm854, %v1121
        %1268 = vst [vmem:[%s1255 + $0x60] sm:$0xff] %v1125
        %1269 = vst.msk [vmem:[%s1255 + $0x68] sm:$0xff] %vm854, %v1127
        %1270 = vst [vmem:[%s1255 + $0x70] sm:$0xff] %v1131
        %1271 = vst.msk [vmem:[%s1255 + $0x78] sm:$0xff] %vm854, %v1133
        %1272 = vst [vmem:[%s1255 + $0x80] sm:$0xff] %v1137
        %1273 = vst.msk [vmem:[%s1255 + $0x88] sm:$0xff] %vm854, %v1139
        %1274 = vst [vmem:[%s1255 + $0x90] sm:$0xff] %v1143
        %1275 = vst.msk [vmem:[%s1255 + $0x98] sm:$0xff] %vm854, %v1145
        %1276 = vst [vmem:[%s1255 + $0xa0] sm:$0xff] %v1149
        %1277 = vst.msk [vmem:[%s1255 + $0xa8] sm:$0xff] %vm854, %v1151
        %1278 = vst [vmem:[%s1255 + $0xb0] sm:$0xff] %v1155
        %1279 = vst.msk [vmem:[%s1255 + $0xb8] sm:$0xff] %vm854, %v1157
        %1280 = vst [vmem:[%s1255 + $0xc0] sm:$0xff] %v1161
        %1281 = vst.msk [vmem:[%s1255 + $0xc8] sm:$0xff] %vm854, %v1163
        %1282 = vst [vmem:[%s1255 + $0xd0] sm:$0xff] %v1167
        %1283 = vst.msk [vmem:[%s1255 + $0xd8] sm:$0xff] %vm854, %v1169
        %1284 = vst [vmem:[%s1255 + $0xe0] sm:$0xff] %v1173
        %1285 = vst.msk [vmem:[%s1255 + $0xe8] sm:$0xff] %vm854, %v1175
        %1286 = vst [vmem:[%s1255 + $0xf0] sm:$0xff] %v1179
        %1287 = vst.msk [vmem:[%s1255 + $0xf8] sm:$0xff] %vm854, %v1181
        %1288 = vst [vmem:[%s1255 + $0x100] sm:$0xff] %v1185
        %1289 = vst.msk [vmem:[%s1255 + $0x108] sm:$0xff] %vm854, %v1187
        %1290 = vst [vmem:[%s1255 + $0x110] sm:$0xff] %v1191
        %1291 = vst.msk [vmem:[%s1255 + $0x118] sm:$0xff] %vm854, %v1193
        %1292 = vst [vmem:[%s1255 + $0x120] sm:$0xff] %v1197
        %1293 = vst.msk [vmem:[%s1255 + $0x128] sm:$0xff] %vm854, %v1199
        %1294 = vst [vmem:[%s1255 + $0x130] sm:$0xff] %v1203
        %1295 = vst.msk [vmem:[%s1255 + $0x138] sm:$0xff] %vm854, %v1205
        %1296 = vst [vmem:[%s1255 + $0x140] sm:$0xff] %v1209
        %1297 = vst.msk [vmem:[%s1255 + $0x148] sm:$0xff] %vm854, %v1211
        %1298 = vst [vmem:[%s1255 + $0x150] sm:$0xff] %v1215
        %1299 = vst.msk [vmem:[%s1255 + $0x158] sm:$0xff] %vm854, %v1217
        %1300 = vst [vmem:[%s1255 + $0x160] sm:$0xff] %v1221
        %1301 = vst.msk [vmem:[%s1255 + $0x168] sm:$0xff] %vm854, %v1223
        %1302 = vst [vmem:[%s1255 + $0x170] sm:$0xff] %v1227
        %1303 = vst.msk [vmem:[%s1255 + $0x178] sm:$0xff] %vm854, %v1229
        %1304 = vst [vmem:[%s1255 + $0x180] sm:$0xff] %v1233
        %1305 = vst.msk [vmem:[%s1255 + $0x188] sm:$0xff] %vm854, %v1235
        %1306 = vst [vmem:[%s1255 + $0x190] sm:$0xff] %v1239
        %1307 = vst.msk [vmem:[%s1255 + $0x198] sm:$0xff] %vm854, %v1241
        %1308 = vst [vmem:[%s1255 + $0x1a0] sm:$0xff] %v1245
        %1309 = vst.msk [vmem:[%s1255 + $0x1a8] sm:$0xff] %vm854, %v1247
        %1310 = vst [vmem:[%s1255 + $0x1b0] sm:$0xff] %v1251
        %1311 = vst.msk [vmem:[%s1255 + $0x1b8] sm:$0xff] %vm854, %v1253
        %v1312 = vld [vmem:[%s2] sm:$0xff]
        %v1313 = vld [vmem:[%s2 + $0x8] sm:$0xff]
        %v1314 = vld [vmem:[%s2 + $0x10] sm:$0xff]
        %v1315 = vld [vmem:[%s2 + $0x18] sm:$0xff]
        %v1316 = vld [vmem:[%s2 + $0x20] sm:$0xff]
        %v1317 = vld [vmem:[%s2 + $0x28] sm:$0xff]
        %v1318 = vld [vmem:[%s2 + $0x30] sm:$0xff]
        %v1319 = vld [vmem:[%s2 + $0x38] sm:$0xff]
        %v1320 = vld [vmem:[%s2 + $0x40] sm:$0xff]
        %v1321 = vld [vmem:[%s2 + $0x48] sm:$0xff]
        %v1322 = vld [vmem:[%s2 + $0x50] sm:$0xff]
        %v1323 = vld [vmem:[%s2 + $0x58] sm:$0xff]
        %v1324 = vld [vmem:[%s2 + $0x60] sm:$0xff]
        %v1325 = vld [vmem:[%s2 + $0x68] sm:$0xff]
        %v1326 = vld [vmem:[%s2 + $0x70] sm:$0xff]
        %v1327 = vld [vmem:[%s2 + $0x78] sm:$0xff]
        %v1328 = vld [vmem:[%s2 + $0x80] sm:$0xff]
        %v1329 = vld [vmem:[%s2 + $0x88] sm:$0xff]
        %v1330 = vld [vmem:[%s2 + $0x90] sm:$0xff]
        %v1331 = vld [vmem:[%s2 + $0x98] sm:$0xff]
        %v1332 = vld [vmem:[%s2 + $0xa0] sm:$0xff]
        %v1333 = vld [vmem:[%s2 + $0xa8] sm:$0xff]
        %v1334 = vld [vmem:[%s2 + $0xb0] sm:$0xff]
        %v1335 = vld [vmem:[%s2 + $0xb8] sm:$0xff]
        %v1336 = vld [vmem:[%s2 + $0xc0] sm:$0xff]
        %v1337 = vld [vmem:[%s2 + $0xc8] sm:$0xff]
        %v1338 = vld [vmem:[%s2 + $0xd0] sm:$0xff]
        %v1339 = vld [vmem:[%s2 + $0xd8] sm:$0xff]
        %v1341 = vsel %vm226, %v1312, 0
        %v1344 = vsel %vm226, %v1313, 0
        %v1347 = vsel %vm226, %v1314, 0
        %v1350 = vsel %vm226, %v1315, 0
        %v1353 = vsel %vm226, %v1316, 0
        %v1356 = vsel %vm226, %v1317, 0
        %v1359 = vsel %vm226, %v1318, 0
        %v1362 = vsel %vm226, %v1319, 0
        %v1365 = vsel %vm226, %v1320, 0
        %v1368 = vsel %vm226, %v1321, 0
        %v1371 = vsel %vm226, %v1322, 0
        %v1374 = vsel %vm226, %v1323, 0
        %v1377 = vsel %vm226, %v1324, 0
        %v1380 = vsel %vm226, %v1325, 0
        %v1383 = vsel %vm226, %v1326, 0
        %v1386 = vsel %vm226, %v1327, 0
        %v1389 = vsel %vm226, %v1328, 0
        %v1392 = vsel %vm226, %v1329, 0
        %v1395 = vsel %vm226, %v1330, 0
        %v1398 = vsel %vm226, %v1331, 0
        %v1401 = vsel %vm226, %v1332, 0
        %v1404 = vsel %vm226, %v1333, 0
        %v1407 = vsel %vm226, %v1334, 0
        %v1410 = vsel %vm226, %v1335, 0
        %v1413 = vsel %vm226, %v1336, 0
        %v1416 = vsel %vm226, %v1337, 0
        %v1419 = vsel %vm226, %v1338, 0
        %v1422 = vsel %vm226, %v1339, 0
        %1424 = vmatprep.subr.mxu0 %v464
        %1425 = vmatpush1.msra.mxu0 %v462
        %1426 = vmatprep.subr.mxu0 %v470
        %1427 = vmatpush1.msra.mxu0 %v468
        %1428 = vmatprep.subr.mxu0 %v476
        %1429 = vmatpush1.msra.mxu0 %v474
        %1430 = vmatprep.subr.mxu0 %v482
        %1431 = vmatpush1.msra.mxu0 %v480
        %1432 = vmatprep.subr.mxu0 %v488
        %1433 = vmatpush1.msra.mxu0 %v486
        %1434 = vmatprep.subr.mxu0 %v494
        %1435 = vmatpush1.msra.mxu0 %v492
        %1436 = vmatprep.subr.mxu0 %v500
        %1437 = vmatpush1.msra.mxu0 %v498
        %1438 = vmatprep.subr.mxu0 %v506
        %1439 = vmatpush1.msra.mxu0 %v504
        %1440 = vmatprep.subr.mxu0 0.0
        %1441 = vmatpush1.msra.mxu0 0.0
        %1442 = vmatprep.subr.mxu0 0.0
        %1443 = vmatpush1.msra.mxu0 0.0
        %1444 = vmatprep.subr.mxu0 0.0
        %1445 = vmatpush1.msra.mxu0 0.0
        %1446 = vmatprep.subr.mxu0 0.0
        %1447 = vmatpush1.msra.mxu0 0.0
        %1448 = vmatprep.subr.mxu0 0.0
        %1449 = vmatpush1.msra.mxu0 0.0
        %1450 = vmatprep.subr.mxu0 0.0
        %1451 = vmatpush1.msra.mxu0 0.0
        %1452 = vmatprep.subr.mxu0 0.0
        %1453 = vmatpush1.msra.mxu0 0.0
        %1454 = vmatprep.subr.mxu0 0.0
        %1455 = vmatpush1.msra.mxu0 0.0
        %1456 = vmatprep.subr.mxu0 0.0
        %1457 = vmatpush1.msra.mxu0 0.0
        %1458 = vmatprep.subr.mxu0 0.0
        %1459 = vmatpush1.msra.mxu0 0.0
        %1460 = vmatprep.subr.mxu0 0.0
        %1461 = vmatpush1.msra.mxu0 0.0
        %1462 = vmatprep.subr.mxu0 0.0
        %1463 = vmatpush1.msra.mxu0 0.0
        %1464 = vmatprep.subr.mxu0 0.0
        %1465 = vmatpush1.msra.mxu0 0.0
        %1466 = vmatprep.subr.mxu0 0.0
        %1467 = vmatpush1.msra.mxu0 0.0
        %1468 = vmatprep.subr.mxu0 0.0
        %1469 = vmatpush1.msra.mxu0 0.0
        %1470 = vmatprep.subr.mxu0 0.0
        %1471 = vmatpush1.msra.mxu0 0.0
        %1472 = vmatprep.subr.mxu0 0.0
        %1473 = vmatpush1.msra.mxu0 0.0
        %1474 = vmatprep.subr.mxu0 0.0
        %1475 = vmatpush1.msra.mxu0 0.0
        %1476 = vmatprep.subr.mxu0 0.0
        %1477 = vmatpush1.msra.mxu0 0.0
        %1478 = vmatprep.subr.mxu0 0.0
        %1479 = vmatpush1.msra.mxu0 0.0
        %1480 = vmatprep.subr.mxu0 0.0
        %1481 = vmatpush1.msra.mxu0 0.0
        %1482 = vmatprep.subr.mxu0 0.0
        %1483 = vmatpush1.msra.mxu0 0.0
        %1484 = vmatprep.subr.mxu0 0.0
        %1485 = vmatpush1.msra.mxu0 0.0
        %1486 = vmatprep.subr.mxu0 0.0
        %1487 = vmatpush1.msra.mxu0 0.0
        %1488 = vmatprep.mubr.f32.mxu0 0.0
        %1489 = vmatmul.mubr.f32.gmra.mrb[0].mxu0 %v1341
        %v1490 = vpop.f32.mrb[0].mxu0
        %v1491 = vadd.f32 0.0, %v1490
        %v1492 = vpop.f32.mrb[0].mxu0
        %v1493 = vadd.f32 0.0, %v1492
        %1494 = vmatprep.mubr.f32.mxu0 0.0
        %1495 = vmatmul.mubr.f32.gmra.mrb[0].mxu0 %v1344
        %v1496 = vpop.f32.mrb[0].mxu0
        %v1497 = vadd.f32 0.0, %v1496
        %v1498 = vpop.f32.mrb[0].mxu0
        %v1499 = vadd.f32 0.0, %v1498
        %1500 = vmatprep.mubr.f32.mxu0 0.0
        %1501 = vmatmul.mubr.f32.gmra.mrb[0].mxu0 %v1347
        %v1502 = vpop.f32.mrb[0].mxu0
        %v1503 = vadd.f32 0.0, %v1502
        %v1504 = vpop.f32.mrb[0].mxu0
        %v1505 = vadd.f32 0.0, %v1504
        %1506 = vmatprep.mubr.f32.mxu0 0.0
        %1507 = vmatmul.mubr.f32.gmra.mrb[0].mxu0 %v1350
        %v1508 = vpop.f32.mrb[0].mxu0
        %v1509 = vadd.f32 0.0, %v1508
        %v1510 = vpop.f32.mrb[0].mxu0
        %v1511 = vadd.f32 0.0, %v1510
        %1512 = vmatprep.mubr.f32.mxu0 0.0
        %1513 = vmatmul.mubr.f32.gmra.mrb[0].mxu0 %v1353
        %v1514 = vpop.f32.mrb[0].mxu0
        %v1515 = vadd.f32 0.0, %v1514
        %v1516 = vpop.f32.mrb[0].mxu0
        %v1517 = vadd.f32 0.0, %v1516
        %1518 = vmatprep.mubr.f32.mxu0 0.0
        %1519 = vmatmul.mubr.f32.gmra.mrb[0].mxu0 %v1356
        %v1520 = vpop.f32.mrb[0].mxu0
        %v1521 = vadd.f32 0.0, %v1520
        %v1522 = vpop.f32.mrb[0].mxu0
        %v1523 = vadd.f32 0.0, %v1522
        %1524 = vmatprep.mubr.f32.mxu0 0.0
        %1525 = vmatmul.mubr.f32.gmra.mrb[0].mxu0 %v1359
        %v1526 = vpop.f32.mrb[0].mxu0
        %v1527 = vadd.f32 0.0, %v1526
        %v1528 = vpop.f32.mrb[0].mxu0
        %v1529 = vadd.f32 0.0, %v1528
        %1530 = vmatprep.mubr.f32.mxu0 0.0
        %1531 = vmatmul.mubr.f32.gmra.mrb[0].mxu0 %v1362
        %v1532 = vpop.f32.mrb[0].mxu0
        %v1533 = vadd.f32 0.0, %v1532
        %v1534 = vpop.f32.mrb[0].mxu0
        %v1535 = vadd.f32 0.0, %v1534
        %1536 = vmatprep.mubr.f32.mxu0 0.0
        %1537 = vmatmul.mubr.f32.gmra.mrb[0].mxu0 %v1365
        %v1538 = vpop.f32.mrb[0].mxu0
        %v1539 = vadd.f32 0.0, %v1538
        %v1540 = vpop.f32.mrb[0].mxu0
        %v1541 = vadd.f32 0.0, %v1540
        %1542 = vmatprep.mubr.f32.mxu0 0.0
        %1543 = vmatmul.mubr.f32.gmra.mrb[0].mxu0 %v1368
        %v1544 = vpop.f32.mrb[0].mxu0
        %v1545 = vadd.f32 0.0, %v1544
        %v1546 = vpop.f32.mrb[0].mxu0
        %v1547 = vadd.f32 0.0, %v1546
        %1548 = vmatprep.mubr.f32.mxu0 0.0
        %1549 = vmatmul.mubr.f32.gmra.mrb[0].mxu0 %v1371
        %v1550 = vpop.f32.mrb[0].mxu0
        %v1551 = vadd.f32 0.0, %v1550
        %v1552 = vpop.f32.mrb[0].mxu0
        %v1553 = vadd.f32 0.0, %v1552
        %1554 = vmatprep.mubr.f32.mxu0 0.0
        %1555 = vmatmul.mubr.f32.gmra.mrb[0].mxu0 %v1374
        %v1556 = vpop.f32.mrb[0].mxu0
        %v1557 = vadd.f32 0.0, %v1556
        %v1558 = vpop.f32.mrb[0].mxu0
        %v1559 = vadd.f32 0.0, %v1558
        %1560 = vmatprep.mubr.f32.mxu0 0.0
        %1561 = vmatmul.mubr.f32.gmra.mrb[0].mxu0 %v1377
        %v1562 = vpop.f32.mrb[0].mxu0
        %v1563 = vadd.f32 0.0, %v1562
        %v1564 = vpop.f32.mrb[0].mxu0
        %v1565 = vadd.f32 0.0, %v1564
        %1566 = vmatprep.mubr.f32.mxu0 0.0
        %1567 = vmatmul.mubr.f32.gmra.mrb[0].mxu0 %v1380
        %v1568 = vpop.f32.mrb[0].mxu0
        %v1569 = vadd.f32 0.0, %v1568
        %v1570 = vpop.f32.mrb[0].mxu0
        %v1571 = vadd.f32 0.0, %v1570
        %1572 = vmatprep.mubr.f32.mxu0 0.0
        %1573 = vmatmul.mubr.f32.gmra.mrb[0].mxu0 %v1383
        %v1574 = vpop.f32.mrb[0].mxu0
        %v1575 = vadd.f32 0.0, %v1574
        %v1576 = vpop.f32.mrb[0].mxu0
        %v1577 = vadd.f32 0.0, %v1576
        %1578 = vmatprep.mubr.f32.mxu0 0.0
        %1579 = vmatmul.mubr.f32.gmra.mrb[0].mxu0 %v1386
        %v1580 = vpop.f32.mrb[0].mxu0
        %v1581 = vadd.f32 0.0, %v1580
        %v1582 = vpop.f32.mrb[0].mxu0
        %v1583 = vadd.f32 0.0, %v1582
        %1584 = vmatprep.mubr.f32.mxu0 0.0
        %1585 = vmatmul.mubr.f32.gmra.mrb[0].mxu0 %v1389
        %v1586 = vpop.f32.mrb[0].mxu0
        %v1587 = vadd.f32 0.0, %v1586
        %v1588 = vpop.f32.mrb[0].mxu0
        %v1589 = vadd.f32 0.0, %v1588
        %1590 = vmatprep.mubr.f32.mxu0 0.0
        %1591 = vmatmul.mubr.f32.gmra.mrb[0].mxu0 %v1392
        %v1592 = vpop.f32.mrb[0].mxu0
        %v1593 = vadd.f32 0.0, %v1592
        %v1594 = vpop.f32.mrb[0].mxu0
        %v1595 = vadd.f32 0.0, %v1594
        %1596 = vmatprep.mubr.f32.mxu0 0.0
        %1597 = vmatmul.mubr.f32.gmra.mrb[0].mxu0 %v1395
        %v1598 = vpop.f32.mrb[0].mxu0
        %v1599 = vadd.f32 0.0, %v1598
        %v1600 = vpop.f32.mrb[0].mxu0
        %v1601 = vadd.f32 0.0, %v1600
        %1602 = vmatprep.mubr.f32.mxu0 0.0
        %1603 = vmatmul.mubr.f32.gmra.mrb[0].mxu0 %v1398
        %v1604 = vpop.f32.mrb[0].mxu0
        %v1605 = vadd.f32 0.0, %v1604
        %v1606 = vpop.f32.mrb[0].mxu0
        %v1607 = vadd.f32 0.0, %v1606
        %1608 = vmatprep.mubr.f32.mxu0 0.0
        %1609 = vmatmul.mubr.f32.gmra.mrb[0].mxu0 %v1401
        %v1610 = vpop.f32.mrb[0].mxu0
        %v1611 = vadd.f32 0.0, %v1610
        %v1612 = vpop.f32.mrb[0].mxu0
        %v1613 = vadd.f32 0.0, %v1612
        %1614 = vmatprep.mubr.f32.mxu0 0.0
        %1615 = vmatmul.mubr.f32.gmra.mrb[0].mxu0 %v1404
        %v1616 = vpop.f32.mrb[0].mxu0
        %v1617 = vadd.f32 0.0, %v1616
        %v1618 = vpop.f32.mrb[0].mxu0
        %v1619 = vadd.f32 0.0, %v1618
        %1620 = vmatprep.mubr.f32.mxu0 0.0
        %1621 = vmatmul.mubr.f32.gmra.mrb[0].mxu0 %v1407
        %v1622 = vpop.f32.mrb[0].mxu0
        %v1623 = vadd.f32 0.0, %v1622
        %v1624 = vpop.f32.mrb[0].mxu0
        %v1625 = vadd.f32 0.0, %v1624
        %1626 = vmatprep.mubr.f32.mxu0 0.0
        %1627 = vmatmul.mubr.f32.gmra.mrb[0].mxu0 %v1410
        %v1628 = vpop.f32.mrb[0].mxu0
        %v1629 = vadd.f32 0.0, %v1628
        %v1630 = vpop.f32.mrb[0].mxu0
        %v1631 = vadd.f32 0.0, %v1630
        %1632 = vmatprep.mubr.f32.mxu0 0.0
        %1633 = vmatmul.mubr.f32.gmra.mrb[0].mxu0 %v1413
        %v1634 = vpop.f32.mrb[0].mxu0
        %v1635 = vadd.f32 0.0, %v1634
        %v1636 = vpop.f32.mrb[0].mxu0
        %v1637 = vadd.f32 0.0, %v1636
        %1638 = vmatprep.mubr.f32.mxu0 0.0
        %1639 = vmatmul.mubr.f32.gmra.mrb[0].mxu0 %v1416
        %v1640 = vpop.f32.mrb[0].mxu0
        %v1641 = vadd.f32 0.0, %v1640
        %v1642 = vpop.f32.mrb[0].mxu0
        %v1643 = vadd.f32 0.0, %v1642
        %1644 = vmatprep.mubr.f32.mxu0 0.0
        %1645 = vmatmul.mubr.f32.gmra.mrb[0].mxu0 %v1419
        %v1646 = vpop.f32.mrb[0].mxu0
        %v1647 = vadd.f32 0.0, %v1646
        %v1648 = vpop.f32.mrb[0].mxu0
        %v1649 = vadd.f32 0.0, %v1648
        %1650 = vmatprep.mubr.f32.mxu0 0.0
        %1651 = vmatmul.mubr.f32.gmra.mrb[0].mxu0 %v1422
        %v1652 = vpop.f32.mrb[0].mxu0
        %v1653 = vadd.f32 0.0, %v1652
        %v1654 = vpop.f32.mrb[0].mxu0
        %v1655 = vadd.f32 0.0, %v1654
        %1656 = vdwg.mxu0
        %s1657 = scalar_lea.vmem %s185, 896
        %1658 = vst [vmem:[%s1657] sm:$0xff] %v1491
        %1659 = vst.msk [vmem:[%s1657 + $0x8] sm:$0xff] %vm854, %v1493
        %1660 = vst [vmem:[%s1657 + $0x10] sm:$0xff] %v1497
        %1661 = vst.msk [vmem:[%s1657 + $0x18] sm:$0xff] %vm854, %v1499
        %1662 = vst [vmem:[%s1657 + $0x20] sm:$0xff] %v1503
        %1663 = vst.msk [vmem:[%s1657 + $0x28] sm:$0xff] %vm854, %v1505
        %1664 = vst [vmem:[%s1657 + $0x30] sm:$0xff] %v1509
        %1665 = vst.msk [vmem:[%s1657 + $0x38] sm:$0xff] %vm854, %v1511
        %1666 = vst [vmem:[%s1657 + $0x40] sm:$0xff] %v1515
        %1667 = vst.msk [vmem:[%s1657 + $0x48] sm:$0xff] %vm854, %v1517
        %1668 = vst [vmem:[%s1657 + $0x50] sm:$0xff] %v1521
        %1669 = vst.msk [vmem:[%s1657 + $0x58] sm:$0xff] %vm854, %v1523
        %1670 = vst [vmem:[%s1657 + $0x60] sm:$0xff] %v1527
        %1671 = vst.msk [vmem:[%s1657 + $0x68] sm:$0xff] %vm854, %v1529
        %1672 = vst [vmem:[%s1657 + $0x70] sm:$0xff] %v1533
        %1673 = vst.msk [vmem:[%s1657 + $0x78] sm:$0xff] %vm854, %v1535
        %1674 = vst [vmem:[%s1657 + $0x80] sm:$0xff] %v1539
        %1675 = vst.msk [vmem:[%s1657 + $0x88] sm:$0xff] %vm854, %v1541
        %1676 = vst [vmem:[%s1657 + $0x90] sm:$0xff] %v1545
        %1677 = vst.msk [vmem:[%s1657 + $0x98] sm:$0xff] %vm854, %v1547
        %1678 = vst [vmem:[%s1657 + $0xa0] sm:$0xff] %v1551
        %1679 = vst.msk [vmem:[%s1657 + $0xa8] sm:$0xff] %vm854, %v1553
        %1680 = vst [vmem:[%s1657 + $0xb0] sm:$0xff] %v1557
        %1681 = vst.msk [vmem:[%s1657 + $0xb8] sm:$0xff] %vm854, %v1559
        %1682 = vst [vmem:[%s1657 + $0xc0] sm:$0xff] %v1563
        %1683 = vst.msk [vmem:[%s1657 + $0xc8] sm:$0xff] %vm854, %v1565
        %1684 = vst [vmem:[%s1657 + $0xd0] sm:$0xff] %v1569
        %1685 = vst.msk [vmem:[%s1657 + $0xd8] sm:$0xff] %vm854, %v1571
        %1686 = vst [vmem:[%s1657 + $0xe0] sm:$0xff] %v1575
        %1687 = vst.msk [vmem:[%s1657 + $0xe8] sm:$0xff] %vm854, %v1577
        %1688 = vst [vmem:[%s1657 + $0xf0] sm:$0xff] %v1581
        %1689 = vst.msk [vmem:[%s1657 + $0xf8] sm:$0xff] %vm854, %v1583
        %1690 = vst [vmem:[%s1657 + $0x100] sm:$0xff] %v1587
        %1691 = vst.msk [vmem:[%s1657 + $0x108] sm:$0xff] %vm854, %v1589
        %1692 = vst [vmem:[%s1657 + $0x110] sm:$0xff] %v1593
        %1693 = vst.msk [vmem:[%s1657 + $0x118] sm:$0xff] %vm854, %v1595
        %1694 = vst [vmem:[%s1657 + $0x120] sm:$0xff] %v1599
        %1695 = vst.msk [vmem:[%s1657 + $0x128] sm:$0xff] %vm854, %v1601
        %1696 = vst [vmem:[%s1657 + $0x130] sm:$0xff] %v1605
        %1697 = vst.msk [vmem:[%s1657 + $0x138] sm:$0xff] %vm854, %v1607
        %1698 = vst [vmem:[%s1657 + $0x140] sm:$0xff] %v1611
        %1699 = vst.msk [vmem:[%s1657 + $0x148] sm:$0xff] %vm854, %v1613
        %1700 = vst [vmem:[%s1657 + $0x150] sm:$0xff] %v1617
        %1701 = vst.msk [vmem:[%s1657 + $0x158] sm:$0xff] %vm854, %v1619
        %1702 = vst [vmem:[%s1657 + $0x160] sm:$0xff] %v1623
        %1703 = vst.msk [vmem:[%s1657 + $0x168] sm:$0xff] %vm854, %v1625
        %1704 = vst [vmem:[%s1657 + $0x170] sm:$0xff] %v1629
        %1705 = vst.msk [vmem:[%s1657 + $0x178] sm:$0xff] %vm854, %v1631
        %1706 = vst [vmem:[%s1657 + $0x180] sm:$0xff] %v1635
        %1707 = vst.msk [vmem:[%s1657 + $0x188] sm:$0xff] %vm854, %v1637
        %1708 = vst [vmem:[%s1657 + $0x190] sm:$0xff] %v1641
        %1709 = vst.msk [vmem:[%s1657 + $0x198] sm:$0xff] %vm854, %v1643
        %1710 = vst [vmem:[%s1657 + $0x1a0] sm:$0xff] %v1647
        %1711 = vst.msk [vmem:[%s1657 + $0x1a8] sm:$0xff] %vm854, %v1649
        %1712 = vst [vmem:[%s1657 + $0x1b0] sm:$0xff] %v1653
        %1713 = vst.msk [vmem:[%s1657 + $0x1b8] sm:$0xff] %vm854, %v1655
        %p1714 = scmp.lt.s32.totalorder %s15, 1
        %s1715 = scalar_select %p1714, %s15, 1
        %s1716 = smul.addr %s1715, 168
        %s1717 = smul.addr %s1716, 8
        %s1718 = scalar_lea.vmem %s3, %s1717
        // Predicated region
        $region37: #{mivolo_forward.2} parent=31 // pred_check
          %p1719 = pneg %p101
        $region38: #{mivolo_forward.2} parent=31 // pred_check_branch
          %1721 = sbr.rel (%p1719) target = $region40
        $region39: #{mivolo_forward.2} parent=31 // pred_region
          _
        $region40: #{mivolo_forward.2} parent=31 // pred_fallthru
          _
      $region32: #{mivolo_forward.2} parent=5 // pred_fallthru
        _
      %p1722 = scmp.le.s32.totalorder 2, %s10
      // Predicated region
      $region41: #{mivolo_forward.2} parent=5 // pred_check
        %p1723 = pneg %p1722
      $region42: #{mivolo_forward.2} parent=5 // pred_check_branch
        %1725 = sbr.rel (%p1723) target = $region44
      $region43: #{mivolo_forward.2} parent=5 // pred_region
        %s1726 = ssub.s32 %s10, 2
        // Predicated region
        $region45: #{mivolo_forward.2} parent=43 // pred_check
          %p1727 = pneg %p107
        $region46: #{mivolo_forward.2} parent=43 // pred_check_branch
          %1729 = sbr.rel (%p1727) target = $region48
        $region47: #{mivolo_forward.2} parent=43 // pred_region
          %p1730 = scmp.lt.s32.totalorder %s16, 1
          %s1731 = scalar_select %p1730, %s16, 1
          %s1732 = smul.addr %s1731, 168
          %s1733 = smul.addr %s1732, 8
          %s1734 = scalar_lea.vmem %s3, %s1733
        $region48: #{mivolo_forward.2} parent=43 // pred_fallthru
          _
      $region44: #{mivolo_forward.2} parent=5 // pred_fallthru
        _
    $region6: #{mivolo_forward.2} parent=1 // loop_footer
      %s14 = sadd.s32 1, %s10
    $region7: #{mivolo_forward.2} parent=1 // loop_footer_branch
      %9 = sbr.rel target = $region3
    $region8: #{mivolo_forward.2} parent=1 // loop_exit
      _
    %1735 = vsyncpa [#allocation3], 1
    %s1736 = scalar_lea.sflag [#allocation3], 1
    %1737 = vsyncpa %s1736, 1

// kernel: mivolo_forward.3
$region0: #{mivolo_forward.3}
  #allocation0 [shape = 'u32[]', space=smem, size = 0x4, offset = 0x4, fixed_abs, tag = 'smem constant byte address 0x4 - core index']
  #allocation1 [shape = 'u32[144,128]{1,0:T(1,128)}', space=vmem, size = 0x12000, scoped, tag = 'internal scratch']
  #allocation2 [shape = 'f32[30,30,32]{2,1,0:T(8,128)}', space=vmem, size = 0x78000, scoped, tag = 'scratch operand']
  %s0 = inlined_call_operand.vmem [shape: f32[2,784,192], index: 0, kind: input, shape index: {}]
  %s1 = inlined_call_operand.vmem [shape: f32[192,32], index: 1, kind: input, shape index: {}]
  %s2 = inlined_call_operand.vmem [shape: f32[1,32], index: 2, kind: input, shape index: {}]
  %s3 = inlined_call_operand.vmem [shape: f32[32,32], index: 3, kind: input, shape index: {}]
  %s4 = inlined_call_operand.vmem [shape: f32[1,32], index: 4, kind: input, shape index: {}]
  %s5 = inlined_call_operand.vmem [shape: f32[32,3], index: 5, kind: input, shape index: {}]
  %s6 = inlined_call_operand.vmem [shape: f32[1,3], index: 6, kind: input, shape index: {}]
  %s7 = inlined_call_operand.hbm [shape: f32[2,1,3], index: 7, kind: output, shape index: {}]
  %s8 = sld [smem:[#allocation0]]
  $region61: #{mivolo_forward.3} parent=0
    _
  %s10 = ssub.s32 1, %s8
  %s11 = scalar_select 0, %s10, %s8
  $region1: #{mivolo_forward.3} parent=0
    #allocation3 [shape = 'u8[1024]{0}', space=vmem, size = 0x400, scoped, tag = 'output window, operand 0']
    #allocation4 [shape = 's32[2]{0}', space=sflag, size = 0x8, scoped, tag = 'scoped memory for mivolo_forward.3']
    %12 = vsyncpa [#allocation4], 0
    %s13 = scalar_lea.sflag [#allocation4], 1
    %14 = vsyncpa %s13, 0
    loop: start=0, step=1, limit=4
    $region2: #{mivolo_forward.3} parent=1 // loop_pre_header
      _
    $region3: #{mivolo_forward.3} parent=1 // loop_header
      %s16 = sphi 0, %s20
      %p17 = scmp.ge.s32.totalorder %s16, 4
      %s26 = sphi 0, %s28
      %s29 = sphi 0, %s26
      %s30 = sphi 0, %s29
      %s46 = sphi 0, %s30
      %s50 = sphi 0, %s50
      %s52 = sphi 0, %s50
      %s53 = sphi 0, %s52
      %s67 = sphi 0, %s53
      %s71 = sphi 0, %s71
      %s73 = sphi 0, %s71
      %s74 = sphi 0, %s73
      %s88 = sphi 0, %s74
      %s92 = sphi 0, %s92
      %s94 = sphi 0, %s92
      %s95 = sphi 0, %s94
      %s109 = sphi 0, %s95
      %s113 = sphi 0, %s113
      %s115 = sphi 0, %s113
      %s116 = sphi 0, %s115
      %s130 = sphi 0, %s116
      %s134 = sphi 0, %s134
      %s136 = sphi 0, %s134
      %s137 = sphi 0, %s136
      %s151 = sphi 0, %s137
      %s155 = sphi 0, %s155
      %s157 = sphi 0, %s155
      %s158 = sphi 0, %s157
      %s172 = sphi 0, %s158
      %s178 = sphi 0, %s180
      %s181 = sphi 0, %s178
      %s182 = sphi 0, %s181
      %s198 = sphi 0, %s182
    $region4: #{mivolo_forward.3} parent=1 // loop_header_branch
      %19 = sbr.rel (%p17) target = $region8
    $region5: #{mivolo_forward.3} parent=1 // loop_body
      %s21 = ssub.s32 %s16, 1
      %s22 = ssub.s32 %s16, 2
      %s23 = sadd.s32 %s16, 1
      %s24 = ssub.s32 %s16, %s23
      %p25 = scmp.eq.s32.totalorder %s24, 0
      %s27 = sadd.s32 %s26, 1
      %s28 = scalar_select %p25, %s26, %s27
      %p31 = pneg %p25
      %p32 = scmp.eq.s32.totalorder %s16, 1
      %p33 = por %p31, %p32
      %p34 = scmp.ne.s32.totalorder %s26, %s29
      %p35 = scmp.eq.s32.totalorder %s16, 0
      %p36 = por %p34, %p35
      %p37 = scmp.ne.s32.totalorder %s26, %s29
      %p38 = scmp.eq.s32.totalorder %s21, 1
      %p39 = por %p37, %p38
      %p40 = scmp.ne.s32.totalorder %s29, %s30
      %p41 = scmp.eq.s32.totalorder %s21, 0
      %p42 = por %p40, %p41
      %p43 = scmp.ne.s32.totalorder %s29, %s30
      %p44 = scmp.eq.s32.totalorder %s22, 1
      %p45 = por %p43, %p44
      %p47 = scmp.ne.s32.totalorder %s30, %s46
      %p48 = scmp.eq.s32.totalorder %s22, 0
      %p49 = por %p47, %p48
      %s51 = sadd.s32 %s50, 1
      %p54 = scmp.eq.s32.totalorder %s16, 1
      %p55 = scmp.ne.s32.totalorder %s50, %s52
      %p56 = scmp.eq.s32.totalorder %s16, 0
      %p57 = por %p55, %p56
      %p58 = scmp.ne.s32.totalorder %s50, %s52
      %p59 = scmp.eq.s32.totalorder %s21, 1
      %p60 = por %p58, %p59
      %p61 = scmp.ne.s32.totalorder %s52, %s53
      %p62 = scmp.eq.s32.totalorder %s21, 0
      %p63 = por %p61, %p62
      %p64 = scmp.ne.s32.totalorder %s52, %s53
      %p65 = scmp.eq.s32.totalorder %s22, 1
      %p66 = por %p64, %p65
      %p68 = scmp.ne.s32.totalorder %s53, %s67
      %p69 = scmp.eq.s32.totalorder %s22, 0
      %p70 = por %p68, %p69
      %s72 = sadd.s32 %s71, 1
      %p75 = scmp.eq.s32.totalorder %s16, 1
      %p76 = scmp.ne.s32.totalorder %s71, %s73
      %p77 = scmp.eq.s32.totalorder %s16, 0
      %p78 = por %p76, %p77
      %p79 = scmp.ne.s32.totalorder %s71, %s73
      %p80 = scmp.eq.s32.totalorder %s21, 1
      %p81 = por %p79, %p80
      %p82 = scmp.ne.s32.totalorder %s73, %s74
      %p83 = scmp.eq.s32.totalorder %s21, 0
      %p84 = por %p82, %p83
      %p85 = scmp.ne.s32.totalorder %s73, %s74
      %p86 = scmp.eq.s32.totalorder %s22, 1
      %p87 = por %p85, %p86
      %p89 = scmp.ne.s32.totalorder %s74, %s88
      %p90 = scmp.eq.s32.totalorder %s22, 0
      %p91 = por %p89, %p90
      %s93 = sadd.s32 %s92, 1
      %p96 = scmp.eq.s32.totalorder %s16, 1
      %p97 = scmp.ne.s32.totalorder %s92, %s94
      %p98 = scmp.eq.s32.totalorder %s16, 0
      %p99 = por %p97, %p98
      %p100 = scmp.ne.s32.totalorder %s92, %s94
      %p101 = scmp.eq.s32.totalorder %s21, 1
      %p102 = por %p100, %p101
      %p103 = scmp.ne.s32.totalorder %s94, %s95
      %p104 = scmp.eq.s32.totalorder %s21, 0
      %p105 = por %p103, %p104
      %p106 = scmp.ne.s32.totalorder %s94, %s95
      %p107 = scmp.eq.s32.totalorder %s22, 1
      %p108 = por %p106, %p107
      %p110 = scmp.ne.s32.totalorder %s95, %s109
      %p111 = scmp.eq.s32.totalorder %s22, 0
      %p112 = por %p110, %p111
      %s114 = sadd.s32 %s113, 1
      %p117 = scmp.eq.s32.totalorder %s16, 1
      %p118 = scmp.ne.s32.totalorder %s113, %s115
      %p119 = scmp.eq.s32.totalorder %s16, 0
      %p120 = por %p118, %p119
      %p121 = scmp.ne.s32.totalorder %s113, %s115
      %p122 = scmp.eq.s32.totalorder %s21, 1
      %p123 = por %p121, %p122
      %p124 = scmp.ne.s32.totalorder %s115, %s116
      %p125 = scmp.eq.s32.totalorder %s21, 0
      %p126 = por %p124, %p125
      %p127 = scmp.ne.s32.totalorder %s115, %s116
      %p128 = scmp.eq.s32.totalorder %s22, 1
      %p129 = por %p127, %p128
      %p131 = scmp.ne.s32.totalorder %s116, %s130
      %p132 = scmp.eq.s32.totalorder %s22, 0
      %p133 = por %p131, %p132
      %s135 = sadd.s32 %s134, 1
      %p138 = scmp.eq.s32.totalorder %s16, 1
      %p139 = scmp.ne.s32.totalorder %s134, %s136
      %p140 = scmp.eq.s32.totalorder %s16, 0
      %p141 = por %p139, %p140
      %p142 = scmp.ne.s32.totalorder %s134, %s136
      %p143 = scmp.eq.s32.totalorder %s21, 1
      %p144 = por %p142, %p143
      %p145 = scmp.ne.s32.totalorder %s136, %s137
      %p146 = scmp.eq.s32.totalorder %s21, 0
      %p147 = por %p145, %p146
      %p148 = scmp.ne.s32.totalorder %s136, %s137
      %p149 = scmp.eq.s32.totalorder %s22, 1
      %p150 = por %p148, %p149
      %p152 = scmp.ne.s32.totalorder %s137, %s151
      %p153 = scmp.eq.s32.totalorder %s22, 0
      %p154 = por %p152, %p153
      %s156 = sadd.s32 %s155, 1
      %p159 = scmp.eq.s32.totalorder %s16, 1
      %p160 = scmp.ne.s32.totalorder %s155, %s157
      %p161 = scmp.eq.s32.totalorder %s16, 0
      %p162 = por %p160, %p161
      %p163 = scmp.ne.s32.totalorder %s155, %s157
      %p164 = scmp.eq.s32.totalorder %s21, 1
      %p165 = por %p163, %p164
      %p166 = scmp.ne.s32.totalorder %s157, %s158
      %p167 = scmp.eq.s32.totalorder %s21, 0
      %p168 = por %p166, %p167
      %p169 = scmp.ne.s32.totalorder %s157, %s158
      %p170 = scmp.eq.s32.totalorder %s22, 1
      %p171 = por %p169, %p170
      %p173 = scmp.ne.s32.totalorder %s158, %s172
      %p174 = scmp.eq.s32.totalorder %s22, 0
      %p175 = por %p173, %p174
      %s176 = ssub.s32 %s16, %s23
      %p177 = scmp.eq.s32.totalorder %s176, 0
      %s179 = sadd.s32 %s178, 1
      %s180 = scalar_select %p177, %s178, %s179
      %p183 = pneg %p177
      %p184 = scmp.eq.s32.totalorder %s16, 1
      %p185 = por %p183, %p184
      %p186 = scmp.ne.s32.totalorder %s178, %s181
      %p187 = scmp.eq.s32.totalorder %s16, 0
      %p188 = por %p186, %p187
      %p189 = scmp.ne.s32.totalorder %s178, %s181
      %p190 = scmp.eq.s32.totalorder %s21, 1
      %p191 = por %p189, %p190
      %p192 = scmp.ne.s32.totalorder %s181, %s182
      %p193 = scmp.eq.s32.totalorder %s21, 0
      %p194 = por %p192, %p193
      %p195 = scmp.ne.s32.totalorder %s181, %s182
      %p196 = scmp.eq.s32.totalorder %s22, 1
      %p197 = por %p195, %p196
      %p199 = scmp.ne.s32.totalorder %s182, %s198
      %p200 = scmp.eq.s32.totalorder %s22, 0
      %p201 = por %p199, %p200
      %p202 = scmp.le.s32.totalorder 1, %s16
      %p203 = scmp.lt.s32.totalorder %s16, 3
      %p204 = pnand %p202, %p203
      %p205 = pneg %p204
      // Predicated region
      $region9: #{mivolo_forward.3} parent=5 // pred_check
        _
      $region10: #{mivolo_forward.3} parent=5 // pred_check_branch
        %207 = sbr.rel (%p204) target = $region12
      $region11: #{mivolo_forward.3} parent=5 // pred_region
        %s208 = ssub.s32 %s16, 1
        // Predicated region
        $region13: #{mivolo_forward.3} parent=11 // pred_check
          %p209 = pneg %p63
        $region14: #{mivolo_forward.3} parent=11 // pred_check_branch
          %211 = sbr.rel (%p209) target = $region16
        $region15: #{mivolo_forward.3} parent=11 // pred_region
          _
        $region16: #{mivolo_forward.3} parent=11 // pred_fallthru
          _
        // Predicated region
        $region17: #{mivolo_forward.3} parent=11 // pred_check
          %p212 = pneg %p84
        $region18: #{mivolo_forward.3} parent=11 // pred_check_branch
          %214 = sbr.rel (%p212) target = $region20
        $region19: #{mivolo_forward.3} parent=11 // pred_region
          _
        $region20: #{mivolo_forward.3} parent=11 // pred_fallthru
          _
        // Predicated region
        $region21: #{mivolo_forward.3} parent=11 // pred_check
          %p215 = pneg %p105
        $region22: #{mivolo_forward.3} parent=11 // pred_check_branch
          %217 = sbr.rel (%p215) target = $region24
        $region23: #{mivolo_forward.3} parent=11 // pred_region
          _
        $region24: #{mivolo_forward.3} parent=11 // pred_fallthru
          _
        // Predicated region
        $region25: #{mivolo_forward.3} parent=11 // pred_check
          %p218 = pneg %p126
        $region26: #{mivolo_forward.3} parent=11 // pred_check_branch
          %220 = sbr.rel (%p218) target = $region28
        $region27: #{mivolo_forward.3} parent=11 // pred_region
          _
        $region28: #{mivolo_forward.3} parent=11 // pred_fallthru
          _
        // Predicated region
        $region29: #{mivolo_forward.3} parent=11 // pred_check
          %p221 = pneg %p147
        $region30: #{mivolo_forward.3} parent=11 // pred_check_branch
          %223 = sbr.rel (%p221) target = $region32
        $region31: #{mivolo_forward.3} parent=11 // pred_region
          _
        $region32: #{mivolo_forward.3} parent=11 // pred_fallthru
          _
        // Predicated region
        $region33: #{mivolo_forward.3} parent=11 // pred_check
          %p224 = pneg %p168
        $region34: #{mivolo_forward.3} parent=11 // pred_check_branch
          %226 = sbr.rel (%p224) target = $region36
        $region35: #{mivolo_forward.3} parent=11 // pred_region
          _
        $region36: #{mivolo_forward.3} parent=11 // pred_fallthru
          _
      $region12: #{mivolo_forward.3} parent=5 // pred_fallthru
        _
      %p227 = scmp.lt.s32.totalorder %s16, 2
      // Predicated region
      $region37: #{mivolo_forward.3} parent=5 // pred_check
        %p228 = pneg %p227
      $region38: #{mivolo_forward.3} parent=5 // pred_check_branch
        %230 = sbr.rel (%p228) target = $region40
      $region39: #{mivolo_forward.3} parent=5 // pred_region
        // Predicated region
        $region41: #{mivolo_forward.3} parent=39 // pred_check
          %p231 = pneg %p36
        $region42: #{mivolo_forward.3} parent=39 // pred_check_branch
          %233 = sbr.rel (%p231) target = $region44
        $region43: #{mivolo_forward.3} parent=39 // pred_region
          %p234 = scmp.lt.s32.totalorder %s16, 1
          %s235 = scalar_select %p234, %s16, 1
          %s236 = smul.addr %s235, 196
          %s237 = smul.addr %s236, 8
          %s238 = scalar_lea.vmem %s0, %s237
        $region44: #{mivolo_forward.3} parent=39 // pred_fallthru
          _
      $region40: #{mivolo_forward.3} parent=5 // pred_fallthru
        _
      %p239 = scmp.le.s32.totalorder 1, %s16
      %p240 = scmp.lt.s32.totalorder %s16, 3
      %p241 = pnand %p239, %p240
      %p242 = pneg %p241
      // Predicated region
      $region45: #{mivolo_forward.3} parent=5 // pred_check
        _
      $region46: #{mivolo_forward.3} parent=5 // pred_check_branch
        %244 = sbr.rel (%p241) target = $region48
      $region47: #{mivolo_forward.3} parent=5 // pred_region
        %s245 = ssub.s32 %s16, 1
        %p246 = scmp.lt.s32.totalorder %s21, 1
        %s247 = scalar_select %p246, %s21, 1
        %s248 = smul.addr %s247, 196
        %s249 = smul.addr %s248, 8
        %s250 = scalar_lea.vmem %s0, %s249
        %p251 = pneg %p42
        %p252 = pneg %p39
        %p253 = pneg %p63
        %p254 = pneg %p60
        %p255 = pneg %p84
        %p256 = pneg %p81
        %p257 = pneg %p105
        %p258 = pneg %p102
        %p259 = pneg %p126
        %p260 = pneg %p123
        %p261 = pneg %p147
        %p262 = pneg %p144
        %p263 = pneg %p168
        %p264 = pneg %p165
        %p265 = pneg %p194
        %p266 = pneg %p191
        %s267 = sand.u32 %s181, 1
        %s268 = scalar_lea.sflag [#allocation4], %s267
        %s269 = sand.u32 %s181, 1
        %s270 = scalar_lea.vmem [#allocation3], %s269
        %p271 = scmp.lt.s32.totalorder %s21, 1
        %s272 = scalar_select %p271, %s21, 1
        %s273 = smul.addr %s272, 196
        %s274 = smul.addr %s273, 8
        %s275 = scalar_lea.vmem %s0, %s274
        %v276 = vld [vmem:[%s275] sm:$0xff]
        %v277 = vld [vmem:[%s275 + $0x8] sm:$0xff]
        %v278 = vld [vmem:[%s275 + $0x10] sm:$0xff]
        %v279 = vld [vmem:[%s275 + $0x18] sm:$0xff]
        %v280 = vld [vmem:[%s275 + $0x20] sm:$0xff]
        %v281 = vld [vmem:[%s275 + $0x28] sm:$0xff]
        %v282 = vld [vmem:[%s275 + $0x30] sm:$0xff]
        %v283 = vld [vmem:[%s275 + $0x38] sm:$0xff]
        %v284 = vld [vmem:[%s275 + $0x40] sm:$0xff]
        %v285 = vld [vmem:[%s275 + $0x48] sm:$0xff]
        %v286 = vld [vmem:[%s275 + $0x50] sm:$0xff]
        %v287 = vld [vmem:[%s275 + $0x58] sm:$0xff]
        %v288 = vld [vmem:[%s275 + $0x60] sm:$0xff]
        %v289 = vld [vmem:[%s275 + $0x68] sm:$0xff]
        %v290 = vld [vmem:[%s275 + $0x70] sm:$0xff]
        %v291 = vld [vmem:[%s275 + $0x78] sm:$0xff]
        %v292 = vld [vmem:[%s275 + $0x80] sm:$0xff]
        %v293 = vld [vmem:[%s275 + $0x88] sm:$0xff]
        %v294 = vld [vmem:[%s275 + $0x90] sm:$0xff]
        %v295 = vld [vmem:[%s275 + $0x98] sm:$0xff]
        %v296 = vld [vmem:[%s275 + $0xa0] sm:$0xff]
        %v297 = vld [vmem:[%s275 + $0xa8] sm:$0xff]
        %v298 = vld [vmem:[%s275 + $0xb0] sm:$0xff]
        %v299 = vld [vmem:[%s275 + $0xb8] sm:$0xff]
        %v300 = vld [vmem:[%s275 + $0xc0] sm:$0xff]
        %v301 = vld [vmem:[%s275 + $0xc8] sm:$0xff]
        %v302 = vld [vmem:[%s275 + $0xd0] sm:$0xff]
        %v303 = vld [vmem:[%s275 + $0xd8] sm:$0xff]
        %v304 = vld [vmem:[%s275 + $0xe0] sm:$0xff]
        %v305 = vld [vmem:[%s275 + $0xe8] sm:$0xff]
        %v306 = vld [vmem:[%s275 + $0xf0] sm:$0xff]
        %v307 = vld [vmem:[%s275 + $0xf8] sm:$0xff]
        %v308 = vld [vmem:[%s275 + $0x100] sm:$0xff]
        %v309 = vld [vmem:[%s275 + $0x108] sm:$0xff]
        %v310 = vld [vmem:[%s275 + $0x110] sm:$0xff]
        %v311 = vld [vmem:[%s275 + $0x118] sm:$0xff]
        %v312 = vld [vmem:[%s275 + $0x120] sm:$0xff]
        %v313 = vld [vmem:[%s275 + $0x128] sm:$0xff]
        %v314 = vld [vmem:[%s275 + $0x130] sm:$0xff]
        %v315 = vld [vmem:[%s275 + $0x138] sm:$0xff]
        %v316 = vld [vmem:[%s275 + $0x140] sm:$0xff]
        %v317 = vld [vmem:[%s275 + $0x148] sm:$0xff]
        %v318 = vld [vmem:[%s275 + $0x150] sm:$0xff]
        %v319 = vld [vmem:[%s275 + $0x158] sm:$0xff]
        %v320 = vld [vmem:[%s275 + $0x160] sm:$0xff]
        %v321 = vld [vmem:[%s275 + $0x168] sm:$0xff]
        %v322 = vld [vmem:[%s275 + $0x170] sm:$0xff]
        %v323 = vld [vmem:[%s275 + $0x178] sm:$0xff]
        %v324 = vld [vmem:[%s275 + $0x180] sm:$0xff]
        %v325 = vld [vmem:[%s275 + $0x188] sm:$0xff]
        %v326 = vld [vmem:[%s275 + $0x190] sm:$0xff]
        %v327 = vld [vmem:[%s275 + $0x198] sm:$0xff]
        %v328 = vld [vmem:[%s275 + $0x1a0] sm:$0xff]
        %v329 = vld [vmem:[%s275 + $0x1a8] sm:$0xff]
        %v330 = vld [vmem:[%s275 + $0x1b0] sm:$0xff]
        %v331 = vld [vmem:[%s275 + $0x1b8] sm:$0xff]
        %v332 = vld [vmem:[%s275 + $0x1c0] sm:$0xff]
        %v333 = vld [vmem:[%s275 + $0x1c8] sm:$0xff]
        %v334 = vld [vmem:[%s275 + $0x1d0] sm:$0xff]
        %v335 = vld [vmem:[%s275 + $0x1d8] sm:$0xff]
        %v336 = vld [vmem:[%s275 + $0x1e0] sm:$0xff]
        %v337 = vld [vmem:[%s275 + $0x1e8] sm:$0xff]
        %v338 = vld [vmem:[%s275 + $0x1f0] sm:$0xff]
        %v339 = vld [vmem:[%s275 + $0x1f8] sm:$0xff]
        %v340 = vld [vmem:[%s275 + $0x200] sm:$0xff]
        %v341 = vld [vmem:[%s275 + $0x208] sm:$0xff]
        %v342 = vld [vmem:[%s275 + $0x210] sm:$0xff]
        %v343 = vld [vmem:[%s275 + $0x218] sm:$0xff]
        %v344 = vld [vmem:[%s275 + $0x220] sm:$0xff]
        %v345 = vld [vmem:[%s275 + $0x228] sm:$0xff]
        %v346 = vld [vmem:[%s275 + $0x230] sm:$0xff]
        %v347 = vld [vmem:[%s275 + $0x238] sm:$0xff]
        %v348 = vld [vmem:[%s275 + $0x240] sm:$0xff]
        %v349 = vld [vmem:[%s275 + $0x248] sm:$0xff]
        %v350 = vld [vmem:[%s275 + $0x250] sm:$0xff]
        %v351 = vld [vmem:[%s275 + $0x258] sm:$0xff]
        %v352 = vld [vmem:[%s275 + $0x260] sm:$0xff]
        %v353 = vld [vmem:[%s275 + $0x268] sm:$0xff]
        %v354 = vld [vmem:[%s275 + $0x270] sm:$0xff]
        %v355 = vld [vmem:[%s275 + $0x278] sm:$0xff]
        %v356 = vld [vmem:[%s275 + $0x280] sm:$0xff]
        %v357 = vld [vmem:[%s275 + $0x288] sm:$0xff]
        %v358 = vld [vmem:[%s275 + $0x290] sm:$0xff]
        %v359 = vld [vmem:[%s275 + $0x298] sm:$0xff]
        %v360 = vld [vmem:[%s275 + $0x2a0] sm:$0xff]
        %v361 = vld [vmem:[%s275 + $0x2a8] sm:$0xff]
        %v362 = vld [vmem:[%s275 + $0x2b0] sm:$0xff]
        %v363 = vld [vmem:[%s275 + $0x2b8] sm:$0xff]
        %v364 = vld [vmem:[%s275 + $0x2c0] sm:$0xff]
        %v365 = vld [vmem:[%s275 + $0x2c8] sm:$0xff]
        %v366 = vld [vmem:[%s275 + $0x2d0] sm:$0xff]
        %v367 = vld [vmem:[%s275 + $0x2d8] sm:$0xff]
        %v368 = vld [vmem:[%s275 + $0x2e0] sm:$0xff]
        %v369 = vld [vmem:[%s275 + $0x2e8] sm:$0xff]
        %v370 = vld [vmem:[%s275 + $0x2f0] sm:$0xff]
        %v371 = vld [vmem:[%s275 + $0x2f8] sm:$0xff]
        %v372 = vld [vmem:[%s275 + $0x300] sm:$0xff]
        %v373 = vld [vmem:[%s275 + $0x308] sm:$0xff]
        %v374 = vld [vmem:[%s275 + $0x310] sm:$0xff]
        %v375 = vld [vmem:[%s275 + $0x318] sm:$0xff]
        %v376 = vld [vmem:[%s275 + $0x320] sm:$0xff]
        %v377 = vld [vmem:[%s275 + $0x328] sm:$0xff]
        %v378 = vld [vmem:[%s275 + $0x330] sm:$0xff]
        %v379 = vld [vmem:[%s275 + $0x338] sm:$0xff]
        %v380 = vld [vmem:[%s275 + $0x340] sm:$0xff]
        %v381 = vld [vmem:[%s275 + $0x348] sm:$0xff]
        %v382 = vld [vmem:[%s275 + $0x350] sm:$0xff]
        %v383 = vld [vmem:[%s275 + $0x358] sm:$0xff]
        %v384 = vld [vmem:[%s275 + $0x360] sm:$0xff]
        %v385 = vld [vmem:[%s275 + $0x368] sm:$0xff]
        %v386 = vld [vmem:[%s275 + $0x370] sm:$0xff]
        %v387 = vld [vmem:[%s275 + $0x378] sm:$0xff]
        %v388 = vld [vmem:[%s275 + $0x380] sm:$0xff]
        %v389 = vld [vmem:[%s275 + $0x388] sm:$0xff]
        %v390 = vld [vmem:[%s275 + $0x390] sm:$0xff]
        %v391 = vld [vmem:[%s275 + $0x398] sm:$0xff]
        %v392 = vld [vmem:[%s275 + $0x3a0] sm:$0xff]
        %v393 = vld [vmem:[%s275 + $0x3a8] sm:$0xff]
        %v394 = vld [vmem:[%s275 + $0x3b0] sm:$0xff]
        %v395 = vld [vmem:[%s275 + $0x3b8] sm:$0xff]
        %v396 = vld [vmem:[%s275 + $0x3c0] sm:$0xff]
        %v397 = vld [vmem:[%s275 + $0x3c8] sm:$0xff]
        %v398 = vld [vmem:[%s275 + $0x3d0] sm:$0xff]
        %v399 = vld [vmem:[%s275 + $0x3d8] sm:$0xff]
        %v400 = vld [vmem:[%s275 + $0x3e0] sm:$0xff]
        %v401 = vld [vmem:[%s275 + $0x3e8] sm:$0xff]
        %v402 = vld [vmem:[%s275 + $0x3f0] sm:$0xff]
        %v403 = vld [vmem:[%s275 + $0x3f8] sm:$0xff]
        %v404 = vld [vmem:[%s275 + $0x400] sm:$0xff]
        %v405 = vld [vmem:[%s275 + $0x408] sm:$0xff]
        %v406 = vld [vmem:[%s275 + $0x410] sm:$0xff]
        %v407 = vld [vmem:[%s275 + $0x418] sm:$0xff]
        %v408 = vld [vmem:[%s275 + $0x420] sm:$0xff]
        %v409 = vld [vmem:[%s275 + $0x428] sm:$0xff]
        %v410 = vld [vmem:[%s275 + $0x430] sm:$0xff]
        %v411 = vld [vmem:[%s275 + $0x438] sm:$0xff]
        %v412 = vld [vmem:[%s275 + $0x440] sm:$0xff]
        %v413 = vld [vmem:[%s275 + $0x448] sm:$0xff]
        %v414 = vld [vmem:[%s275 + $0x450] sm:$0xff]
        %v415 = vld [vmem:[%s275 + $0x458] sm:$0xff]
        %v416 = vld [vmem:[%s275 + $0x460] sm:$0xff]
        %v417 = vld [vmem:[%s275 + $0x468] sm:$0xff]
        %v418 = vld [vmem:[%s275 + $0x470] sm:$0xff]
        %v419 = vld [vmem:[%s275 + $0x478] sm:$0xff]
        %v420 = vld [vmem:[%s275 + $0x480] sm:$0xff]
        %v421 = vld [vmem:[%s275 + $0x488] sm:$0xff]
        %v422 = vld [vmem:[%s275 + $0x490] sm:$0xff]
        %v423 = vld [vmem:[%s275 + $0x498] sm:$0xff]
        %v424 = vld [vmem:[%s275 + $0x4a0] sm:$0xff]
        %v425 = vld [vmem:[%s275 + $0x4a8] sm:$0xff]
        %v426 = vld [vmem:[%s275 + $0x4b0] sm:$0xff]
        %v427 = vld [vmem:[%s275 + $0x4b8] sm:$0xff]
        %v428 = vld [vmem:[%s275 + $0x4c0] sm:$0xff]
        %v429 = vld [vmem:[%s275 + $0x4c8] sm:$0xff]
        %v430 = vld [vmem:[%s275 + $0x4d0] sm:$0xff]
        %v431 = vld [vmem:[%s275 + $0x4d8] sm:$0xff]
        %v432 = vld [vmem:[%s275 + $0x4e0] sm:$0xff]
        %v433 = vld [vmem:[%s275 + $0x4e8] sm:$0xff]
        %v434 = vld [vmem:[%s275 + $0x4f0] sm:$0xff]
        %v435 = vld [vmem:[%s275 + $0x4f8] sm:$0xff]
        %v436 = vld [vmem:[%s275 + $0x500] sm:$0xff]
        %v437 = vld [vmem:[%s275 + $0x508] sm:$0xff]
        %v438 = vld [vmem:[%s275 + $0x510] sm:$0xff]
        %v439 = vld [vmem:[%s275 + $0x518] sm:$0xff]
        %v440 = vld [vmem:[%s275 + $0x520] sm:$0xff]
        %v441 = vld [vmem:[%s275 + $0x528] sm:$0xff]
        %v442 = vld [vmem:[%s275 + $0x530] sm:$0xff]
        %v443 = vld [vmem:[%s275 + $0x538] sm:$0xff]
        %v444 = vld [vmem:[%s275 + $0x540] sm:$0xff]
        %v445 = vld [vmem:[%s275 + $0x548] sm:$0xff]
        %v446 = vld [vmem:[%s275 + $0x550] sm:$0xff]
        %v447 = vld [vmem:[%s275 + $0x558] sm:$0xff]
        %v448 = vld [vmem:[%s275 + $0x560] sm:$0xff]
        %v449 = vld [vmem:[%s275 + $0x568] sm:$0xff]
        %v450 = vld [vmem:[%s275 + $0x570] sm:$0xff]
        %v451 = vld [vmem:[%s275 + $0x578] sm:$0xff]
        %v452 = vld [vmem:[%s275 + $0x580] sm:$0xff]
        %v453 = vld [vmem:[%s275 + $0x588] sm:$0xff]
        %v454 = vld [vmem:[%s275 + $0x590] sm:$0xff]
        %v455 = vld [vmem:[%s275 + $0x598] sm:$0xff]
        %v456 = vld [vmem:[%s275 + $0x5a0] sm:$0xff]
        %v457 = vld [vmem:[%s275 + $0x5a8] sm:$0xff]
        %v458 = vld [vmem:[%s275 + $0x5b0] sm:$0xff]
        %v459 = vld [vmem:[%s275 + $0x5b8] sm:$0xff]
        %v460 = vld [vmem:[%s275 + $0x5c0] sm:$0xff]
        %v461 = vld [vmem:[%s275 + $0x5c8] sm:$0xff]
        %v462 = vld [vmem:[%s275 + $0x5d0] sm:$0xff]
        %v463 = vld [vmem:[%s275 + $0x5d8] sm:$0xff]
        %v464 = vld [vmem:[%s275 + $0x5e0] sm:$0xff]
        %v465 = vld [vmem:[%s275 + $0x5e8] sm:$0xff]
        %v466 = vld [vmem:[%s275 + $0x5f0] sm:$0xff]
        %v467 = vld [vmem:[%s275 + $0x5f8] sm:$0xff]
        %v468 = vld [vmem:[%s275 + $0x600] sm:$0xff]
        %v469 = vld [vmem:[%s275 + $0x608] sm:$0xff]
        %v470 = vld [vmem:[%s275 + $0x610] sm:$0xff]
        %v471 = vld [vmem:[%s275 + $0x618] sm:$0xff]
        %v472 = vld [vmem:[%s1] sm:$0xff]
        %v473 = vld [vmem:[%s1 + $0x8] sm:$0xff]
        %v474 = vld [vmem:[%s1 + $0x10] sm:$0xff]
        %v475 = vld [vmem:[%s1 + $0x18] sm:$0xff]
        %v476 = vld [vmem:[%s1 + $0x20] sm:$0xff]
        %v477 = vld [vmem:[%s1 + $0x28] sm:$0xff]
        %v478 = vld [vmem:[%s1 + $0x30] sm:$0xff]
        %v479 = vld [vmem:[%s1 + $0x38] sm:$0xff]
        %v480 = vld [vmem:[%s1 + $0x40] sm:$0xff]
        %v481 = vld [vmem:[%s1 + $0x48] sm:$0xff]
        %v482 = vld [vmem:[%s1 + $0x50] sm:$0xff]
        %v483 = vld [vmem:[%s1 + $0x58] sm:$0xff]
        %v484 = vld [vmem:[%s1 + $0x60] sm:$0xff]
        %v485 = vld [vmem:[%s1 + $0x68] sm:$0xff]
        %v486 = vld [vmem:[%s1 + $0x70] sm:$0xff]
        %v487 = vld [vmem:[%s1 + $0x78] sm:$0xff]
        %v488 = vld [vmem:[%s1 + $0x80] sm:$0xff]
        %v489 = vld [vmem:[%s1 + $0x88] sm:$0xff]
        %v490 = vld [vmem:[%s1 + $0x90] sm:$0xff]
        %v491 = vld [vmem:[%s1 + $0x98] sm:$0xff]
        %v492 = vld [vmem:[%s1 + $0xa0] sm:$0xff]
        %v493 = vld [vmem:[%s1 + $0xa8] sm:$0xff]
        %v494 = vld [vmem:[%s1 + $0xb0] sm:$0xff]
        %v495 = vld [vmem:[%s1 + $0xb8] sm:$0xff]
        %v496 = vld [vmem:[%s2] sm:$0x1]
        %v498 = vlaneseq
        %v499 = vshrl.u32 %v498, 7
        %v500 = vsub.s32 0, %v499
        %v501 = vrot.slane %v496, %v500
        %vm503 = vcmask 523264
        %v505 = vsel %vm503, %v277, 0
        %v508 = vsel %vm503, %v279, 0
        %v511 = vsel %vm503, %v281, 0
        %v514 = vsel %vm503, %v283, 0
        %v517 = vsel %vm503, %v285, 0
        %v520 = vsel %vm503, %v287, 0
        %v523 = vsel %vm503, %v289, 0
        %v526 = vsel %vm503, %v291, 0
        %v529 = vsel %vm503, %v293, 0
        %v532 = vsel %vm503, %v295, 0
        %v535 = vsel %vm503, %v297, 0
        %v538 = vsel %vm503, %v299, 0
        %v541 = vsel %vm503, %v301, 0
        %v544 = vsel %vm503, %v303, 0
        %v547 = vsel %vm503, %v305, 0
        %v550 = vsel %vm503, %v307, 0
        %v553 = vsel %vm503, %v309, 0
        %v556 = vsel %vm503, %v311, 0
        %v559 = vsel %vm503, %v313, 0
        %v562 = vsel %vm503, %v315, 0
        %v565 = vsel %vm503, %v317, 0
        %v568 = vsel %vm503, %v319, 0
        %v571 = vsel %vm503, %v321, 0
        %v574 = vsel %vm503, %v323, 0
        %v577 = vsel %vm503, %v325, 0
        %v580 = vsel %vm503, %v327, 0
        %v583 = vsel %vm503, %v329, 0
        %v586 = vsel %vm503, %v331, 0
        %v589 = vsel %vm503, %v333, 0
        %v592 = vsel %vm503, %v335, 0
        %v595 = vsel %vm503, %v337, 0
        %v598 = vsel %vm503, %v339, 0
        %v601 = vsel %vm503, %v341, 0
        %v604 = vsel %vm503, %v343, 0
        %v607 = vsel %vm503, %v345, 0
        %v610 = vsel %vm503, %v347, 0
        %v613 = vsel %vm503, %v349, 0
        %v616 = vsel %vm503, %v351, 0
        %v619 = vsel %vm503, %v353, 0
        %v622 = vsel %vm503, %v355, 0
        %v625 = vsel %vm503, %v357, 0
        %v628 = vsel %vm503, %v359, 0
        %v631 = vsel %vm503, %v361, 0
        %v634 = vsel %vm503, %v363, 0
        %v637 = vsel %vm503, %v365, 0
        %v640 = vsel %vm503, %v367, 0
        %v643 = vsel %vm503, %v369, 0
        %v646 = vsel %vm503, %v371, 0
        %v649 = vsel %vm503, %v373, 0
        %v652 = vsel %vm503, %v375, 0
        %v655 = vsel %vm503, %v377, 0
        %v658 = vsel %vm503, %v379, 0
        %v661 = vsel %vm503, %v381, 0
        %v664 = vsel %vm503, %v383, 0
        %v667 = vsel %vm503, %v385, 0
        %v670 = vsel %vm503, %v387, 0
        %v673 = vsel %vm503, %v389, 0
        %v676 = vsel %vm503, %v391, 0
        %v679 = vsel %vm503, %v393, 0
        %v682 = vsel %vm503, %v395, 0
        %v685 = vsel %vm503, %v397, 0
        %v688 = vsel %vm503, %v399, 0
        %v691 = vsel %vm503, %v401, 0
        %v694 = vsel %vm503, %v403, 0
        %v697 = vsel %vm503, %v405, 0
        %v700 = vsel %vm503, %v407, 0
        %v703 = vsel %vm503, %v409, 0
        %v706 = vsel %vm503, %v411, 0
        %v709 = vsel %vm503, %v413, 0
        %v712 = vsel %vm503, %v415, 0
        %v715 = vsel %vm503, %v417, 0
        %v718 = vsel %vm503, %v419, 0
        %v721 = vsel %vm503, %v421, 0
        %v724 = vsel %vm503, %v423, 0
        %v727 = vsel %vm503, %v425, 0
        %v730 = vsel %vm503, %v427, 0
        %v733 = vsel %vm503, %v429, 0
        %v736 = vsel %vm503, %v431, 0
        %v739 = vsel %vm503, %v433, 0
        %v742 = vsel %vm503, %v435, 0
        %v745 = vsel %vm503, %v437, 0
        %v748 = vsel %vm503, %v439, 0
        %v751 = vsel %vm503, %v441, 0
        %v754 = vsel %vm503, %v443, 0
        %v757 = vsel %vm503, %v445, 0
        %v760 = vsel %vm503, %v447, 0
        %v763 = vsel %vm503, %v449, 0
        %v766 = vsel %vm503, %v451, 0
        %v769 = vsel %vm503, %v453, 0
        %v772 = vsel %vm503, %v455, 0
        %v775 = vsel %vm503, %v457, 0
        %v778 = vsel %vm503, %v459, 0
        %v781 = vsel %vm503, %v461, 0
        %v784 = vsel %vm503, %v463, 0
        %v787 = vsel %vm503, %v465, 0
        %v790 = vsel %vm503, %v467, 0
        %v793 = vsel %vm503, %v469, 0
        %v796 = vsel %vm503, %v471, 0
        %798 = vmatprep.subr.mxu0 0.0
        %799 = vmatpush1.msra.mxu0 %v472
        %800 = vmatprep.subr.mxu0 0.0
        %801 = vmatpush1.msra.mxu0 %v473
        %802 = vmatprep.subr.mxu0 0.0
        %803 = vmatpush1.msra.mxu0 %v474
        %804 = vmatprep.subr.mxu0 0.0
        %805 = vmatpush1.msra.mxu0 %v475
        %806 = vmatprep.subr.mxu0 0.0
        %807 = vmatpush1.msra.mxu0 %v476
        %808 = vmatprep.subr.mxu0 0.0
        %809 = vmatpush1.msra.mxu0 %v477
        %810 = vmatprep.subr.mxu0 0.0
        %811 = vmatpush1.msra.mxu0 %v478
        %812 = vmatprep.subr.mxu0 0.0
        %813 = vmatpush1.msra.mxu0 %v479
        %814 = vmatprep.subr.mxu0 0.0
        %815 = vmatpush1.msra.mxu0 %v480
        %816 = vmatprep.subr.mxu0 0.0
        %817 = vmatpush1.msra.mxu0 %v481
        %818 = vmatprep.subr.mxu0 0.0
        %819 = vmatpush1.msra.mxu0 %v482
        %820 = vmatprep.subr.mxu0 0.0
        %821 = vmatpush1.msra.mxu0 %v483
        %822 = vmatprep.subr.mxu0 0.0
        %823 = vmatpush1.msra.mxu0 %v484
        %824 = vmatprep.subr.mxu0 0.0
        %825 = vmatpush1.msra.mxu0 %v485
        %826 = vmatprep.subr.mxu0 0.0
        %827 = vmatpush1.msra.mxu0 %v486
        %828 = vmatprep.subr.mxu0 0.0
        %829 = vmatpush1.msra.mxu0 %v487
        %830 = vmatprep.subr.mxu0 0.0
        %831 = vmatpush1.msra.mxu0 %v488
        %832 = vmatprep.subr.mxu0 0.0
        %833 = vmatpush1.msra.mxu0 %v489
        %834 = vmatprep.subr.mxu0 0.0
        %835 = vmatpush1.msra.mxu0 %v490
        %836 = vmatprep.subr.mxu0 0.0
        %837 = vmatpush1.msra.mxu0 %v491
        %838 = vmatprep.subr.mxu0 0.0
        %839 = vmatpush1.msra.mxu0 %v492
        %840 = vmatprep.subr.mxu0 0.0
        %841 = vmatpush1.msra.mxu0 %v493
        %842 = vmatprep.subr.mxu0 0.0
        %843 = vmatpush1.msra.mxu0 %v494
        %844 = vmatprep.subr.mxu0 0.0
        %845 = vmatpush1.msra.mxu0 %v495
        %846 = vmatprep.subr.mxu0 0.0
        %847 = vmatpush1.msra.mxu0 0.0
        %848 = vmatprep.subr.mxu0 0.0
        %849 = vmatpush1.msra.mxu0 0.0
        %850 = vmatprep.subr.mxu0 0.0
        %851 = vmatpush1.msra.mxu0 0.0
        %852 = vmatprep.subr.mxu0 0.0
        %853 = vmatpush1.msra.mxu0 0.0
        %854 = vmatprep.subr.mxu0 0.0
        %855 = vmatpush1.msra.mxu0 0.0
        %856 = vmatprep.subr.mxu0 0.0
        %857 = vmatpush1.msra.mxu0 0.0
        %858 = vmatprep.subr.mxu0 0.0
        %859 = vmatpush1.msra.mxu0 0.0
        %860 = vmatprep.subr.mxu0 0.0
        %861 = vmatpush1.msra.mxu0 0.0
        %862 = vmatprep.mubr.f32.mxu0 %v505
        %863 = vmatmul.mubr.f32.gmra.mrb[0].mxu0 %v276
        %v864 = vpop.f32.mrb[0].mxu0
        %v865 = vadd.f32 %v501, %v864
        %v866 = vpop.f32.mrb[0].mxu0
        %867 = vmatprep.mubr.f32.mxu0 %v508
        %868 = vmatmul.mubr.f32.gmra.mrb[0].mxu0 %v278
        %v869 = vpop.f32.mrb[0].mxu0
        %v870 = vadd.f32 %v501, %v869
        %v871 = vpop.f32.mrb[0].mxu0
        %872 = vmatprep.mubr.f32.mxu0 %v511
        %873 = vmatmul.mubr.f32.gmra.mrb[0].mxu0 %v280
        %v874 = vpop.f32.mrb[0].mxu0
        %v875 = vadd.f32 %v501, %v874
        %v876 = vpop.f32.mrb[0].mxu0
        %877 = vmatprep.mubr.f32.mxu0 %v514
        %878 = vmatmul.mubr.f32.gmra.mrb[0].mxu0 %v282
        %v879 = vpop.f32.mrb[0].mxu0
        %v880 = vadd.f32 %v501, %v879
        %v881 = vpop.f32.mrb[0].mxu0
        %882 = vmatprep.mubr.f32.mxu0 %v517
        %883 = vmatmul.mubr.f32.gmra.mrb[0].mxu0 %v284
        %v884 = vpop.f32.mrb[0].mxu0
        %v885 = vadd.f32 %v501, %v884
        %v886 = vpop.f32.mrb[0].mxu0
        %887 = vmatprep.mubr.f32.mxu0 %v520
        %888 = vmatmul.mubr.f32.gmra.mrb[0].mxu0 %v286
        %v889 = vpop.f32.mrb[0].mxu0
        %v890 = vadd.f32 %v501, %v889
        %v891 = vpop.f32.mrb[0].mxu0
        %892 = vmatprep.mubr.f32.mxu0 %v523
        %893 = vmatmul.mubr.f32.gmra.mrb[0].mxu0 %v288
        %v894 = vpop.f32.mrb[0].mxu0
        %v895 = vadd.f32 %v501, %v894
        %v896 = vpop.f32.mrb[0].mxu0
        %897 = vmatprep.mubr.f32.mxu0 %v526
        %898 = vmatmul.mubr.f32.gmra.mrb[0].mxu0 %v290
        %v899 = vpop.f32.mrb[0].mxu0
        %v900 = vadd.f32 %v501, %v899
        %v901 = vpop.f32.mrb[0].mxu0
        %902 = vmatprep.mubr.f32.mxu0 %v529
        %903 = vmatmul.mubr.f32.gmra.mrb[0].mxu0 %v292
        %v904 = vpop.f32.mrb[0].mxu0
        %v905 = vadd.f32 %v501, %v904
        %v906 = vpop.f32.mrb[0].mxu0
        %907 = vmatprep.mubr.f32.mxu0 %v532
        %908 = vmatmul.mubr.f32.gmra.mrb[0].mxu0 %v294
        %v909 = vpop.f32.mrb[0].mxu0
        %v910 = vadd.f32 %v501, %v909
        %v911 = vpop.f32.mrb[0].mxu0
        %912 = vmatprep.mubr.f32.mxu0 %v535
        %913 = vmatmul.mubr.f32.gmra.mrb[0].mxu0 %v296
        %v914 = vpop.f32.mrb[0].mxu0
        %v915 = vadd.f32 %v501, %v914
        %v916 = vpop.f32.mrb[0].mxu0
        %917 = vmatprep.mubr.f32.mxu0 %v538
        %918 = vmatmul.mubr.f32.gmra.mrb[0].mxu0 %v298
        %v919 = vpop.f32.mrb[0].mxu0
        %v920 = vadd.f32 %v501, %v919
        %v921 = vpop.f32.mrb[0].mxu0
        %922 = vmatprep.mubr.f32.mxu0 %v541
        %923 = vmatmul.mubr.f32.gmra.mrb[0].mxu0 %v300
        %v924 = vpop.f32.mrb[0].mxu0
        %v925 = vadd.f32 %v501, %v924
        %v926 = vpop.f32.mrb[0].mxu0
        %927 = vmatprep.mubr.f32.mxu0 %v544
        %928 = vmatmul.mubr.f32.gmra.mrb[0].mxu0 %v302
        %v929 = vpop.f32.mrb[0].mxu0
        %v930 = vadd.f32 %v501, %v929
        %v931 = vpop.f32.mrb[0].mxu0
        %932 = vmatprep.mubr.f32.mxu0 %v547
        %933 = vmatmul.mubr.f32.gmra.mrb[0].mxu0 %v304
        %v934 = vpop.f32.mrb[0].mxu0
        %v935 = vadd.f32 %v501, %v934
        %v936 = vpop.f32.mrb[0].mxu0
        %937 = vmatprep.mubr.f32.mxu0 %v550
        %938 = vmatmul.mubr.f32.gmra.mrb[0].mxu0 %v306
        %v939 = vpop.f32.mrb[0].mxu0
        %v940 = vadd.f32 %v501, %v939
        %v941 = vpop.f32.mrb[0].mxu0
        %942 = vmatprep.mubr.f32.mxu0 %v553
        %943 = vmatmul.mubr.f32.gmra.mrb[0].mxu0 %v308
        %v944 = vpop.f32.mrb[0].mxu0
        %v945 = vadd.f32 %v501, %v944
        %v946 = vpop.f32.mrb[0].mxu0
        %947 = vmatprep.mubr.f32.mxu0 %v556
        %948 = vmatmul.mubr.f32.gmra.mrb[0].mxu0 %v310
        %v949 = vpop.f32.mrb[0].mxu0
        %v950 = vadd.f32 %v501, %v949
        %v951 = vpop.f32.mrb[0].mxu0
        %952 = vmatprep.mubr.f32.mxu0 %v559
        %953 = vmatmul.mubr.f32.gmra.mrb[0].mxu0 %v312
        %v954 = vpop.f32.mrb[0].mxu0
        %v955 = vadd.f32 %v501, %v954
        %v956 = vpop.f32.mrb[0].mxu0
        %957 = vmatprep.mubr.f32.mxu0 %v562
        %958 = vmatmul.mubr.f32.gmra.mrb[0].mxu0 %v314
        %v959 = vpop.f32.mrb[0].mxu0
        %v960 = vadd.f32 %v501, %v959
        %v961 = vpop.f32.mrb[0].mxu0
        %962 = vmatprep.mubr.f32.mxu0 %v565
        %963 = vmatmul.mubr.f32.gmra.mrb[0].mxu0 %v316
        %v964 = vpop.f32.mrb[0].mxu0
        %v965 = vadd.f32 %v501, %v964
        %v966 = vpop.f32.mrb[0].mxu0
        %967 = vmatprep.mubr.f32.mxu0 %v568
        %968 = vmatmul.mubr.f32.gmra.mrb[0].mxu0 %v318
        %v969 = vpop.f32.mrb[0].mxu0
        %v970 = vadd.f32 %v501, %v969
        %v971 = vpop.f32.mrb[0].mxu0
        %972 = vmatprep.mubr.f32.mxu0 %v571
        %973 = vmatmul.mubr.f32.gmra.mrb[0].mxu0 %v320
        %v974 = vpop.f32.mrb[0].mxu0
        %v975 = vadd.f32 %v501, %v974
        %v976 = vpop.f32.mrb[0].mxu0
        %977 = vmatprep.mubr.f32.mxu0 %v574
        %978 = vmatmul.mubr.f32.gmra.mrb[0].mxu0 %v322
        %v979 = vpop.f32.mrb[0].mxu0
        %v980 = vadd.f32 %v501, %v979
        %v981 = vpop.f32.mrb[0].mxu0
        %982 = vmatprep.mubr.f32.mxu0 %v577
        %983 = vmatmul.mubr.f32.gmra.mrb[0].mxu0 %v324
        %v984 = vpop.f32.mrb[0].mxu0
        %v985 = vadd.f32 %v501, %v984
        %v986 = vpop.f32.mrb[0].mxu0
        %987 = vmatprep.mubr.f32.mxu0 %v580
        %988 = vmatmul.mubr.f32.gmra.mrb[0].mxu0 %v326
        %v989 = vpop.f32.mrb[0].mxu0
        %v990 = vadd.f32 %v501, %v989
        %v991 = vpop.f32.mrb[0].mxu0
        %992 = vmatprep.mubr.f32.mxu0 %v583
        %993 = vmatmul.mubr.f32.gmra.mrb[0].mxu0 %v328
        %v994 = vpop.f32.mrb[0].mxu0
        %v995 = vadd.f32 %v501, %v994
        %v996 = vpop.f32.mrb[0].mxu0
        %997 = vmatprep.mubr.f32.mxu0 %v586
        %998 = vmatmul.mubr.f32.gmra.mrb[0].mxu0 %v330
        %v999 = vpop.f32.mrb[0].mxu0
        %v1000 = vadd.f32 %v501, %v999
        %v1001 = vpop.f32.mrb[0].mxu0
        %1002 = vmatprep.mubr.f32.mxu0 %v589
        %1003 = vmatmul.mubr.f32.gmra.mrb[0].mxu0 %v332
        %v1004 = vpop.f32.mrb[0].mxu0
        %v1005 = vadd.f32 %v501, %v1004
        %v1006 = vpop.f32.mrb[0].mxu0
        %1007 = vmatprep.mubr.f32.mxu0 %v592
        %1008 = vmatmul.mubr.f32.gmra.mrb[0].mxu0 %v334
        %v1009 = vpop.f32.mrb[0].mxu0
        %v1010 = vadd.f32 %v501, %v1009
        %v1011 = vpop.f32.mrb[0].mxu0
        %1012 = vmatprep.mubr.f32.mxu0 %v595
        %1013 = vmatmul.mubr.f32.gmra.mrb[0].mxu0 %v336
        %v1014 = vpop.f32.mrb[0].mxu0
        %v1015 = vadd.f32 %v501, %v1014
        %v1016 = vpop.f32.mrb[0].mxu0
        %1017 = vmatprep.mubr.f32.mxu0 %v598
        %1018 = vmatmul.mubr.f32.gmra.mrb[0].mxu0 %v338
        %v1019 = vpop.f32.mrb[0].mxu0
        %v1020 = vadd.f32 %v501, %v1019
        %v1021 = vpop.f32.mrb[0].mxu0
        %1022 = vmatprep.mubr.f32.mxu0 %v601
        %1023 = vmatmul.mubr.f32.gmra.mrb[0].mxu0 %v340
        %v1024 = vpop.f32.mrb[0].mxu0
        %v1025 = vadd.f32 %v501, %v1024
        %v1026 = vpop.f32.mrb[0].mxu0
        %1027 = vmatprep.mubr.f32.mxu0 %v604
        %1028 = vmatmul.mubr.f32.gmra.mrb[0].mxu0 %v342
        %v1029 = vpop.f32.mrb[0].mxu0
        %v1030 = vadd.f32 %v501, %v1029
        %v1031 = vpop.f32.mrb[0].mxu0
        %1032 = vmatprep.mubr.f32.mxu0 %v607
        %1033 = vmatmul.mubr.f32.gmra.mrb[0].mxu0 %v344
        %v1034 = vpop.f32.mrb[0].mxu0
        %v1035 = vadd.f32 %v501, %v1034
        %v1036 = vpop.f32.mrb[0].mxu0
        %1037 = vmatprep.mubr.f32.mxu0 %v610
        %1038 = vmatmul.mubr.f32.gmra.mrb[0].mxu0 %v346
        %v1039 = vpop.f32.mrb[0].mxu0
        %v1040 = vadd.f32 %v501, %v1039
        %v1041 = vpop.f32.mrb[0].mxu0
        %1042 = vmatprep.mubr.f32.mxu0 %v613
        %1043 = vmatmul.mubr.f32.gmra.mrb[0].mxu0 %v348
        %v1044 = vpop.f32.mrb[0].mxu0
        %v1045 = vadd.f32 %v501, %v1044
        %v1046 = vpop.f32.mrb[0].mxu0
        %1047 = vmatprep.mubr.f32.mxu0 %v616
        %1048 = vmatmul.mubr.f32.gmra.mrb[0].mxu0 %v350
        %v1049 = vpop.f32.mrb[0].mxu0
        %v1050 = vadd.f32 %v501, %v1049
        %v1051 = vpop.f32.mrb[0].mxu0
        %1052 = vmatprep.mubr.f32.mxu0 %v619
        %1053 = vmatmul.mubr.f32.gmra.mrb[0].mxu0 %v352
        %v1054 = vpop.f32.mrb[0].mxu0
        %v1055 = vadd.f32 %v501, %v1054
        %v1056 = vpop.f32.mrb[0].mxu0
        %1057 = vmatprep.mubr.f32.mxu0 %v622
        %1058 = vmatmul.mubr.f32.gmra.mrb[0].mxu0 %v354
        %v1059 = vpop.f32.mrb[0].mxu0
        %v1060 = vadd.f32 %v501, %v1059
        %v1061 = vpop.f32.mrb[0].mxu0
        %1062 = vmatprep.mubr.f32.mxu0 %v625
        %1063 = vmatmul.mubr.f32.gmra.mrb[0].mxu0 %v356
        %v1064 = vpop.f32.mrb[0].mxu0
        %v1065 = vadd.f32 %v501, %v1064
        %v1066 = vpop.f32.mrb[0].mxu0
        %1067 = vmatprep.mubr.f32.mxu0 %v628
        %1068 = vmatmul.mubr.f32.gmra.mrb[0].mxu0 %v358
        %v1069 = vpop.f32.mrb[0].mxu0
        %v1070 = vadd.f32 %v501, %v1069
        %v1071 = vpop.f32.mrb[0].mxu0
        %1072 = vmatprep.mubr.f32.mxu0 %v631
        %1073 = vmatmul.mubr.f32.gmra.mrb[0].mxu0 %v360
        %v1074 = vpop.f32.mrb[0].mxu0
        %v1075 = vadd.f32 %v501, %v1074
        %v1076 = vpop.f32.mrb[0].mxu0
        %1077 = vmatprep.mubr.f32.mxu0 %v634
        %1078 = vmatmul.mubr.f32.gmra.mrb[0].mxu0 %v362
        %v1079 = vpop.f32.mrb[0].mxu0
        %v1080 = vadd.f32 %v501, %v1079
        %v1081 = vpop.f32.mrb[0].mxu0
        %1082 = vmatprep.mubr.f32.mxu0 %v637
        %1083 = vmatmul.mubr.f32.gmra.mrb[0].mxu0 %v364
        %v1084 = vpop.f32.mrb[0].mxu0
        %v1085 = vadd.f32 %v501, %v1084
        %v1086 = vpop.f32.mrb[0].mxu0
        %1087 = vmatprep.mubr.f32.mxu0 %v640
        %1088 = vmatmul.mubr.f32.gmra.mrb[0].mxu0 %v366
        %v1089 = vpop.f32.mrb[0].mxu0
        %v1090 = vadd.f32 %v501, %v1089
        %v1091 = vpop.f32.mrb[0].mxu0
        %1092 = vmatprep.mubr.f32.mxu0 %v643
        %1093 = vmatmul.mubr.f32.gmra.mrb[0].mxu0 %v368
        %v1094 = vpop.f32.mrb[0].mxu0
        %v1095 = vadd.f32 %v501, %v1094
        %v1096 = vpop.f32.mrb[0].mxu0
        %1097 = vmatprep.mubr.f32.mxu0 %v646
        %1098 = vmatmul.mubr.f32.gmra.mrb[0].mxu0 %v370
        %v1099 = vpop.f32.mrb[0].mxu0
        %v1100 = vadd.f32 %v501, %v1099
        %v1101 = vpop.f32.mrb[0].mxu0
        %1102 = vmatprep.mubr.f32.mxu0 %v649
        %1103 = vmatmul.mubr.f32.gmra.mrb[0].mxu0 %v372
        %v1104 = vpop.f32.mrb[0].mxu0
        %v1105 = vadd.f32 %v501, %v1104
        %v1106 = vpop.f32.mrb[0].mxu0
        %1107 = vmatprep.mubr.f32.mxu0 %v652
        %1108 = vmatmul.mubr.f32.gmra.mrb[0].mxu0 %v374
        %v1109 = vpop.f32.mrb[0].mxu0
        %v1110 = vadd.f32 %v501, %v1109
        %v1111 = vpop.f32.mrb[0].mxu0
        %1112 = vmatprep.mubr.f32.mxu0 %v655
        %1113 = vmatmul.mubr.f32.gmra.mrb[0].mxu0 %v376
        %v1114 = vpop.f32.mrb[0].mxu0
        %v1115 = vadd.f32 %v501, %v1114
        %v1116 = vpop.f32.mrb[0].mxu0
        %1117 = vmatprep.mubr.f32.mxu0 %v658
        %1118 = vmatmul.mubr.f32.gmra.mrb[0].mxu0 %v378
        %v1119 = vpop.f32.mrb[0].mxu0
        %v1120 = vadd.f32 %v501, %v1119
        %v1121 = vpop.f32.mrb[0].mxu0
        %1122 = vmatprep.mubr.f32.mxu0 %v661
        %1123 = vmatmul.mubr.f32.gmra.mrb[0].mxu0 %v380
        %v1124 = vpop.f32.mrb[0].mxu0
        %v1125 = vadd.f32 %v501, %v1124
        %v1126 = vpop.f32.mrb[0].mxu0
        %1127 = vmatprep.mubr.f32.mxu0 %v664
        %1128 = vmatmul.mubr.f32.gmra.mrb[0].mxu0 %v382
        %v1129 = vpop.f32.mrb[0].mxu0
        %v1130 = vadd.f32 %v501, %v1129
        %v1131 = vpop.f32.mrb[0].mxu0
        %1132 = vmatprep.mubr.f32.mxu0 %v667
        %1133 = vmatmul.mubr.f32.gmra.mrb[0].mxu0 %v384
        %v1134 = vpop.f32.mrb[0].mxu0
        %v1135 = vadd.f32 %v501, %v1134
        %v1136 = vpop.f32.mrb[0].mxu0
        %1137 = vmatprep.mubr.f32.mxu0 %v670
        %1138 = vmatmul.mubr.f32.gmra.mrb[0].mxu0 %v386
        %v1139 = vpop.f32.mrb[0].mxu0
        %v1140 = vadd.f32 %v501, %v1139
        %v1141 = vpop.f32.mrb[0].mxu0
        %1142 = vmatprep.mubr.f32.mxu0 %v673
        %1143 = vmatmul.mubr.f32.gmra.mrb[0].mxu0 %v388
        %v1144 = vpop.f32.mrb[0].mxu0
        %v1145 = vadd.f32 %v501, %v1144
        %v1146 = vpop.f32.mrb[0].mxu0
        %1147 = vmatprep.mubr.f32.mxu0 %v676
        %1148 = vmatmul.mubr.f32.gmra.mrb[0].mxu0 %v390
        %v1149 = vpop.f32.mrb[0].mxu0
        %v1150 = vadd.f32 %v501, %v1149
        %v1151 = vpop.f32.mrb[0].mxu0
        %1152 = vmatprep.mubr.f32.mxu0 %v679
        %1153 = vmatmul.mubr.f32.gmra.mrb[0].mxu0 %v392
        %v1154 = vpop.f32.mrb[0].mxu0
        %v1155 = vadd.f32 %v501, %v1154
        %v1156 = vpop.f32.mrb[0].mxu0
        %1157 = vmatprep.mubr.f32.mxu0 %v682
        %1158 = vmatmul.mubr.f32.gmra.mrb[0].mxu0 %v394
        %v1159 = vpop.f32.mrb[0].mxu0
        %v1160 = vadd.f32 %v501, %v1159
        %v1161 = vpop.f32.mrb[0].mxu0
        %1162 = vmatprep.mubr.f32.mxu0 %v685
        %1163 = vmatmul.mubr.f32.gmra.mrb[0].mxu0 %v396
        %v1164 = vpop.f32.mrb[0].mxu0
        %v1165 = vadd.f32 %v501, %v1164
        %v1166 = vpop.f32.mrb[0].mxu0
        %1167 = vmatprep.mubr.f32.mxu0 %v688
        %1168 = vmatmul.mubr.f32.gmra.mrb[0].mxu0 %v398
        %v1169 = vpop.f32.mrb[0].mxu0
        %v1170 = vadd.f32 %v501, %v1169
        %v1171 = vpop.f32.mrb[0].mxu0
        %1172 = vmatprep.mubr.f32.mxu0 %v691
        %1173 = vmatmul.mubr.f32.gmra.mrb[0].mxu0 %v400
        %v1174 = vpop.f32.mrb[0].mxu0
        %v1175 = vadd.f32 %v501, %v1174
        %v1176 = vpop.f32.mrb[0].mxu0
        %1177 = vmatprep.mubr.f32.mxu0 %v694
        %1178 = vmatmul.mubr.f32.gmra.mrb[0].mxu0 %v402
        %v1179 = vpop.f32.mrb[0].mxu0
        %v1180 = vadd.f32 %v501, %v1179
        %v1181 = vpop.f32.mrb[0].mxu0
        %1182 = vmatprep.mubr.f32.mxu0 %v697
        %1183 = vmatmul.mubr.f32.gmra.mrb[0].mxu0 %v404
        %v1184 = vpop.f32.mrb[0].mxu0
        %v1185 = vadd.f32 %v501, %v1184
        %v1186 = vpop.f32.mrb[0].mxu0
        %1187 = vmatprep.mubr.f32.mxu0 %v700
        %1188 = vmatmul.mubr.f32.gmra.mrb[0].mxu0 %v406
        %v1189 = vpop.f32.mrb[0].mxu0
        %v1190 = vadd.f32 %v501, %v1189
        %v1191 = vpop.f32.mrb[0].mxu0
        %1192 = vmatprep.mubr.f32.mxu0 %v703
        %1193 = vmatmul.mubr.f32.gmra.mrb[0].mxu0 %v408
        %v1194 = vpop.f32.mrb[0].mxu0
        %v1195 = vadd.f32 %v501, %v1194
        %v1196 = vpop.f32.mrb[0].mxu0
        %1197 = vmatprep.mubr.f32.mxu0 %v706
        %1198 = vmatmul.mubr.f32.gmra.mrb[0].mxu0 %v410
        %v1199 = vpop.f32.mrb[0].mxu0
        %v1200 = vadd.f32 %v501, %v1199
        %v1201 = vpop.f32.mrb[0].mxu0
        %1202 = vmatprep.mubr.f32.mxu0 %v709
        %1203 = vmatmul.mubr.f32.gmra.mrb[0].mxu0 %v412
        %v1204 = vpop.f32.mrb[0].mxu0
        %v1205 = vadd.f32 %v501, %v1204
        %v1206 = vpop.f32.mrb[0].mxu0
        %1207 = vmatprep.mubr.f32.mxu0 %v712
        %1208 = vmatmul.mubr.f32.gmra.mrb[0].mxu0 %v414
        %v1209 = vpop.f32.mrb[0].mxu0
        %v1210 = vadd.f32 %v501, %v1209
        %v1211 = vpop.f32.mrb[0].mxu0
        %1212 = vmatprep.mubr.f32.mxu0 %v715
        %1213 = vmatmul.mubr.f32.gmra.mrb[0].mxu0 %v416
        %v1214 = vpop.f32.mrb[0].mxu0
        %v1215 = vadd.f32 %v501, %v1214
        %v1216 = vpop.f32.mrb[0].mxu0
        %1217 = vmatprep.mubr.f32.mxu0 %v718
        %1218 = vmatmul.mubr.f32.gmra.mrb[0].mxu0 %v418
        %v1219 = vpop.f32.mrb[0].mxu0
        %v1220 = vadd.f32 %v501, %v1219
        %v1221 = vpop.f32.mrb[0].mxu0
        %1222 = vmatprep.mubr.f32.mxu0 %v721
        %1223 = vmatmul.mubr.f32.gmra.mrb[0].mxu0 %v420
        %v1224 = vpop.f32.mrb[0].mxu0
        %v1225 = vadd.f32 %v501, %v1224
        %v1226 = vpop.f32.mrb[0].mxu0
        %1227 = vmatprep.mubr.f32.mxu0 %v724
        %1228 = vmatmul.mubr.f32.gmra.mrb[0].mxu0 %v422
        %v1229 = vpop.f32.mrb[0].mxu0
        %v1230 = vadd.f32 %v501, %v1229
        %v1231 = vpop.f32.mrb[0].mxu0
        %1232 = vmatprep.mubr.f32.mxu0 %v727
        %1233 = vmatmul.mubr.f32.gmra.mrb[0].mxu0 %v424
        %v1234 = vpop.f32.mrb[0].mxu0
        %v1235 = vadd.f32 %v501, %v1234
        %v1236 = vpop.f32.mrb[0].mxu0
        %1237 = vmatprep.mubr.f32.mxu0 %v730
        %1238 = vmatmul.mubr.f32.gmra.mrb[0].mxu0 %v426
        %v1239 = vpop.f32.mrb[0].mxu0
        %v1240 = vadd.f32 %v501, %v1239
        %v1241 = vpop.f32.mrb[0].mxu0
        %1242 = vmatprep.mubr.f32.mxu0 %v733
        %1243 = vmatmul.mubr.f32.gmra.mrb[0].mxu0 %v428
        %v1244 = vpop.f32.mrb[0].mxu0
        %v1245 = vadd.f32 %v501, %v1244
        %v1246 = vpop.f32.mrb[0].mxu0
        %1247 = vmatprep.mubr.f32.mxu0 %v736
        %1248 = vmatmul.mubr.f32.gmra.mrb[0].mxu0 %v430
        %v1249 = vpop.f32.mrb[0].mxu0
        %v1250 = vadd.f32 %v501, %v1249
        %v1251 = vpop.f32.mrb[0].mxu0
        %1252 = vmatprep.mubr.f32.mxu0 %v739
        %1253 = vmatmul.mubr.f32.gmra.mrb[0].mxu0 %v432
        %v1254 = vpop.f32.mrb[0].mxu0
        %v1255 = vadd.f32 %v501, %v1254
        %v1256 = vpop.f32.mrb[0].mxu0
        %1257 = vmatprep.mubr.f32.mxu0 %v742
        %1258 = vmatmul.mubr.f32.gmra.mrb[0].mxu0 %v434
        %v1259 = vpop.f32.mrb[0].mxu0
        %v1260 = vadd.f32 %v501, %v1259
        %v1261 = vpop.f32.mrb[0].mxu0
        %1262 = vmatprep.mubr.f32.mxu0 %v745
        %1263 = vmatmul.mubr.f32.gmra.mrb[0].mxu0 %v436
        %v1264 = vpop.f32.mrb[0].mxu0
        %v1265 = vadd.f32 %v501, %v1264
        %v1266 = vpop.f32.mrb[0].mxu0
        %1267 = vmatprep.mubr.f32.mxu0 %v748
        %1268 = vmatmul.mubr.f32.gmra.mrb[0].mxu0 %v438
        %v1269 = vpop.f32.mrb[0].mxu0
        %v1270 = vadd.f32 %v501, %v1269
        %v1271 = vpop.f32.mrb[0].mxu0
        %1272 = vmatprep.mubr.f32.mxu0 %v751
        %1273 = vmatmul.mubr.f32.gmra.mrb[0].mxu0 %v440
        %v1274 = vpop.f32.mrb[0].mxu0
        %v1275 = vadd.f32 %v501, %v1274
        %v1276 = vpop.f32.mrb[0].mxu0
        %1277 = vmatprep.mubr.f32.mxu0 %v754
        %1278 = vmatmul.mubr.f32.gmra.mrb[0].mxu0 %v442
        %v1279 = vpop.f32.mrb[0].mxu0
        %v1280 = vadd.f32 %v501, %v1279
        %v1281 = vpop.f32.mrb[0].mxu0
        %1282 = vmatprep.mubr.f32.mxu0 %v757
        %1283 = vmatmul.mubr.f32.gmra.mrb[0].mxu0 %v444
        %v1284 = vpop.f32.mrb[0].mxu0
        %v1285 = vadd.f32 %v501, %v1284
        %v1286 = vpop.f32.mrb[0].mxu0
        %1287 = vmatprep.mubr.f32.mxu0 %v760
        %1288 = vmatmul.mubr.f32.gmra.mrb[0].mxu0 %v446
        %v1289 = vpop.f32.mrb[0].mxu0
        %v1290 = vadd.f32 %v501, %v1289
        %v1291 = vpop.f32.mrb[0].mxu0
        %1292 = vmatprep.mubr.f32.mxu0 %v763
        %1293 = vmatmul.mubr.f32.gmra.mrb[0].mxu0 %v448
        %v1294 = vpop.f32.mrb[0].mxu0
        %v1295 = vadd.f32 %v501, %v1294
        %v1296 = vpop.f32.mrb[0].mxu0
        %1297 = vmatprep.mubr.f32.mxu0 %v766
        %1298 = vmatmul.mubr.f32.gmra.mrb[0].mxu0 %v450
        %v1299 = vpop.f32.mrb[0].mxu0
        %v1300 = vadd.f32 %v501, %v1299
        %v1301 = vpop.f32.mrb[0].mxu0
        %1302 = vmatprep.mubr.f32.mxu0 %v769
        %1303 = vmatmul.mubr.f32.gmra.mrb[0].mxu0 %v452
        %v1304 = vpop.f32.mrb[0].mxu0
        %v1305 = vadd.f32 %v501, %v1304
        %v1306 = vpop.f32.mrb[0].mxu0
        %1307 = vmatprep.mubr.f32.mxu0 %v772
        %1308 = vmatmul.mubr.f32.gmra.mrb[0].mxu0 %v454
        %v1309 = vpop.f32.mrb[0].mxu0
        %v1310 = vadd.f32 %v501, %v1309
        %v1311 = vpop.f32.mrb[0].mxu0
        %1312 = vmatprep.mubr.f32.mxu0 %v775
        %1313 = vmatmul.mubr.f32.gmra.mrb[0].mxu0 %v456
        %v1314 = vpop.f32.mrb[0].mxu0
        %v1315 = vadd.f32 %v501, %v1314
        %v1316 = vpop.f32.mrb[0].mxu0
        %1317 = vmatprep.mubr.f32.mxu0 %v778
        %1318 = vmatmul.mubr.f32.gmra.mrb[0].mxu0 %v458
        %v1319 = vpop.f32.mrb[0].mxu0
        %v1320 = vadd.f32 %v501, %v1319
        %v1321 = vpop.f32.mrb[0].mxu0
        %1322 = vmatprep.mubr.f32.mxu0 %v781
        %1323 = vmatmul.mubr.f32.gmra.mrb[0].mxu0 %v460
        %v1324 = vpop.f32.mrb[0].mxu0
        %v1325 = vadd.f32 %v501, %v1324
        %v1326 = vpop.f32.mrb[0].mxu0
        %1327 = vmatprep.mubr.f32.mxu0 %v784
        %1328 = vmatmul.mubr.f32.gmra.mrb[0].mxu0 %v462
        %v1329 = vpop.f32.mrb[0].mxu0
        %v1330 = vadd.f32 %v501, %v1329
        %v1331 = vpop.f32.mrb[0].mxu0
        %1332 = vmatprep.mubr.f32.mxu0 %v787
        %1333 = vmatmul.mubr.f32.gmra.mrb[0].mxu0 %v464
        %v1334 = vpop.f32.mrb[0].mxu0
        %v1335 = vadd.f32 %v501, %v1334
        %v1336 = vpop.f32.mrb[0].mxu0
        %1337 = vmatprep.mubr.f32.mxu0 %v790
        %1338 = vmatmul.mubr.f32.gmra.mrb[0].mxu0 %v466
        %v1339 = vpop.f32.mrb[0].mxu0
        %v1340 = vadd.f32 %v501, %v1339
        %v1341 = vpop.f32.mrb[0].mxu0
        %1342 = vmatprep.mubr.f32.mxu0 %v793
        %1343 = vmatmul.mubr.f32.gmra.mrb[0].mxu0 %v468
        %v1344 = vpop.f32.mrb[0].mxu0
        %v1345 = vadd.f32 %v501, %v1344
        %v1346 = vpop.f32.mrb[0].mxu0
        %1347 = vmatprep.mubr.f32.mxu0 %v796
        %1348 = vmatmul.mubr.f32.gmra.mrb[0].mxu0 %v470
        %v1349 = vpop.f32.mrb[0].mxu0
        %v1350 = vadd.f32 %v501, %v1349
        %v1351 = vpop.f32.mrb[0].mxu0
        %1352 = vdwg.mxu0
        %vm1353 = vcmask 261120
        %1354 = vst.msk [vmem:[#allocation2] sm:$0xff] %vm1353, 0.0
        %1355 = vst.msk [vmem:[#allocation2 + $0x8] sm:$0xff] %vm1353, 0.0
        %1356 = vst.msk [vmem:[#allocation2 + $0x10] sm:$0xff] %vm1353, 0.0
        %vm1357 = vcmask 259072
        %1358 = vst.msk [vmem:[#allocation2 + $0x18] sm:$0x3f] %vm1357, 0.0
        %1359 = vst.msk [vmem:[#allocation2 + $0x20] sm:$0xff] %vm1353, 0.0
        %1360 = vst.msk [vmem:[#allocation2 + $0x28] sm:$0xff] %vm1353, 0.0
        %1361 = vst.msk [vmem:[#allocation2 + $0x30] sm:$0xff] %vm1353, 0.0
        %1362 = vst.msk [vmem:[#allocation2 + $0x38] sm:$0x3f] %vm1357, 0.0
        %1363 = vst.msk [vmem:[#allocation2 + $0x40] sm:$0xff] %vm1353, 0.0
        %1364 = vst.msk [vmem:[#allocation2 + $0x48] sm:$0xff] %vm1353, 0.0
        %1365 = vst.msk [vmem:[#allocation2 + $0x50] sm:$0xff] %vm1353, 0.0
        %1366 = vst.msk [vmem:[#allocation2 + $0x58] sm:$0x3f] %vm1357, 0.0
        %1367 = vst.msk [vmem:[#allocation2 + $0x60] sm:$0xff] %vm1353, 0.0
        %1368 = vst.msk [vmem:[#allocation2 + $0x68] sm:$0xff] %vm1353, 0.0
        %1369 = vst.msk [vmem:[#allocation2 + $0x70] sm:$0xff] %vm1353, 0.0
        %1370 = vst.msk [vmem:[#allocation2 + $0x78] sm:$0x3f] %vm1357, 0.0
        %1371 = vst.msk [vmem:[#allocation2 + $0x80] sm:$0xff] %vm1353, 0.0
        %1372 = vst.msk [vmem:[#allocation2 + $0x88] sm:$0xff] %vm1353, 0.0
        %1373 = vst.msk [vmem:[#allocation2 + $0x90] sm:$0xff] %vm1353, 0.0
        %1374 = vst.msk [vmem:[#allocation2 + $0x98] sm:$0x3f] %vm1357, 0.0
        %1375 = vst.msk [vmem:[#allocation2 + $0xa0] sm:$0xff] %vm1353, 0.0
        %1376 = vst.msk [vmem:[#allocation2 + $0xa8] sm:$0xff] %vm1353, 0.0
        %1377 = vst.msk [vmem:[#allocation2 + $0xb0] sm:$0xff] %vm1353, 0.0
        %1378 = vst.msk [vmem:[#allocation2 + $0xb8] sm:$0x3f] %vm1357, 0.0
        %1379 = vst.msk [vmem:[#allocation2 + $0xc0] sm:$0xff] %vm1353, 0.0
        %1380 = vst.msk [vmem:[#allocation2 + $0xc8] sm:$0xff] %vm1353, 0.0
        %1381 = vst.msk [vmem:[#allocation2 + $0xd0] sm:$0xff] %vm1353, 0.0
        %1382 = vst.msk [vmem:[#allocation2 + $0xd8] sm:$0x3f] %vm1357, 0.0
        %1383 = vst.msk [vmem:[#allocation2 + $0xe0] sm:$0xff] %vm1353, 0.0
        %1384 = vst.msk [vmem:[#allocation2 + $0xe8] sm:$0xff] %vm1353, 0.0
        %1385 = vst.msk [vmem:[#allocation2 + $0xf0] sm:$0xff] %vm1353, 0.0
        %1386 = vst.msk [vmem:[#allocation2 + $0xf8] sm:$0x3f] %vm1357, 0.0
        %1387 = vst.msk [vmem:[#allocation2 + $0x100] sm:$0xff] %vm1353, 0.0
        %1388 = vst.msk [vmem:[#allocation2 + $0x108] sm:$0xff] %vm1353, 0.0
        %1389 = vst.msk [vmem:[#allocation2 + $0x110] sm:$0xff] %vm1353, 0.0
        %1390 = vst.msk [vmem:[#allocation2 + $0x118] sm:$0x3f] %vm1357, 0.0
        %1391 = vst.msk [vmem:[#allocation2 + $0x120] sm:$0xff] %vm1353, 0.0
        %1392 = vst.msk [vmem:[#allocation2 + $0x128] sm:$0xff] %vm1353, 0.0
        %1393 = vst.msk [vmem:[#allocation2 + $0x130] sm:$0xff] %vm1353, 0.0
        %1394 = vst.msk [vmem:[#allocation2 + $0x138] sm:$0x3f] %vm1357, 0.0
        %1395 = vst.msk [vmem:[#allocation2 + $0x140] sm:$0xff] %vm1353, 0.0
        %1396 = vst.msk [vmem:[#allocation2 + $0x148] sm:$0xff] %vm1353, 0.0
        %1397 = vst.msk [vmem:[#allocation2 + $0x150] sm:$0xff] %vm1353, 0.0
        %1398 = vst.msk [vmem:[#allocation2 + $0x158] sm:$0x3f] %vm1357, 0.0
        %1399 = vst.msk [vmem:[#allocation2 + $0x160] sm:$0xff] %vm1353, 0.0
        %1400 = vst.msk [vmem:[#allocation2 + $0x168] sm:$0xff] %vm1353, 0.0
        %1401 = vst.msk [vmem:[#allocation2 + $0x170] sm:$0xff] %vm1353, 0.0
        %1402 = vst.msk [vmem:[#allocation2 + $0x178] sm:$0x3f] %vm1357, 0.0
        %1403 = vst.msk [vmem:[#allocation2 + $0x180] sm:$0xff] %vm1353, 0.0
        %1404 = vst.msk [vmem:[#allocation2 + $0x188] sm:$0xff] %vm1353, 0.0
        %1405 = vst.msk [vmem:[#allocation2 + $0x190] sm:$0xff] %vm1353, 0.0
        %1406 = vst.msk [vmem:[#allocation2 + $0x198] sm:$0x3f] %vm1357, 0.0
        %1407 = vst.msk [vmem:[#allocation2 + $0x1a0] sm:$0xff] %vm1353, 0.0
        %1408 = vst.msk [vmem:[#allocation2 + $0x1a8] sm:$0xff] %vm1353, 0.0
        %1409 = vst.msk [vmem:[#allocation2 + $0x1b0] sm:$0xff] %vm1353, 0.0
        %1410 = vst.msk [vmem:[#allocation2 + $0x1b8] sm:$0x3f] %vm1357, 0.0
        %1411 = vst.msk [vmem:[#allocation2 + $0x1c0] sm:$0xff] %vm1353, 0.0
        %1412 = vst.msk [vmem:[#allocation2 + $0x1c8] sm:$0xff] %vm1353, 0.0
        %1413 = vst.msk [vmem:[#allocation2 + $0x1d0] sm:$0xff] %vm1353, 0.0
        %1414 = vst.msk [vmem:[#allocation2 + $0x1d8] sm:$0x3f] %vm1357, 0.0
        %1415 = vst.msk [vmem:[#allocation2 + $0x1e0] sm:$0xff] %vm1353, 0.0
        %1416 = vst.msk [vmem:[#allocation2 + $0x1e8] sm:$0xff] %vm1353, 0.0
        %1417 = vst.msk [vmem:[#allocation2 + $0x1f0] sm:$0xff] %vm1353, 0.0
        %1418 = vst.msk [vmem:[#allocation2 + $0x1f8] sm:$0x3f] %vm1357, 0.0
        %1419 = vst.msk [vmem:[#allocation2 + $0x200] sm:$0xff] %vm1353, 0.0
        %1420 = vst.msk [vmem:[#allocation2 + $0x208] sm:$0xff] %vm1353, 0.0
        %1421 = vst.msk [vmem:[#allocation2 + $0x210] sm:$0xff] %vm1353, 0.0
        %1422 = vst.msk [vmem:[#allocation2 + $0x218] sm:$0x3f] %vm1357, 0.0
        %1423 = vst.msk [vmem:[#allocation2 + $0x220] sm:$0xff] %vm1353, 0.0
        %1424 = vst.msk [vmem:[#allocation2 + $0x228] sm:$0xff] %vm1353, 0.0
        %1425 = vst.msk [vmem:[#allocation2 + $0x230] sm:$0xff] %vm1353, 0.0
        %1426 = vst.msk [vmem:[#allocation2 + $0x238] sm:$0x3f] %vm1357, 0.0
        %1427 = vst.msk [vmem:[#allocation2 + $0x240] sm:$0xff] %vm1353, 0.0
        %1428 = vst.msk [vmem:[#allocation2 + $0x248] sm:$0xff] %vm1353, 0.0
        %1429 = vst.msk [vmem:[#allocation2 + $0x250] sm:$0xff] %vm1353, 0.0
        %1430 = vst.msk [vmem:[#allocation2 + $0x258] sm:$0x3f] %vm1357, 0.0
        %1431 = vst.msk [vmem:[#allocation2 + $0x260] sm:$0xff] %vm1353, 0.0
        %1432 = vst.msk [vmem:[#allocation2 + $0x268] sm:$0xff] %vm1353, 0.0
        %1433 = vst.msk [vmem:[#allocation2 + $0x270] sm:$0xff] %vm1353, 0.0
        %1434 = vst.msk [vmem:[#allocation2 + $0x278] sm:$0x3f] %vm1357, 0.0
        %1435 = vst.msk [vmem:[#allocation2 + $0x280] sm:$0xff] %vm1353, 0.0
        %1436 = vst.msk [vmem:[#allocation2 + $0x288] sm:$0xff] %vm1353, 0.0
        %1437 = vst.msk [vmem:[#allocation2 + $0x290] sm:$0xff] %vm1353, 0.0
        %1438 = vst.msk [vmem:[#allocation2 + $0x298] sm:$0x3f] %vm1357, 0.0
        %1439 = vst.msk [vmem:[#allocation2 + $0x2a0] sm:$0xff] %vm1353, 0.0
        %1440 = vst.msk [vmem:[#allocation2 + $0x2a8] sm:$0xff] %vm1353, 0.0
        %1441 = vst.msk [vmem:[#allocation2 + $0x2b0] sm:$0xff] %vm1353, 0.0
        %1442 = vst.msk [vmem:[#allocation2 + $0x2b8] sm:$0x3f] %vm1357, 0.0
        %1443 = vst.msk [vmem:[#allocation2 + $0x2c0] sm:$0xff] %vm1353, 0.0
        %1444 = vst.msk [vmem:[#allocation2 + $0x2c8] sm:$0xff] %vm1353, 0.0
        %1445 = vst.msk [vmem:[#allocation2 + $0x2d0] sm:$0xff] %vm1353, 0.0
        %1446 = vst.msk [vmem:[#allocation2 + $0x2d8] sm:$0x3f] %vm1357, 0.0
        %1447 = vst.msk [vmem:[#allocation2 + $0x2e0] sm:$0xff] %vm1353, 0.0
        %1448 = vst.msk [vmem:[#allocation2 + $0x2e8] sm:$0xff] %vm1353, 0.0
        %1449 = vst.msk [vmem:[#allocation2 + $0x2f0] sm:$0xff] %vm1353, 0.0
        %1450 = vst.msk [vmem:[#allocation2 + $0x2f8] sm:$0x3f] %vm1357, 0.0
        %1451 = vst.msk [vmem:[#allocation2 + $0x300] sm:$0xff] %vm1353, 0.0
        %1452 = vst.msk [vmem:[#allocation2 + $0x308] sm:$0xff] %vm1353, 0.0
        %1453 = vst.msk [vmem:[#allocation2 + $0x310] sm:$0xff] %vm1353, 0.0
        %1454 = vst.msk [vmem:[#allocation2 + $0x318] sm:$0x3f] %vm1357, 0.0
        %1455 = vst.msk [vmem:[#allocation2 + $0x320] sm:$0xff] %vm1353, 0.0
        %1456 = vst.msk [vmem:[#allocation2 + $0x328] sm:$0xff] %vm1353, 0.0
        %1457 = vst.msk [vmem:[#allocation2 + $0x330] sm:$0xff] %vm1353, 0.0
        %1458 = vst.msk [vmem:[#allocation2 + $0x338] sm:$0x3f] %vm1357, 0.0
        %1459 = vst.msk [vmem:[#allocation2 + $0x340] sm:$0xff] %vm1353, 0.0
        %1460 = vst.msk [vmem:[#allocation2 + $0x348] sm:$0xff] %vm1353, 0.0
        %1461 = vst.msk [vmem:[#allocation2 + $0x350] sm:$0xff] %vm1353, 0.0
        %1462 = vst.msk [vmem:[#allocation2 + $0x358] sm:$0x3f] %vm1357, 0.0
        %1463 = vst.msk [vmem:[#allocation2 + $0x360] sm:$0xff] %vm1353, 0.0
        %1464 = vst.msk [vmem:[#allocation2 + $0x368] sm:$0xff] %vm1353, 0.0
        %1465 = vst.msk [vmem:[#allocation2 + $0x370] sm:$0xff] %vm1353, 0.0
        %1466 = vst.msk [vmem:[#allocation2 + $0x378] sm:$0x3f] %vm1357, 0.0
        %1467 = vst.msk [vmem:[#allocation2 + $0x380] sm:$0xff] %vm1353, 0.0
        %1468 = vst.msk [vmem:[#allocation2 + $0x388] sm:$0xff] %vm1353, 0.0
        %1469 = vst.msk [vmem:[#allocation2 + $0x390] sm:$0xff] %vm1353, 0.0
        %1470 = vst.msk [vmem:[#allocation2 + $0x398] sm:$0x3f] %vm1357, 0.0
        %1471 = vst.msk [vmem:[#allocation2 + $0x3a0] sm:$0xff] %vm1353, 0.0
        %1472 = vst.msk [vmem:[#allocation2 + $0x3a8] sm:$0xff] %vm1353, 0.0
        %1473 = vst.msk [vmem:[#allocation2 + $0x3b0] sm:$0xff] %vm1353, 0.0
        %1474 = vst.msk [vmem:[#allocation2 + $0x3b8] sm:$0x3f] %vm1357, 0.0
        %v1573 = vcombine.high %v865, %v865
        %v1574 = vcombine.high %v870, %v870
        %v1575 = vcombine.high %v875, %v875
        %v1576 = vcombine.high %v880, %v880
        %v1577 = vcombine.high %v885, %v885
        %v1578 = vcombine.high %v890, %v890
        %v1579 = vcombine.high %v895, %v895
        %v1580 = vcombine.high %v900, %v900
        %v1581 = vcombine.high %v905, %v905
        %v1582 = vcombine.high %v910, %v910
        %v1583 = vcombine.high %v915, %v915
        %v1584 = vcombine.high %v920, %v920
        %v1585 = vcombine.high %v925, %v925
        %v1586 = vcombine.high %v930, %v930
        %v1587 = vcombine.high %v935, %v935
        %v1588 = vcombine.high %v940, %v940
        %v1589 = vcombine.high %v945, %v945
        %v1590 = vcombine.high %v950, %v950
        %v1591 = vcombine.high %v955, %v955
        %v1592 = vcombine.high %v960, %v960
        %v1593 = vcombine.high %v965, %v965
        %v1594 = vcombine.high %v970, %v970
        %v1595 = vcombine.high %v975, %v975
        %v1596 = vcombine.high %v980, %v980
        %v1597 = vcombine.high %v985, %v985
        %v1598 = vcombine.high %v990, %v990
        %v1599 = vcombine.high %v995, %v995
        %v1600 = vcombine.high %v1000, %v1000
        %v1601 = vcombine.high %v1005, %v1005
        %v1602 = vcombine.high %v1010, %v1010
        %v1603 = vcombine.high %v1015, %v1015
        %v1604 = vcombine.high %v1020, %v1020
        %v1605 = vcombine.high %v1025, %v1025
        %v1606 = vcombine.high %v1030, %v1030
        %v1607 = vcombine.high %v1035, %v1035
        %v1608 = vcombine.high %v1040, %v1040
        %v1609 = vcombine.high %v1045, %v1045
        %v1610 = vcombine.high %v1050, %v1050
        %v1611 = vcombine.high %v1055, %v1055
        %v1612 = vcombine.high %v1060, %v1060
        %v1613 = vcombine.high %v1065, %v1065
        %v1614 = vcombine.high %v1070, %v1070
        %v1615 = vcombine.high %v1075, %v1075
        %v1616 = vcombine.high %v1080, %v1080
        %v1617 = vcombine.high %v1085, %v1085
        %v1618 = vcombine.high %v1090, %v1090
        %v1619 = vcombine.high %v1095, %v1095
        %v1620 = vcombine.high %v1100, %v1100
        %v1621 = vcombine.high %v1105, %v1105
        %v1622 = vcombine.high %v1110, %v1110
        %v1623 = vcombine.high %v1115, %v1115
        %v1624 = vcombine.high %v1120, %v1120
        %v1625 = vcombine.high %v1125, %v1125
        %v1626 = vcombine.high %v1130, %v1130
        %v1627 = vcombine.high %v1135, %v1135
        %v1628 = vcombine.high %v1140, %v1140
        %v1629 = vcombine.high %v1145, %v1145
        %v1630 = vcombine.high %v1150, %v1150
        %v1631 = vcombine.high %v1155, %v1155
        %v1632 = vcombine.high %v1160, %v1160
        %v1633 = vcombine.high %v1165, %v1165
        %v1634 = vcombine.high %v1170, %v1170
        %v1635 = vcombine.high %v1175, %v1175
        %v1636 = vcombine.high %v1180, %v1180
        %v1637 = vcombine.high %v1185, %v1185
        %v1638 = vcombine.high %v1190, %v1190
        %v1639 = vcombine.high %v1195, %v1195
        %v1640 = vcombine.high %v1200, %v1200
        %v1641 = vcombine.high %v1205, %v1205
        %v1642 = vcombine.high %v1210, %v1210
        %v1643 = vcombine.high %v1215, %v1215
        %v1644 = vcombine.high %v1220, %v1220
        %v1645 = vcombine.high %v1225, %v1225
        %v1646 = vcombine.high %v1230, %v1230
        %v1647 = vcombine.high %v1235, %v1235
        %v1648 = vcombine.high %v1240, %v1240
        %v1649 = vcombine.high %v1245, %v1245
        %v1650 = vcombine.high %v1250, %v1250
        %v1651 = vcombine.high %v1255, %v1255
        %v1652 = vcombine.high %v1260, %v1260
        %v1653 = vcombine.high %v1265, %v1265
        %v1654 = vcombine.high %v1270, %v1270
        %v1655 = vcombine.high %v1275, %v1275
        %v1656 = vcombine.high %v1280, %v1280
        %v1657 = vcombine.high %v1285, %v1285
        %v1658 = vcombine.high %v1290, %v1290
        %v1659 = vcombine.high %v1295, %v1295
        %v1660 = vcombine.high %v1300, %v1300
        %v1661 = vcombine.high %v1305, %v1305
        %v1662 = vcombine.high %v1310, %v1310
        %v1663 = vcombine.high %v1315, %v1315
        %v1664 = vcombine.high %v1320, %v1320
        %v1665 = vcombine.high %v1325, %v1325
        %v1666 = vcombine.high %v1330, %v1330
        %v1667 = vcombine.high %v1335, %v1335
        %v1668 = vcombine.high %v1340, %v1340
        %v1669 = vcombine.high %v1345, %v1345
        %v1670 = vcombine.high %v1350, %v1350
        %v1685 = vcombine.low %v865, %v1573
        %v1686 = vcombine.low %v870, %v1574
        %v1687 = vcombine.low %v875, %v1575
        %v1688 = vcombine.low %v1576, %v885
        %v1689 = vcombine.low %v1577, %v890
        %v1690 = vcombine.low %v1578, %v895
        %v1691 = vcombine.low %v900, %v1580
        %v1692 = vcombine.low %v905, %v1581
        %v1693 = vcombine.low %v910, %v1582
        %v1694 = vcombine.low %v1583, %v920
        %v1695 = vcombine.low %v1584, %v925
        %v1696 = vcombine.low %v1585, %v930
        %v1697 = vcombine.low %v935, %v1587
        %v1698 = vcombine.low %v940, %v1588
        %v1699 = vcombine.low %v945, %v1589
        %v1700 = vcombine.low %v1590, %v955
        %v1701 = vcombine.low %v1591, %v960
        %v1702 = vcombine.low %v1592, %v965
        %v1703 = vcombine.low %v970, %v1594
        %v1704 = vcombine.low %v975, %v1595
        %v1705 = vcombine.low %v980, %v1596
        %v1706 = vcombine.low %v1597, %v990
        %v1707 = vcombine.low %v1598, %v995
        %v1708 = vcombine.low %v1599, %v1000
        %v1709 = vcombine.low %v1005, %v1601
        %v1710 = vcombine.low %v1010, %v1602
        %v1711 = vcombine.low %v1015, %v1603
        %v1712 = vcombine.low %v1604, %v1025
        %v1713 = vcombine.low %v1605, %v1030
        %v1714 = vcombine.low %v1606, %v1035
        %v1715 = vcombine.low %v1040, %v1608
        %v1716 = vcombine.low %v1045, %v1609
        %v1717 = vcombine.low %v1050, %v1610
        %v1718 = vcombine.low %v1611, %v1060
        %v1719 = vcombine.low %v1612, %v1065
        %v1720 = vcombine.low %v1613, %v1070
        %v1721 = vcombine.low %v1075, %v1615
        %v1722 = vcombine.low %v1080, %v1616
        %v1723 = vcombine.low %v1085, %v1617
        %v1724 = vcombine.low %v1618, %v1095
        %v1725 = vcombine.low %v1619, %v1100
        %v1726 = vcombine.low %v1620, %v1105
        %v1727 = vcombine.low %v1110, %v1622
        %v1728 = vcombine.low %v1115, %v1623
        %v1729 = vcombine.low %v1120, %v1624
        %v1730 = vcombine.low %v1625, %v1130
        %v1731 = vcombine.low %v1626, %v1135
        %v1732 = vcombine.low %v1627, %v1140
        %v1733 = vcombine.low %v1145, %v1629
        %v1734 = vcombine.low %v1150, %v1630
        %v1735 = vcombine.low %v1155, %v1631
        %v1736 = vcombine.low %v1632, %v1165
        %v1737 = vcombine.low %v1633, %v1170
        %v1738 = vcombine.low %v1634, %v1175
        %v1739 = vcombine.low %v1180, %v1636
        %v1740 = vcombine.low %v1185, %v1637
        %v1741 = vcombine.low %v1190, %v1638
        %v1742 = vcombine.low %v1639, %v1200
        %v1743 = vcombine.low %v1640, %v1205
        %v1744 = vcombine.low %v1641, %v1210
        %v1745 = vcombine.low %v1215, %v1643
        %v1746 = vcombine.low %v1220, %v1644
        %v1747 = vcombine.low %v1225, %v1645
        %v1748 = vcombine.low %v1646, %v1235
        %v1749 = vcombine.low %v1647, %v1240
        %v1750 = vcombine.low %v1648, %v1245
        %v1751 = vcombine.low %v1250, %v1650
        %v1752 = vcombine.low %v1255, %v1651
        %v1753 = vcombine.low %v1260, %v1652
        %v1754 = vcombine.low %v1653, %v1270
        %v1755 = vcombine.low %v1654, %v1275
        %v1756 = vcombine.low %v1655, %v1280
        %v1757 = vcombine.low %v1285, %v1657
        %v1758 = vcombine.low %v1290, %v1658
        %v1759 = vcombine.low %v1295, %v1659
        %v1760 = vcombine.low %v1660, %v1305
        %v1761 = vcombine.low %v1661, %v1310
        %v1762 = vcombine.low %v1662, %v1315
        %v1763 = vcombine.low %v1320, %v1664
        %v1764 = vcombine.low %v1325, %v1665
        %v1765 = vcombine.low %v1330, %v1666
        %v1766 = vcombine.low %v1667, %v1340
        %v1767 = vcombine.low %v1668, %v1345
        %v1768 = vcombine.low %v1669, %v1350
        %s1853 = scalar_lea.vmem [#allocation2], 32
        %1854 = vst.msk [vmem:[%s1853 + $0x1] sm:$0xff] %vm1353, %v1685
        %1855 = vst.msk [vmem:[%s1853 + $0x9] sm:$0xff] %vm1353, %v1686
        %1856 = vst.msk [vmem:[%s1853 + $0x11] sm:$0xff] %vm1353, %v1687
        %vm1857 = vcmask 257024
        %1858 = vst.msk [vmem:[%s1853 + $0x19] sm:$0xf] %vm1857, %v880
        %1859 = vst.msk [vmem:[%s1853 + $0x21] sm:$0xff] %vm1353, %v1688
        %1860 = vst.msk [vmem:[%s1853 + $0x29] sm:$0xff] %vm1353, %v1689
        %1861 = vst.msk [vmem:[%s1853 + $0x31] sm:$0xff] %vm1353, %v1690
        %1862 = vst.msk [vmem:[%s1853 + $0x39] sm:$0xf] %vm1857, %v1579
        %1863 = vst.msk [vmem:[%s1853 + $0x41] sm:$0xff] %vm1353, %v1691
        %1864 = vst.msk [vmem:[%s1853 + $0x49] sm:$0xff] %vm1353, %v1692
        %1865 = vst.msk [vmem:[%s1853 + $0x51] sm:$0xff] %vm1353, %v1693
        %1866 = vst.msk [vmem:[%s1853 + $0x59] sm:$0xf] %vm1857, %v915
        %1867 = vst.msk [vmem:[%s1853 + $0x61] sm:$0xff] %vm1353, %v1694
        %1868 = vst.msk [vmem:[%s1853 + $0x69] sm:$0xff] %vm1353, %v1695
        %1869 = vst.msk [vmem:[%s1853 + $0x71] sm:$0xff] %vm1353, %v1696
        %1870 = vst.msk [vmem:[%s1853 + $0x79] sm:$0xf] %vm1857, %v1586
        %1871 = vst.msk [vmem:[%s1853 + $0x81] sm:$0xff] %vm1353, %v1697
        %1872 = vst.msk [vmem:[%s1853 + $0x89] sm:$0xff] %vm1353, %v1698
        %1873 = vst.msk [vmem:[%s1853 + $0x91] sm:$0xff] %vm1353, %v1699
        %1874 = vst.msk [vmem:[%s1853 + $0x99] sm:$0xf] %vm1857, %v950
        %1875 = vst.msk [vmem:[%s1853 + $0xa1] sm:$0xff] %vm1353, %v1700
        %1876 = vst.msk [vmem:[%s1853 + $0xa9] sm:$0xff] %vm1353, %v1701
        %1877 = vst.msk [vmem:[%s1853 + $0xb1] sm:$0xff] %vm1353, %v1702
        %1878 = vst.msk [vmem:[%s1853 + $0xb9] sm:$0xf] %vm1857, %v1593
        %1879 = vst.msk [vmem:[%s1853 + $0xc1] sm:$0xff] %vm1353, %v1703
        %1880 = vst.msk [vmem:[%s1853 + $0xc9] sm:$0xff] %vm1353, %v1704
        %1881 = vst.msk [vmem:[%s1853 + $0xd1] sm:$0xff] %vm1353, %v1705
        %1882 = vst.msk [vmem:[%s1853 + $0xd9] sm:$0xf] %vm1857, %v985
        %1883 = vst.msk [vmem:[%s1853 + $0xe1] sm:$0xff] %vm1353, %v1706
        %1884 = vst.msk [vmem:[%s1853 + $0xe9] sm:$0xff] %vm1353, %v1707
        %1885 = vst.msk [vmem:[%s1853 + $0xf1] sm:$0xff] %vm1353, %v1708
        %1886 = vst.msk [vmem:[%s1853 + $0xf9] sm:$0xf] %vm1857, %v1600
        %1887 = vst.msk [vmem:[%s1853 + $0x101] sm:$0xff] %vm1353, %v1709
        %1888 = vst.msk [vmem:[%s1853 + $0x109] sm:$0xff] %vm1353, %v1710
        %1889 = vst.msk [vmem:[%s1853 + $0x111] sm:$0xff] %vm1353, %v1711
        %1890 = vst.msk [vmem:[%s1853 + $0x119] sm:$0xf] %vm1857, %v1020
        %1891 = vst.msk [vmem:[%s1853 + $0x121] sm:$0xff] %vm1353, %v1712
        %1892 = vst.msk [vmem:[%s1853 + $0x129] sm:$0xff] %vm1353, %v1713
        %1893 = vst.msk [vmem:[%s1853 + $0x131] sm:$0xff] %vm1353, %v1714
        %1894 = vst.msk [vmem:[%s1853 + $0x139] sm:$0xf] %vm1857, %v1607
        %1895 = vst.msk [vmem:[%s1853 + $0x141] sm:$0xff] %vm1353, %v1715
        %1896 = vst.msk [vmem:[%s1853 + $0x149] sm:$0xff] %vm1353, %v1716
        %1897 = vst.msk [vmem:[%s1853 + $0x151] sm:$0xff] %vm1353, %v1717
        %1898 = vst.msk [vmem:[%s1853 + $0x159] sm:$0xf] %vm1857, %v1055
        %1899 = vst.msk [vmem:[%s1853 + $0x161] sm:$0xff] %vm1353, %v1718
        %1900 = vst.msk [vmem:[%s1853 + $0x169] sm:$0xff] %vm1353, %v1719
        %1901 = vst.msk [vmem:[%s1853 + $0x171] sm:$0xff] %vm1353, %v1720
        %1902 = vst.msk [vmem:[%s1853 + $0x179] sm:$0xf] %vm1857, %v1614
        %1903 = vst.msk [vmem:[%s1853 + $0x181] sm:$0xff] %vm1353, %v1721
        %1904 = vst.msk [vmem:[%s1853 + $0x189] sm:$0xff] %vm1353, %v1722
        %1905 = vst.msk [vmem:[%s1853 + $0x191] sm:$0xff] %vm1353, %v1723
        %1906 = vst.msk [vmem:[%s1853 + $0x199] sm:$0xf] %vm1857, %v1090
        %1907 = vst.msk [vmem:[%s1853 + $0x1a1] sm:$0xff] %vm1353, %v1724
        %1908 = vst.msk [vmem:[%s1853 + $0x1a9] sm:$0xff] %vm1353, %v1725
        %1909 = vst.msk [vmem:[%s1853 + $0x1b1] sm:$0xff] %vm1353, %v1726
        %1910 = vst.msk [vmem:[%s1853 + $0x1b9] sm:$0xf] %vm1857, %v1621
        %1911 = vst.msk [vmem:[%s1853 + $0x1c1] sm:$0xff] %vm1353, %v1727
        %1912 = vst.msk [vmem:[%s1853 + $0x1c9] sm:$0xff] %vm1353, %v1728
        %1913 = vst.msk [vmem:[%s1853 + $0x1d1] sm:$0xff] %vm1353, %v1729
        %1914 = vst.msk [vmem:[%s1853 + $0x1d9] sm:$0xf] %vm1857, %v1125
        %1915 = vst.msk [vmem:[%s1853 + $0x1e1] sm:$0xff] %vm1353, %v1730
        %1916 = vst.msk [vmem:[%s1853 + $0x1e9] sm:$0xff] %vm1353, %v1731
        %1917 = vst.msk [vmem:[%s1853 + $0x1f1] sm:$0xff] %vm1353, %v1732
        %1918 = vst.msk [vmem:[%s1853 + $0x1f9] sm:$0xf] %vm1857, %v1628
        %1919 = vst.msk [vmem:[%s1853 + $0x201] sm:$0xff] %vm1353, %v1733
        %1920 = vst.msk [vmem:[%s1853 + $0x209] sm:$0xff] %vm1353, %v1734
        %1921 = vst.msk [vmem:[%s1853 + $0x211] sm:$0xff] %vm1353, %v1735
        %1922 = vst.msk [vmem:[%s1853 + $0x219] sm:$0xf] %vm1857, %v1160
        %1923 = vst.msk [vmem:[%s1853 + $0x221] sm:$0xff] %vm1353, %v1736
        %1924 = vst.msk [vmem:[%s1853 + $0x229] sm:$0xff] %vm1353, %v1737
        %1925 = vst.msk [vmem:[%s1853 + $0x231] sm:$0xff] %vm1353, %v1738
        %1926 = vst.msk [vmem:[%s1853 + $0x239] sm:$0xf] %vm1857, %v1635
        %1927 = vst.msk [vmem:[%s1853 + $0x241] sm:$0xff] %vm1353, %v1739
        %1928 = vst.msk [vmem:[%s1853 + $0x249] sm:$0xff] %vm1353, %v1740
        %1929 = vst.msk [vmem:[%s1853 + $0x251] sm:$0xff] %vm1353, %v1741
        %1930 = vst.msk [vmem:[%s1853 + $0x259] sm:$0xf] %vm1857, %v1195
        %1931 = vst.msk [vmem:[%s1853 + $0x261] sm:$0xff] %vm1353, %v1742
        %1932 = vst.msk [vmem:[%s1853 + $0x269] sm:$0xff] %vm1353, %v1743
        %1933 = vst.msk [vmem:[%s1853 + $0x271] sm:$0xff] %vm1353, %v1744
        %1934 = vst.msk [vmem:[%s1853 + $0x279] sm:$0xf] %vm1857, %v1642
        %1935 = vst.msk [vmem:[%s1853 + $0x281] sm:$0xff] %vm1353, %v1745
        %1936 = vst.msk [vmem:[%s1853 + $0x289] sm:$0xff] %vm1353, %v1746
        %1937 = vst.msk [vmem:[%s1853 + $0x291] sm:$0xff] %vm1353, %v1747
        %1938 = vst.msk [vmem:[%s1853 + $0x299] sm:$0xf] %vm1857, %v1230
        %1939 = vst.msk [vmem:[%s1853 + $0x2a1] sm:$0xff] %vm1353, %v1748
        %1940 = vst.msk [vmem:[%s1853 + $0x2a9] sm:$0xff] %vm1353, %v1749
        %1941 = vst.msk [vmem:[%s1853 + $0x2b1] sm:$0xff] %vm1353, %v1750
        %1942 = vst.msk [vmem:[%s1853 + $0x2b9] sm:$0xf] %vm1857, %v1649
        %1943 = vst.msk [vmem:[%s1853 + $0x2c1] sm:$0xff] %vm1353, %v1751
        %1944 = vst.msk [vmem:[%s1853 + $0x2c9] sm:$0xff] %vm1353, %v1752
        %1945 = vst.msk [vmem:[%s1853 + $0x2d1] sm:$0xff] %vm1353, %v1753
        %1946 = vst.msk [vmem:[%s1853 + $0x2d9] sm:$0xf] %vm1857, %v1265
        %1947 = vst.msk [vmem:[%s1853 + $0x2e1] sm:$0xff] %vm1353, %v1754
        %1948 = vst.msk [vmem:[%s1853 + $0x2e9] sm:$0xff] %vm1353, %v1755
        %1949 = vst.msk [vmem:[%s1853 + $0x2f1] sm:$0xff] %vm1353, %v1756
        %1950 = vst.msk [vmem:[%s1853 + $0x2f9] sm:$0xf] %vm1857, %v1656
        %1951 = vst.msk [vmem:[%s1853 + $0x301] sm:$0xff] %vm1353, %v1757
        %1952 = vst.msk [vmem:[%s1853 + $0x309] sm:$0xff] %vm1353, %v1758
        %1953 = vst.msk [vmem:[%s1853 + $0x311] sm:$0xff] %vm1353, %v1759
        %1954 = vst.msk [vmem:[%s1853 + $0x319] sm:$0xf] %vm1857, %v1300
        %1955 = vst.msk [vmem:[%s1853 + $0x321] sm:$0xff] %vm1353, %v1760
        %1956 = vst.msk [vmem:[%s1853 + $0x329] sm:$0xff] %vm1353, %v1761
        %1957 = vst.msk [vmem:[%s1853 + $0x331] sm:$0xff] %vm1353, %v1762
        %1958 = vst.msk [vmem:[%s1853 + $0x339] sm:$0xf] %vm1857, %v1663
        %1959 = vst.msk [vmem:[%s1853 + $0x341] sm:$0xff] %vm1353, %v1763
        %1960 = vst.msk [vmem:[%s1853 + $0x349] sm:$0xff] %vm1353, %v1764
        %1961 = vst.msk [vmem:[%s1853 + $0x351] sm:$0xff] %vm1353, %v1765
        %1962 = vst.msk [vmem:[%s1853 + $0x359] sm:$0xf] %vm1857, %v1335
        %1963 = vst.msk [vmem:[%s1853 + $0x361] sm:$0xff] %vm1353, %v1766
        %1964 = vst.msk [vmem:[%s1853 + $0x369] sm:$0xff] %vm1353, %v1767
        %1965 = vst.msk [vmem:[%s1853 + $0x371] sm:$0xff] %vm1353, %v1768
        %1966 = vst.msk [vmem:[%s1853 + $0x379] sm:$0xf] %vm1857, %v1670
        %v1967 = vld [vmem:[#allocation2] sm:$0xff]
        %v1968 = vld [vmem:[#allocation2 + $0x8] sm:$0xff]
        %v1969 = vld [vmem:[#allocation2 + $0x10] sm:$0xff]
        %v1970 = vld [vmem:[#allocation2 + $0x18] sm:$0xf]
        %v1971 = vld [vmem:[#allocation2 + $0x20] sm:$0xff]
        %v1972 = vld [vmem:[#allocation2 + $0x28] sm:$0xff]
        %v1973 = vld [vmem:[#allocation2 + $0x30] sm:$0xff]
        %v1974 = vld [vmem:[#allocation2 + $0x38] sm:$0xf]
        %v1975 = vld [vmem:[#allocation2 + $0x40] sm:$0xff]
        %v1976 = vld [vmem:[#allocation2 + $0x48] sm:$0xff]
        %v1977 = vld [vmem:[#allocation2 + $0x50] sm:$0xff]
        %v1978 = vld [vmem:[#allocation2 + $0x58] sm:$0xf]
        %v1979 = vld [vmem:[#allocation2 + $0x60] sm:$0xff]
        %v1980 = vld [vmem:[#allocation2 + $0x68] sm:$0xff]
        %v1981 = vld [vmem:[#allocation2 + $0x70] sm:$0xff]
        %v1982 = vld [vmem:[#allocation2 + $0x78] sm:$0xf]
        %v1983 = vld [vmem:[#allocation2 + $0x80] sm:$0xff]
        %v1984 = vld [vmem:[#allocation2 + $0x88] sm:$0xff]
        %v1985 = vld [vmem:[#allocation2 + $0x90] sm:$0xff]
        %v1986 = vld [vmem:[#allocation2 + $0x98] sm:$0xf]
        %v1987 = vld [vmem:[#allocation2 + $0xa0] sm:$0xff]
        %v1988 = vld [vmem:[#allocation2 + $0xa8] sm:$0xff]
        %v1989 = vld [vmem:[#allocation2 + $0xb0] sm:$0xff]
        %v1990 = vld [vmem:[#allocation2 + $0xb8] sm:$0xf]
        %v1991 = vld [vmem:[#allocation2 + $0xc0] sm:$0xff]
        %v1992 = vld [vmem:[#allocation2 + $0xc8] sm:$0xff]
        %v1993 = vld [vmem:[#allocation2 + $0xd0] sm:$0xff]
        %v1994 = vld [vmem:[#allocation2 + $0xd8] sm:$0xf]
        %v1995 = vld [vmem:[#allocation2 + $0xe0] sm:$0xff]
        %v1996 = vld [vmem:[#allocation2 + $0xe8] sm:$0xff]
        %v1997 = vld [vmem:[#allocation2 + $0xf0] sm:$0xff]
        %v1998 = vld [vmem:[#allocation2 + $0xf8] sm:$0xf]
        %v1999 = vld [vmem:[#allocation2 + $0x100] sm:$0xff]
        %v2000 = vld [vmem:[#allocation2 + $0x108] sm:$0xff]
        %v2001 = vld [vmem:[#allocation2 + $0x110] sm:$0xff]
        %v2002 = vld [vmem:[#allocation2 + $0x118] sm:$0xf]
        %v2003 = vld [vmem:[#allocation2 + $0x120] sm:$0xff]
        %v2004 = vld [vmem:[#allocation2 + $0x128] sm:$0xff]
        %v2005 = vld [vmem:[#allocation2 + $0x130] sm:$0xff]
        %v2006 = vld [vmem:[#allocation2 + $0x138] sm:$0xf]
        %v2007 = vld [vmem:[#allocation2 + $0x140] sm:$0xff]
        %v2008 = vld [vmem:[#allocation2 + $0x148] sm:$0xff]
        %v2009 = vld [vmem:[#allocation2 + $0x150] sm:$0xff]
        %v2010 = vld [vmem:[#allocation2 + $0x158] sm:$0xf]
        %v2011 = vld [vmem:[#allocation2 + $0x160] sm:$0xff]
        %v2012 = vld [vmem:[#allocation2 + $0x168] sm:$0xff]
        %v2013 = vld [vmem:[#allocation2 + $0x170] sm:$0xff]
        %v2014 = vld [vmem:[#allocation2 + $0x178] sm:$0xf]
        %v2015 = vld [vmem:[#allocation2 + $0x180] sm:$0xff]
        %v2016 = vld [vmem:[#allocation2 + $0x188] sm:$0xff]
        %v2017 = vld [vmem:[#allocation2 + $0x190] sm:$0xff]
        %v2018 = vld [vmem:[#allocation2 + $0x198] sm:$0xf]
        %v2019 = vld [vmem:[#allocation2 + $0x1a0] sm:$0xff]
        %v2020 = vld [vmem:[#allocation2 + $0x1a8] sm:$0xff]
        %v2021 = vld [vmem:[#allocation2 + $0x1b0] sm:$0xff]
        %v2022 = vld [vmem:[#allocation2 + $0x1b8] sm:$0xf]
        %v2023 = vld [vmem:[#allocation2 + $0x1c0] sm:$0xff]
        %v2024 = vld [vmem:[#allocation2 + $0x1c8] sm:$0xff]
        %v2025 = vld [vmem:[#allocation2 + $0x1d0] sm:$0xff]
        %v2026 = vld [vmem:[#allocation2 + $0x1d8] sm:$0xf]
        %v2027 = vld [vmem:[#allocation2 + $0x1e0] sm:$0xff]
        %v2028 = vld [vmem:[#allocation2 + $0x1e8] sm:$0xff]
        %v2029 = vld [vmem:[#allocation2 + $0x1f0] sm:$0xff]
        %v2030 = vld [vmem:[#allocation2 + $0x1f8] sm:$0xf]
        %v2031 = vld [vmem:[#allocation2 + $0x200] sm:$0xff]
        %v2032 = vld [vmem:[#allocation2 + $0x208] sm:$0xff]
        %v2033 = vld [vmem:[#allocation2 + $0x210] sm:$0xff]
        %v2034 = vld [vmem:[#allocation2 + $0x218] sm:$0xf]
        %v2035 = vld [vmem:[#allocation2 + $0x220] sm:$0xff]
        %v2036 = vld [vmem:[#allocation2 + $0x228] sm:$0xff]
        %v2037 = vld [vmem:[#allocation2 + $0x230] sm:$0xff]
        %v2038 = vld [vmem:[#allocation2 + $0x238] sm:$0xf]
        %v2039 = vld [vmem:[#allocation2 + $0x240] sm:$0xff]
        %v2040 = vld [vmem:[#allocation2 + $0x248] sm:$0xff]
        %v2041 = vld [vmem:[#allocation2 + $0x250] sm:$0xff]
        %v2042 = vld [vmem:[#allocation2 + $0x258] sm:$0xf]
        %v2043 = vld [vmem:[#allocation2 + $0x260] sm:$0xff]
        %v2044 = vld [vmem:[#allocation2 + $0x268] sm:$0xff]
        %v2045 = vld [vmem:[#allocation2 + $0x270] sm:$0xff]
        %v2046 = vld [vmem:[#allocation2 + $0x278] sm:$0xf]
        %v2047 = vld [vmem:[#allocation2 + $0x280] sm:$0xff]
        %v2048 = vld [vmem:[#allocation2 + $0x288] sm:$0xff]
        %v2049 = vld [vmem:[#allocation2 + $0x290] sm:$0xff]
        %v2050 = vld [vmem:[#allocation2 + $0x298] sm:$0xf]
        %v2051 = vld [vmem:[#allocation2 + $0x2a0] sm:$0xff]
        %v2052 = vld [vmem:[#allocation2 + $0x2a8] sm:$0xff]
        %v2053 = vld [vmem:[#allocation2 + $0x2b0] sm:$0xff]
        %v2054 = vld [vmem:[#allocation2 + $0x2b8] sm:$0xf]
        %v2055 = vld [vmem:[#allocation2 + $0x2c0] sm:$0xff]
        %v2056 = vld [vmem:[#allocation2 + $0x2c8] sm:$0xff]
        %v2057 = vld [vmem:[#allocation2 + $0x2d0] sm:$0xff]
        %v2058 = vld [vmem:[#allocation2 + $0x2d8] sm:$0xf]
        %v2059 = vld [vmem:[#allocation2 + $0x2e0] sm:$0xff]
        %v2060 = vld [vmem:[#allocation2 + $0x2e8] sm:$0xff]
        %v2061 = vld [vmem:[#allocation2 + $0x2f0] sm:$0xff]
        %v2062 = vld [vmem:[#allocation2 + $0x2f8] sm:$0xf]
        %v2063 = vld [vmem:[#allocation2 + $0x300] sm:$0xff]
        %v2064 = vld [vmem:[#allocation2 + $0x308] sm:$0xff]
        %v2065 = vld [vmem:[#allocation2 + $0x310] sm:$0xff]
        %v2066 = vld [vmem:[#allocation2 + $0x318] sm:$0xf]
        %v2067 = vld [vmem:[#allocation2 + $0x320] sm:$0xff]
        %v2068 = vld [vmem:[#allocation2 + $0x328] sm:$0xff]
        %v2069 = vld [vmem:[#allocation2 + $0x330] sm:$0xff]
        %v2070 = vld [vmem:[#allocation2 + $0x338] sm:$0xf]
        %v2071 = vld [vmem:[#allocation2 + $0x340] sm:$0xff]
        %v2072 = vld [vmem:[#allocation2 + $0x348] sm:$0xff]
        %v2073 = vld [vmem:[#allocation2 + $0x350] sm:$0xff]
        %v2074 = vld [vmem:[#allocation2 + $0x358] sm:$0xf]
        %v2075 = vld [vmem:[#allocation2 + $0x360] sm:$0xff]
        %v2076 = vld [vmem:[#allocation2 + $0x368] sm:$0xff]
        %v2077 = vld [vmem:[#allocation2 + $0x370] sm:$0xff]
        %v2078 = vld [vmem:[#allocation2 + $0x378] sm:$0xf]
        %v2079 = vld [vmem:[#allocation2 + $0x380] sm:$0xff]
        %v2080 = vld [vmem:[#allocation2 + $0x388] sm:$0xff]
        %v2081 = vld [vmem:[#allocation2 + $0x390] sm:$0xff]
        %v2082 = vld [vmem:[#allocation2 + $0x398] sm:$0xf]
        %v2083 = vld [vmem:[#allocation2 + $0x3a0] sm:$0xff]
        %v2084 = vld [vmem:[#allocation2 + $0x3a8] sm:$0xff]
        %v2085 = vld [vmem:[#allocation2 + $0x3b0] sm:$0xff]
        %v2086 = vld [vmem:[#allocation2 + $0x3b8] sm:$0xf]
        %v2087 = vld [vmem:[#allocation2 + $0x1] sm:$0xff]
        %v2088 = vld [vmem:[#allocation2 + $0x9] sm:$0xff]
        %v2089 = vld [vmem:[#allocation2 + $0x11] sm:$0xff]
        %v2090 = vld [vmem:[#allocation2 + $0x19] sm:$0xf]
        %v2091 = vld [vmem:[#allocation2 + $0x21] sm:$0xff]
        %v2092 = vld [vmem:[#allocation2 + $0x29] sm:$0xff]
        %v2093 = vld [vmem:[#allocation2 + $0x31] sm:$0xff]
        %v2094 = vld [vmem:[#allocation2 + $0x39] sm:$0xf]
        %v2095 = vld [vmem:[#allocation2 + $0x41] sm:$0xff]
        %v2096 = vld [vmem:[#allocation2 + $0x49] sm:$0xff]
        %v2097 = vld [vmem:[#allocation2 + $0x51] sm:$0xff]
        %v2098 = vld [vmem:[#allocation2 + $0x59] sm:$0xf]
        %v2099 = vld [vmem:[#allocation2 + $0x61] sm:$0xff]
        %v2100 = vld [vmem:[#allocation2 + $0x69] sm:$0xff]
        %v2101 = vld [vmem:[#allocation2 + $0x71] sm:$0xff]
        %v2102 = vld [vmem:[#allocation2 + $0x79] sm:$0xf]
        %v2103 = vld [vmem:[#allocation2 + $0x81] sm:$0xff]
        %v2104 = vld [vmem:[#allocation2 + $0x89] sm:$0xff]
        %v2105 = vld [vmem:[#allocation2 + $0x91] sm:$0xff]
        %v2106 = vld [vmem:[#allocation2 + $0x99] sm:$0xf]
        %v2107 = vld [vmem:[#allocation2 + $0xa1] sm:$0xff]
        %v2108 = vld [vmem:[#allocation2 + $0xa9] sm:$0xff]
        %v2109 = vld [vmem:[#allocation2 + $0xb1] sm:$0xff]
        %v2110 = vld [vmem:[#allocation2 + $0xb9] sm:$0xf]
        %v2111 = vld [vmem:[#allocation2 + $0xc1] sm:$0xff]
        %v2112 = vld [vmem:[#allocation2 + $0xc9] sm:$0xff]
        %v2113 = vld [vmem:[#allocation2 + $0xd1] sm:$0xff]
        %v2114 = vld [vmem:[#allocation2 + $0xd9] sm:$0xf]
        %v2115 = vld [vmem:[#allocation2 + $0xe1] sm:$0xff]
        %v2116 = vld [vmem:[#allocation2 + $0xe9] sm:$0xff]
        %v2117 = vld [vmem:[#allocation2 + $0xf1] sm:$0xff]
        %v2118 = vld [vmem:[#allocation2 + $0xf9] sm:$0xf]
        %v2119 = vld [vmem:[#allocation2 + $0x101] sm:$0xff]
        %v2120 = vld [vmem:[#allocation2 + $0x109] sm:$0xff]
        %v2121 = vld [vmem:[#allocation2 + $0x111] sm:$0xff]
        %v2122 = vld [vmem:[#allocation2 + $0x119] sm:$0xf]
        %v2123 = vld [vmem:[#allocation2 + $0x121] sm:$0xff]
        %v2124 = vld [vmem:[#allocation2 + $0x129] sm:$0xff]
        %v2125 = vld [vmem:[#allocation2 + $0x131] sm:$0xff]
        %v2126 = vld [vmem:[#allocation2 + $0x139] sm:$0xf]
        %v2127 = vld [vmem:[#allocation2 + $0x141] sm:$0xff]
        %v2128 = vld [vmem:[#allocation2 + $0x149] sm:$0xff]
        %v2129 = vld [vmem:[#allocation2 + $0x151] sm:$0xff]
        %v2130 = vld [vmem:[#allocation2 + $0x159] sm:$0xf]
        %v2131 = vld [vmem:[#allocation2 + $0x161] sm:$0xff]
        %v2132 = vld [vmem:[#allocation2 + $0x169] sm:$0xff]
        %v2133 = vld [vmem:[#allocation2 + $0x171] sm:$0xff]
        %v2134 = vld [vmem:[#allocation2 + $0x179] sm:$0xf]
        %v2135 = vld [vmem:[#allocation2 + $0x181] sm:$0xff]
        %v2136 = vld [vmem:[#allocation2 + $0x189] sm:$0xff]
        %v2137 = vld [vmem:[#allocation2 + $0x191] sm:$0xff]
        %v2138 = vld [vmem:[#allocation2 + $0x199] sm:$0xf]
        %v2139 = vld [vmem:[#allocation2 + $0x1a1] sm:$0xff]
        %v2140 = vld [vmem:[#allocation2 + $0x1a9] sm:$0xff]
        %v2141 = vld [vmem:[#allocation2 + $0x1b1] sm:$0xff]
        %v2142 = vld [vmem:[#allocation2 + $0x1b9] sm:$0xf]
        %v2143 = vld [vmem:[#allocation2 + $0x1c1] sm:$0xff]
        %v2144 = vld [vmem:[#allocation2 + $0x1c9] sm:$0xff]
        %v2145 = vld [vmem:[#allocation2 + $0x1d1] sm:$0xff]
        %v2146 = vld [vmem:[#allocation2 + $0x1d9] sm:$0xf]
        %v2147 = vld [vmem:[#allocation2 + $0x1e1] sm:$0xff]
        %v2148 = vld [vmem:[#allocation2 + $0x1e9] sm:$0xff]
        %v2149 = vld [vmem:[#allocation2 + $0x1f1] sm:$0xff]
        %v2150 = vld [vmem:[#allocation2 + $0x1f9] sm:$0xf]
        %v2151 = vld [vmem:[#allocation2 + $0x201] sm:$0xff]
        %v2152 = vld [vmem:[#allocation2 + $0x209] sm:$0xff]
        %v2153 = vld [vmem:[#allocation2 + $0x211] sm:$0xff]
        %v2154 = vld [vmem:[#allocation2 + $0x219] sm:$0xf]
        %v2155 = vld [vmem:[#allocation2 + $0x221] sm:$0xff]
        %v2156 = vld [vmem:[#allocation2 + $0x229] sm:$0xff]
        %v2157 = vld [vmem:[#allocation2 + $0x231] sm:$0xff]
        %v2158 = vld [vmem:[#allocation2 + $0x239] sm:$0xf]
        %v2159 = vld [vmem:[#allocation2 + $0x241] sm:$0xff]
        %v2160 = vld [vmem:[#allocation2 + $0x249] sm:$0xff]
        %v2161 = vld [vmem:[#allocation2 + $0x251] sm:$0xff]
        %v2162 = vld [vmem:[#allocation2 + $0x259] sm:$0xf]
        %v2163 = vld [vmem:[#allocation2 + $0x261] sm:$0xff]
        %v2164 = vld [vmem:[#allocation2 + $0x269] sm:$0xff]
        %v2165 = vld [vmem:[#allocation2 + $0x271] sm:$0xff]
        %v2166 = vld [vmem:[#allocation2 + $0x279] sm:$0xf]
        %v2167 = vld [vmem:[#allocation2 + $0x281] sm:$0xff]
        %v2168 = vld [vmem:[#allocation2 + $0x289] sm:$0xff]
        %v2169 = vld [vmem:[#allocation2 + $0x291] sm:$0xff]
        %v2170 = vld [vmem:[#allocation2 + $0x299] sm:$0xf]
        %v2171 = vld [vmem:[#allocation2 + $0x2a1] sm:$0xff]
        %v2172 = vld [vmem:[#allocation2 + $0x2a9] sm:$0xff]
        %v2173 = vld [vmem:[#allocation2 + $0x2b1] sm:$0xff]
        %v2174 = vld [vmem:[#allocation2 + $0x2b9] sm:$0xf]
        %v2175 = vld [vmem:[#allocation2 + $0x2c1] sm:$0xff]
        %v2176 = vld [vmem:[#allocation2 + $0x2c9] sm:$0xff]
        %v2177 = vld [vmem:[#allocation2 + $0x2d1] sm:$0xff]
        %v2178 = vld [vmem:[#allocation2 + $0x2d9] sm:$0xf]
        %v2179 = vld [vmem:[#allocation2 + $0x2e1] sm:$0xff]
        %v2180 = vld [vmem:[#allocation2 + $0x2e9] sm:$0xff]
        %v2181 = vld [vmem:[#allocation2 + $0x2f1] sm:$0xff]
        %v2182 = vld [vmem:[#allocation2 + $0x2f9] sm:$0xf]
        %v2183 = vld [vmem:[#allocation2 + $0x301] sm:$0xff]
        %v2184 = vld [vmem:[#allocation2 + $0x309] sm:$0xff]
        %v2185 = vld [vmem:[#allocation2 + $0x311] sm:$0xff]
        %v2186 = vld [vmem:[#allocation2 + $0x319] sm:$0xf]
        %v2187 = vld [vmem:[#allocation2 + $0x321] sm:$0xff]
        %v2188 = vld [vmem:[#allocation2 + $0x329] sm:$0xff]
        %v2189 = vld [vmem:[#allocation2 + $0x331] sm:$0xff]
        %v2190 = vld [vmem:[#allocation2 + $0x339] sm:$0xf]
        %v2191 = vld [vmem:[#allocation2 + $0x341] sm:$0xff]
        %v2192 = vld [vmem:[#allocation2 + $0x349] sm:$0xff]
        %v2193 = vld [vmem:[#allocation2 + $0x351] sm:$0xff]
        %v2194 = vld [vmem:[#allocation2 + $0x359] sm:$0xf]
        %v2195 = vld [vmem:[#allocation2 + $0x361] sm:$0xff]
        %v2196 = vld [vmem:[#allocation2 + $0x369] sm:$0xff]
        %v2197 = vld [vmem:[#allocation2 + $0x371] sm:$0xff]
        %v2198 = vld [vmem:[#allocation2 + $0x379] sm:$0xf]
        %v2199 = vld [vmem:[#allocation2 + $0x381] sm:$0xff]
        %v2200 = vld [vmem:[#allocation2 + $0x389] sm:$0xff]
        %v2201 = vld [vmem:[#allocation2 + $0x391] sm:$0xff]
        %v2202 = vld [vmem:[#allocation2 + $0x399] sm:$0xf]
        %v2203 = vld [vmem:[#allocation2 + $0x3a1] sm:$0xff]
        %v2204 = vld [vmem:[#allocation2 + $0x3a9] sm:$0xff]
        %v2205 = vld [vmem:[#allocation2 + $0x3b1] sm:$0xff]
        %v2206 = vld [vmem:[#allocation2 + $0x3b9] sm:$0xf]
        %v2207 = vadd.f32 %v1967, %v2087
        %v2208 = vadd.f32 %v1968, %v2088
        %v2209 = vadd.f32 %v1969, %v2089
        %v2210 = vadd.f32 %v1970, %v2090
        %v2211 = vadd.f32 %v1971, %v2091
        %v2212 = vadd.f32 %v1972, %v2092
        %v2213 = vadd.f32 %v1973, %v2093
        %v2214 = vadd.f32 %v1974, %v2094
        %v2215 = vadd.f32 %v1975, %v2095
        %v2216 = vadd.f32 %v1976, %v2096
        %v2217 = vadd.f32 %v1977, %v2097
        %v2218 = vadd.f32 %v1978, %v2098
        %v2219 = vadd.f32 %v1979, %v2099
        %v2220 = vadd.f32 %v1980, %v2100
        %v2221 = vadd.f32 %v1981, %v2101
        %v2222 = vadd.f32 %v1982, %v2102
        %v2223 = vadd.f32 %v1983, %v2103
        %v2224 = vadd.f32 %v1984, %v2104
        %v2225 = vadd.f32 %v1985, %v2105
        %v2226 = vadd.f32 %v1986, %v2106
        %v2227 = vadd.f32 %v1987, %v2107
        %v2228 = vadd.f32 %v1988, %v2108
        %v2229 = vadd.f32 %v1989, %v2109
        %v2230 = vadd.f32 %v1990, %v2110
        %v2231 = vadd.f32 %v1991, %v2111
        %v2232 = vadd.f32 %v1992, %v2112
        %v2233 = vadd.f32 %v1993, %v2113
        %v2234 = vadd.f32 %v1994, %v2114
        %v2235 = vadd.f32 %v1995, %v2115
        %v2236 = vadd.f32 %v1996, %v2116
        %v2237 = vadd.f32 %v1997, %v2117
        %v2238 = vadd.f32 %v1998, %v2118
        %v2239 = vadd.f32 %v1999, %v2119
        %v2240 = vadd.f32 %v2000, %v2120
        %v2241 = vadd.f32 %v2001, %v2121
        %v2242 = vadd.f32 %v2002, %v2122
        %v2243 = vadd.f32 %v2003, %v2123
        %v2244 = vadd.f32 %v2004, %v2124
        %v2245 = vadd.f32 %v2005, %v2125
        %v2246 = vadd.f32 %v2006, %v2126
        %v2247 = vadd.f32 %v2007, %v2127
        %v2248 = vadd.f32 %v2008, %v2128
        %v2249 = vadd.f32 %v2009, %v2129
        %v2250 = vadd.f32 %v2010, %v2130
        %v2251 = vadd.f32 %v2011, %v2131
        %v2252 = vadd.f32 %v2012, %v2132
        %v2253 = vadd.f32 %v2013, %v2133
        %v2254 = vadd.f32 %v2014, %v2134
        %v2255 = vadd.f32 %v2015, %v2135
        %v2256 = vadd.f32 %v2016, %v2136
        %v2257 = vadd.f32 %v2017, %v2137
        %v2258 = vadd.f32 %v2018, %v2138
        %v2259 = vadd.f32 %v2019, %v2139
        %v2260 = vadd.f32 %v2020, %v2140
        %v2261 = vadd.f32 %v2021, %v2141
        %v2262 = vadd.f32 %v2022, %v2142
        %v2263 = vadd.f32 %v2023, %v2143
        %v2264 = vadd.f32 %v2024, %v2144
        %v2265 = vadd.f32 %v2025, %v2145
        %v2266 = vadd.f32 %v2026, %v2146
        %v2267 = vadd.f32 %v2027, %v2147
        %v2268 = vadd.f32 %v2028, %v2148
        %v2269 = vadd.f32 %v2029, %v2149
        %v2270 = vadd.f32 %v2030, %v2150
        %v2271 = vadd.f32 %v2031, %v2151
        %v2272 = vadd.f32 %v2032, %v2152
        %v2273 = vadd.f32 %v2033, %v2153
        %v2274 = vadd.f32 %v2034, %v2154
        %v2275 = vadd.f32 %v2035, %v2155
        %v2276 = vadd.f32 %v2036, %v2156
        %v2277 = vadd.f32 %v2037, %v2157
        %v2278 = vadd.f32 %v2038, %v2158
        %v2279 = vadd.f32 %v2039, %v2159
        %v2280 = vadd.f32 %v2040, %v2160
        %v2281 = vadd.f32 %v2041, %v2161
        %v2282 = vadd.f32 %v2042, %v2162
        %v2283 = vadd.f32 %v2043, %v2163
        %v2284 = vadd.f32 %v2044, %v2164
        %v2285 = vadd.f32 %v2045, %v2165
        %v2286 = vadd.f32 %v2046, %v2166
        %v2287 = vadd.f32 %v2047, %v2167
        %v2288 = vadd.f32 %v2048, %v2168
        %v2289 = vadd.f32 %v2049, %v2169
        %v2290 = vadd.f32 %v2050, %v2170
        %v2291 = vadd.f32 %v2051, %v2171
        %v2292 = vadd.f32 %v2052, %v2172
        %v2293 = vadd.f32 %v2053, %v2173
        %v2294 = vadd.f32 %v2054, %v2174
        %v2295 = vadd.f32 %v2055, %v2175
        %v2296 = vadd.f32 %v2056, %v2176
        %v2297 = vadd.f32 %v2057, %v2177
        %v2298 = vadd.f32 %v2058, %v2178
        %v2299 = vadd.f32 %v2059, %v2179
        %v2300 = vadd.f32 %v2060, %v2180
        %v2301 = vadd.f32 %v2061, %v2181
        %v2302 = vadd.f32 %v2062, %v2182
        %v2303 = vadd.f32 %v2063, %v2183
        %v2304 = vadd.f32 %v2064, %v2184
        %v2305 = vadd.f32 %v2065, %v2185
        %v2306 = vadd.f32 %v2066, %v2186
        %v2307 = vadd.f32 %v2067, %v2187
        %v2308 = vadd.f32 %v2068, %v2188
        %v2309 = vadd.f32 %v2069, %v2189
        %v2310 = vadd.f32 %v2070, %v2190
        %v2311 = vadd.f32 %v2071, %v2191
        %v2312 = vadd.f32 %v2072, %v2192
        %v2313 = vadd.f32 %v2073, %v2193
        %v2314 = vadd.f32 %v2074, %v2194
        %v2315 = vadd.f32 %v2075, %v2195
        %v2316 = vadd.f32 %v2076, %v2196
        %v2317 = vadd.f32 %v2077, %v2197
        %v2318 = vadd.f32 %v2078, %v2198
        %v2319 = vadd.f32 %v2079, %v2199
        %v2320 = vadd.f32 %v2080, %v2200
        %v2321 = vadd.f32 %v2081, %v2201
        %v2322 = vadd.f32 %v2082, %v2202
        %v2323 = vadd.f32 %v2083, %v2203
        %v2324 = vadd.f32 %v2084, %v2204
        %v2325 = vadd.f32 %v2085, %v2205
        %v2326 = vadd.f32 %v2086, %v2206
        %v2327 = vld [vmem:[#allocation2 + $0x2] sm:$0xff]
        %v2328 = vld [vmem:[#allocation2 + $0xa] sm:$0xff]
        %v2329 = vld [vmem:[#allocation2 + $0x12] sm:$0xff]
        %v2330 = vld [vmem:[#allocation2 + $0x1a] sm:$0xf]
        %v2331 = vld [vmem:[#allocation2 + $0x22] sm:$0xff]
        %v2332 = vld [vmem:[#allocation2 + $0x2a] sm:$0xff]
        %v2333 = vld [vmem:[#allocation2 + $0x32] sm:$0xff]
        %v2334 = vld [vmem:[#allocation2 + $0x3a] sm:$0xf]
        %v2335 = vld [vmem:[#allocation2 + $0x42] sm:$0xff]
        %v2336 = vld [vmem:[#allocation2 + $0x4a] sm:$0xff]
        %v2337 = vld [vmem:[#allocation2 + $0x52] sm:$0xff]
        %v2338 = vld [vmem:[#allocation2 + $0x5a] sm:$0xf]
        %v2339 = vld [vmem:[#allocation2 + $0x62] sm:$0xff]
        %v2340 = vld [vmem:[#allocation2 + $0x6a] sm:$0xff]
        %v2341 = vld [vmem:[#allocation2 + $0x72] sm:$0xff]
        %v2342 = vld [vmem:[#allocation2 + $0x7a] sm:$0xf]
        %v2343 = vld [vmem:[#allocation2 + $0x82] sm:$0xff]
        %v2344 = vld [vmem:[#allocation2 + $0x8a] sm:$0xff]
        %v2345 = vld [vmem:[#allocation2 + $0x92] sm:$0xff]
        %v2346 = vld [vmem:[#allocation2 + $0x9a] sm:$0xf]
        %v2347 = vld [vmem:[#allocation2 + $0xa2] sm:$0xff]
        %v2348 = vld [vmem:[#allocation2 + $0xaa] sm:$0xff]
        %v2349 = vld [vmem:[#allocation2 + $0xb2] sm:$0xff]
        %v2350 = vld [vmem:[#allocation2 + $0xba] sm:$0xf]
        %v2351 = vld [vmem:[#allocation2 + $0xc2] sm:$0xff]
        %v2352 = vld [vmem:[#allocation2 + $0xca] sm:$0xff]
        %v2353 = vld [vmem:[#allocation2 + $0xd2] sm:$0xff]
        %v2354 = vld [vmem:[#allocation2 + $0xda] sm:$0xf]
        %v2355 = vld [vmem:[#allocation2 + $0xe2] sm:$0xff]
        %v2356 = vld [vmem:[#allocation2 + $0xea] sm:$0xff]
        %v2357 = vld [vmem:[#allocation2 + $0xf2] sm:$0xff]
        %v2358 = vld [vmem:[#allocation2 + $0xfa] sm:$0xf]
        %v2359 = vld [vmem:[#allocation2 + $0x102] sm:$0xff]
        %v2360 = vld [vmem:[#allocation2 + $0x10a] sm:$0xff]
        %v2361 = vld [vmem:[#allocation2 + $0x112] sm:$0xff]
        %v2362 = vld [vmem:[#allocation2 + $0x11a] sm:$0xf]
        %v2363 = vld [vmem:[#allocation2 + $0x122] sm:$0xff]
        %v2364 = vld [vmem:[#allocation2 + $0x12a] sm:$0xff]
        %v2365 = vld [vmem:[#allocation2 + $0x132] sm:$0xff]
        %v2366 = vld [vmem:[#allocation2 + $0x13a] sm:$0xf]
        %v2367 = vld [vmem:[#allocation2 + $0x142] sm:$0xff]
        %v2368 = vld [vmem:[#allocation2 + $0x14a] sm:$0xff]
        %v2369 = vld [vmem:[#allocation2 + $0x152] sm:$0xff]
        %v2370 = vld [vmem:[#allocation2 + $0x15a] sm:$0xf]
        %v2371 = vld [vmem:[#allocation2 + $0x162] sm:$0xff]
        %v2372 = vld [vmem:[#allocation2 + $0x16a] sm:$0xff]
        %v2373 = vld [vmem:[#allocation2 + $0x172] sm:$0xff]
        %v2374 = vld [vmem:[#allocation2 + $0x17a] sm:$0xf]
        %v2375 = vld [vmem:[#allocation2 + $0x182] sm:$0xff]
        %v2376 = vld [vmem:[#allocation2 + $0x18a] sm:$0xff]
        %v2377 = vld [vmem:[#allocation2 + $0x192] sm:$0xff]
        %v2378 = vld [vmem:[#allocation2 + $0x19a] sm:$0xf]
        %v2379 = vld [vmem:[#allocation2 + $0x1a2] sm:$0xff]
        %v2380 = vld [vmem:[#allocation2 + $0x1aa] sm:$0xff]
        %v2381 = vld [vmem:[#allocation2 + $0x1b2] sm:$0xff]
        %v2382 = vld [vmem:[#allocation2 + $0x1ba] sm:$0xf]
        %v2383 = vld [vmem:[#allocation2 + $0x1c2] sm:$0xff]
        %v2384 = vld [vmem:[#allocation2 + $0x1ca] sm:$0xff]
        %v2385 = vld [vmem:[#allocation2 + $0x1d2] sm:$0xff]
        %v2386 = vld [vmem:[#allocation2 + $0x1da] sm:$0xf]
        %v2387 = vld [vmem:[#allocation2 + $0x1e2] sm:$0xff]
        %v2388 = vld [vmem:[#allocation2 + $0x1ea] sm:$0xff]
        %v2389 = vld [vmem:[#allocation2 + $0x1f2] sm:$0xff]
        %v2390 = vld [vmem:[#allocation2 + $0x1fa] sm:$0xf]
        %v2391 = vld [vmem:[#allocation2 + $0x202] sm:$0xff]
        %v2392 = vld [vmem:[#allocation2 + $0x20a] sm:$0xff]
        %v2393 = vld [vmem:[#allocation2 + $0x212] sm:$0xff]
        %v2394 = vld [vmem:[#allocation2 + $0x21a] sm:$0xf]
        %v2395 = vld [vmem:[#allocation2 + $0x222] sm:$0xff]
        %v2396 = vld [vmem:[#allocation2 + $0x22a] sm:$0xff]
        %v2397 = vld [vmem:[#allocation2 + $0x232] sm:$0xff]
        %v2398 = vld [vmem:[#allocation2 + $0x23a] sm:$0xf]
        %v2399 = vld [vmem:[#allocation2 + $0x242] sm:$0xff]
        %v2400 = vld [vmem:[#allocation2 + $0x24a] sm:$0xff]
        %v2401 = vld [vmem:[#allocation2 + $0x252] sm:$0xff]
        %v2402 = vld [vmem:[#allocation2 + $0x25a] sm:$0xf]
        %v2403 = vld [vmem:[#allocation2 + $0x262] sm:$0xff]
        %v2404 = vld [vmem:[#allocation2 + $0x26a] sm:$0xff]
        %v2405 = vld [vmem:[#allocation2 + $0x272] sm:$0xff]
        %v2406 = vld [vmem:[#allocation2 + $0x27a] sm:$0xf]
        %v2407 = vld [vmem:[#allocation2 + $0x282] sm:$0xff]
        %v2408 = vld [vmem:[#allocation2 + $0x28a] sm:$0xff]
        %v2409 = vld [vmem:[#allocation2 + $0x292] sm:$0xff]
        %v2410 = vld [vmem:[#allocation2 + $0x29a] sm:$0xf]
        %v2411 = vld [vmem:[#allocation2 + $0x2a2] sm:$0xff]
        %v2412 = vld [vmem:[#allocation2 + $0x2aa] sm:$0xff]
        %v2413 = vld [vmem:[#allocation2 + $0x2b2] sm:$0xff]
        %v2414 = vld [vmem:[#allocation2 + $0x2ba] sm:$0xf]
        %v2415 = vld [vmem:[#allocation2 + $0x2c2] sm:$0xff]
        %v2416 = vld [vmem:[#allocation2 + $0x2ca] sm:$0xff]
        %v2417 = vld [vmem:[#allocation2 + $0x2d2] sm:$0xff]
        %v2418 = vld [vmem:[#allocation2 + $0x2da] sm:$0xf]
        %v2419 = vld [vmem:[#allocation2 + $0x2e2] sm:$0xff]
        %v2420 = vld [vmem:[#allocation2 + $0x2ea] sm:$0xff]
        %v2421 = vld [vmem:[#allocation2 + $0x2f2] sm:$0xff]
        %v2422 = vld [vmem:[#allocation2 + $0x2fa] sm:$0xf]
        %v2423 = vld [vmem:[#allocation2 + $0x302] sm:$0xff]
        %v2424 = vld [vmem:[#allocation2 + $0x30a] sm:$0xff]
        %v2425 = vld [vmem:[#allocation2 + $0x312] sm:$0xff]
        %v2426 = vld [vmem:[#allocation2 + $0x31a] sm:$0xf]
        %v2427 = vld [vmem:[#allocation2 + $0x322] sm:$0xff]
        %v2428 = vld [vmem:[#allocation2 + $0x32a] sm:$0xff]
        %v2429 = vld [vmem:[#allocation2 + $0x332] sm:$0xff]
        %v2430 = vld [vmem:[#allocation2 + $0x33a] sm:$0xf]
        %v2431 = vld [vmem:[#allocation2 + $0x342] sm:$0xff]
        %v2432 = vld [vmem:[#allocation2 + $0x34a] sm:$0xff]
        %v2433 = vld [vmem:[#allocation2 + $0x352] sm:$0xff]
        %v2434 = vld [vmem:[#allocation2 + $0x35a] sm:$0xf]
        %v2435 = vld [vmem:[#allocation2 + $0x362] sm:$0xff]
        %v2436 = vld [vmem:[#allocation2 + $0x36a] sm:$0xff]
        %v2437 = vld [vmem:[#allocation2 + $0x372] sm:$0xff]
        %v2438 = vld [vmem:[#allocation2 + $0x37a] sm:$0xf]
        %v2439 = vld [vmem:[#allocation2 + $0x382] sm:$0xff]
        %v2440 = vld [vmem:[#allocation2 + $0x38a] sm:$0xff]
        %v2441 = vld [vmem:[#allocation2 + $0x392] sm:$0xff]
        %v2442 = vld [vmem:[#allocation2 + $0x39a] sm:$0xf]
        %v2443 = vld [vmem:[#allocation2 + $0x3a2] sm:$0xff]
        %v2444 = vld [vmem:[#allocation2 + $0x3aa] sm:$0xff]
        %v2445 = vld [vmem:[#allocation2 + $0x3b2] sm:$0xff]
        %v2446 = vld [vmem:[#allocation2 + $0x3ba] sm:$0xf]
        %v2447 = vadd.f32 %v2207, %v2327
        %v2448 = vadd.f32 %v2208, %v2328
        %v2449 = vadd.f32 %v2209, %v2329
        %v2450 = vadd.f32 %v2210, %v2330
        %v2451 = vadd.f32 %v2211, %v2331
        %v2452 = vadd.f32 %v2212, %v2332
        %v2453 = vadd.f32 %v2213, %v2333
        %v2454 = vadd.f32 %v2214, %v2334
        %v2455 = vadd.f32 %v2215, %v2335
        %v2456 = vadd.f32 %v2216, %v2336
        %v2457 = vadd.f32 %v2217, %v2337
        %v2458 = vadd.f32 %v2218, %v2338
        %v2459 = vadd.f32 %v2219, %v2339
        %v2460 = vadd.f32 %v2220, %v2340
        %v2461 = vadd.f32 %v2221, %v2341
        %v2462 = vadd.f32 %v2222, %v2342
        %v2463 = vadd.f32 %v2223, %v2343
        %v2464 = vadd.f32 %v2224, %v2344
        %v2465 = vadd.f32 %v2225, %v2345
        %v2466 = vadd.f32 %v2226, %v2346
        %v2467 = vadd.f32 %v2227, %v2347
        %v2468 = vadd.f32 %v2228, %v2348
        %v2469 = vadd.f32 %v2229, %v2349
        %v2470 = vadd.f32 %v2230, %v2350
        %v2471 = vadd.f32 %v2231, %v2351
        %v2472 = vadd.f32 %v2232, %v2352
        %v2473 = vadd.f32 %v2233, %v2353
        %v2474 = vadd.f32 %v2234, %v2354
        %v2475 = vadd.f32 %v2235, %v2355
        %v2476 = vadd.f32 %v2236, %v2356
        %v2477 = vadd.f32 %v2237, %v2357
        %v2478 = vadd.f32 %v2238, %v2358
        %v2479 = vadd.f32 %v2239, %v2359
        %v2480 = vadd.f32 %v2240, %v2360
        %v2481 = vadd.f32 %v2241, %v2361
        %v2482 = vadd.f32 %v2242, %v2362
        %v2483 = vadd.f32 %v2243, %v2363
        %v2484 = vadd.f32 %v2244, %v2364
        %v2485 = vadd.f32 %v2245, %v2365
        %v2486 = vadd.f32 %v2246, %v2366
        %v2487 = vadd.f32 %v2247, %v2367
        %v2488 = vadd.f32 %v2248, %v2368
        %v2489 = vadd.f32 %v2249, %v2369
        %v2490 = vadd.f32 %v2250, %v2370
        %v2491 = vadd.f32 %v2251, %v2371
        %v2492 = vadd.f32 %v2252, %v2372
        %v2493 = vadd.f32 %v2253, %v2373
        %v2494 = vadd.f32 %v2254, %v2374
        %v2495 = vadd.f32 %v2255, %v2375
        %v2496 = vadd.f32 %v2256, %v2376
        %v2497 = vadd.f32 %v2257, %v2377
        %v2498 = vadd.f32 %v2258, %v2378
        %v2499 = vadd.f32 %v2259, %v2379
        %v2500 = vadd.f32 %v2260, %v2380
        %v2501 = vadd.f32 %v2261, %v2381
        %v2502 = vadd.f32 %v2262, %v2382
        %v2503 = vadd.f32 %v2263, %v2383
        %v2504 = vadd.f32 %v2264, %v2384
        %v2505 = vadd.f32 %v2265, %v2385
        %v2506 = vadd.f32 %v2266, %v2386
        %v2507 = vadd.f32 %v2267, %v2387
        %v2508 = vadd.f32 %v2268, %v2388
        %v2509 = vadd.f32 %v2269, %v2389
        %v2510 = vadd.f32 %v2270, %v2390
        %v2511 = vadd.f32 %v2271, %v2391
        %v2512 = vadd.f32 %v2272, %v2392
        %v2513 = vadd.f32 %v2273, %v2393
        %v2514 = vadd.f32 %v2274, %v2394
        %v2515 = vadd.f32 %v2275, %v2395
        %v2516 = vadd.f32 %v2276, %v2396
        %v2517 = vadd.f32 %v2277, %v2397
        %v2518 = vadd.f32 %v2278, %v2398
        %v2519 = vadd.f32 %v2279, %v2399
        %v2520 = vadd.f32 %v2280, %v2400
        %v2521 = vadd.f32 %v2281, %v2401
        %v2522 = vadd.f32 %v2282, %v2402
        %v2523 = vadd.f32 %v2283, %v2403
        %v2524 = vadd.f32 %v2284, %v2404
        %v2525 = vadd.f32 %v2285, %v2405
        %v2526 = vadd.f32 %v2286, %v2406
        %v2527 = vadd.f32 %v2287, %v2407
        %v2528 = vadd.f32 %v2288, %v2408
        %v2529 = vadd.f32 %v2289, %v2409
        %v2530 = vadd.f32 %v2290, %v2410
        %v2531 = vadd.f32 %v2291, %v2411
        %v2532 = vadd.f32 %v2292, %v2412
        %v2533 = vadd.f32 %v2293, %v2413
        %v2534 = vadd.f32 %v2294, %v2414
        %v2535 = vadd.f32 %v2295, %v2415
        %v2536 = vadd.f32 %v2296, %v2416
        %v2537 = vadd.f32 %v2297, %v2417
        %v2538 = vadd.f32 %v2298, %v2418
        %v2539 = vadd.f32 %v2299, %v2419
        %v2540 = vadd.f32 %v2300, %v2420
        %v2541 = vadd.f32 %v2301, %v2421
        %v2542 = vadd.f32 %v2302, %v2422
        %v2543 = vadd.f32 %v2303, %v2423
        %v2544 = vadd.f32 %v2304, %v2424
        %v2545 = vadd.f32 %v2305, %v2425
        %v2546 = vadd.f32 %v2306, %v2426
        %v2547 = vadd.f32 %v2307, %v2427
        %v2548 = vadd.f32 %v2308, %v2428
        %v2549 = vadd.f32 %v2309, %v2429
        %v2550 = vadd.f32 %v2310, %v2430
        %v2551 = vadd.f32 %v2311, %v2431
        %v2552 = vadd.f32 %v2312, %v2432
        %v2553 = vadd.f32 %v2313, %v2433
        %v2554 = vadd.f32 %v2314, %v2434
        %v2555 = vadd.f32 %v2315, %v2435
        %v2556 = vadd.f32 %v2316, %v2436
        %v2557 = vadd.f32 %v2317, %v2437
        %v2558 = vadd.f32 %v2318, %v2438
        %v2559 = vadd.f32 %v2319, %v2439
        %v2560 = vadd.f32 %v2320, %v2440
        %v2561 = vadd.f32 %v2321, %v2441
        %v2562 = vadd.f32 %v2322, %v2442
        %v2563 = vadd.f32 %v2323, %v2443
        %v2564 = vadd.f32 %v2324, %v2444
        %v2565 = vadd.f32 %v2325, %v2445
        %v2566 = vadd.f32 %v2326, %v2446
        %v2567 = vadd.f32 %v2447, %v2451
        %v2568 = vadd.f32 %v2448, %v2452
        %v2569 = vadd.f32 %v2449, %v2453
        %v2570 = vadd.f32 %v2450, %v2454
        %v2571 = vadd.f32 %v2451, %v2455
        %v2572 = vadd.f32 %v2452, %v2456
        %v2573 = vadd.f32 %v2453, %v2457
        %v2574 = vadd.f32 %v2454, %v2458
        %v2575 = vadd.f32 %v2455, %v2459
        %v2576 = vadd.f32 %v2456, %v2460
        %v2577 = vadd.f32 %v2457, %v2461
        %v2578 = vadd.f32 %v2458, %v2462
        %v2579 = vadd.f32 %v2459, %v2463
        %v2580 = vadd.f32 %v2460, %v2464
        %v2581 = vadd.f32 %v2461, %v2465
        %v2582 = vadd.f32 %v2462, %v2466
        %v2583 = vadd.f32 %v2463, %v2467
        %v2584 = vadd.f32 %v2464, %v2468
        %v2585 = vadd.f32 %v2465, %v2469
        %v2586 = vadd.f32 %v2466, %v2470
        %v2587 = vadd.f32 %v2467, %v2471
        %v2588 = vadd.f32 %v2468, %v2472
        %v2589 = vadd.f32 %v2469, %v2473
        %v2590 = vadd.f32 %v2470, %v2474
        %v2591 = vadd.f32 %v2471, %v2475
        %v2592 = vadd.f32 %v2472, %v2476
        %v2593 = vadd.f32 %v2473, %v2477
        %v2594 = vadd.f32 %v2474, %v2478
        %v2595 = vadd.f32 %v2475, %v2479
        %v2596 = vadd.f32 %v2476, %v2480
        %v2597 = vadd.f32 %v2477, %v2481
        %v2598 = vadd.f32 %v2478, %v2482
        %v2599 = vadd.f32 %v2479, %v2483
        %v2600 = vadd.f32 %v2480, %v2484
        %v2601 = vadd.f32 %v2481, %v2485
        %v2602 = vadd.f32 %v2482, %v2486
        %v2603 = vadd.f32 %v2483, %v2487
        %v2604 = vadd.f32 %v2484, %v2488
        %v2605 = vadd.f32 %v2485, %v2489
        %v2606 = vadd.f32 %v2486, %v2490
        %v2607 = vadd.f32 %v2487, %v2491
        %v2608 = vadd.f32 %v2488, %v2492
        %v2609 = vadd.f32 %v2489, %v2493
        %v2610 = vadd.f32 %v2490, %v2494
        %v2611 = vadd.f32 %v2491, %v2495
        %v2612 = vadd.f32 %v2492, %v2496
        %v2613 = vadd.f32 %v2493, %v2497
        %v2614 = vadd.f32 %v2494, %v2498
        %v2615 = vadd.f32 %v2495, %v2499
        %v2616 = vadd.f32 %v2496, %v2500
        %v2617 = vadd.f32 %v2497, %v2501
        %v2618 = vadd.f32 %v2498, %v2502
        %v2619 = vadd.f32 %v2499, %v2503
        %v2620 = vadd.f32 %v2500, %v2504
        %v2621 = vadd.f32 %v2501, %v2505
        %v2622 = vadd.f32 %v2502, %v2506
        %v2623 = vadd.f32 %v2503, %v2507
        %v2624 = vadd.f32 %v2504, %v2508
        %v2625 = vadd.f32 %v2505, %v2509
        %v2626 = vadd.f32 %v2506, %v2510
        %v2627 = vadd.f32 %v2507, %v2511
        %v2628 = vadd.f32 %v2508, %v2512
        %v2629 = vadd.f32 %v2509, %v2513
        %v2630 = vadd.f32 %v2510, %v2514
        %v2631 = vadd.f32 %v2511, %v2515
        %v2632 = vadd.f32 %v2512, %v2516
        %v2633 = vadd.f32 %v2513, %v2517
        %v2634 = vadd.f32 %v2514, %v2518
        %v2635 = vadd.f32 %v2515, %v2519
        %v2636 = vadd.f32 %v2516, %v2520
        %v2637 = vadd.f32 %v2517, %v2521
        %v2638 = vadd.f32 %v2518, %v2522
        %v2639 = vadd.f32 %v2519, %v2523
        %v2640 = vadd.f32 %v2520, %v2524
        %v2641 = vadd.f32 %v2521, %v2525
        %v2642 = vadd.f32 %v2522, %v2526
        %v2643 = vadd.f32 %v2523, %v2527
        %v2644 = vadd.f32 %v2524, %v2528
        %v2645 = vadd.f32 %v2525, %v2529
        %v2646 = vadd.f32 %v2526, %v2530
        %v2647 = vadd.f32 %v2527, %v2531
        %v2648 = vadd.f32 %v2528, %v2532
        %v2649 = vadd.f32 %v2529, %v2533
        %v2650 = vadd.f32 %v2530, %v2534
        %v2651 = vadd.f32 %v2531, %v2535
        %v2652 = vadd.f32 %v2532, %v2536
        %v2653 = vadd.f32 %v2533, %v2537
        %v2654 = vadd.f32 %v2534, %v2538
        %v2655 = vadd.f32 %v2535, %v2539
        %v2656 = vadd.f32 %v2536, %v2540
        %v2657 = vadd.f32 %v2537, %v2541
        %v2658 = vadd.f32 %v2538, %v2542
        %v2659 = vadd.f32 %v2539, %v2543
        %v2660 = vadd.f32 %v2540, %v2544
        %v2661 = vadd.f32 %v2541, %v2545
        %v2662 = vadd.f32 %v2542, %v2546
        %v2663 = vadd.f32 %v2543, %v2547
        %v2664 = vadd.f32 %v2544, %v2548
        %v2665 = vadd.f32 %v2545, %v2549
        %v2666 = vadd.f32 %v2546, %v2550
        %v2667 = vadd.f32 %v2547, %v2551
        %v2668 = vadd.f32 %v2548, %v2552
        %v2669 = vadd.f32 %v2549, %v2553
        %v2670 = vadd.f32 %v2550, %v2554
        %v2671 = vadd.f32 %v2551, %v2555
        %v2672 = vadd.f32 %v2552, %v2556
        %v2673 = vadd.f32 %v2553, %v2557
        %v2674 = vadd.f32 %v2554, %v2558
        %v2675 = vadd.f32 %v2555, %v2559
        %v2676 = vadd.f32 %v2556, %v2560
        %v2677 = vadd.f32 %v2557, %v2561
        %v2678 = vadd.f32 %v2558, %v2562
        %v2679 = vadd.f32 %v2567, %v2455
        %v2680 = vadd.f32 %v2568, %v2456
        %v2681 = vadd.f32 %v2569, %v2457
        %v2682 = vadd.f32 %v2570, %v2458
        %v2683 = vadd.f32 %v2571, %v2459
        %v2684 = vadd.f32 %v2572, %v2460
        %v2685 = vadd.f32 %v2573, %v2461
        %v2686 = vadd.f32 %v2574, %v2462
        %v2687 = vadd.f32 %v2575, %v2463
        %v2688 = vadd.f32 %v2576, %v2464
        %v2689 = vadd.f32 %v2577, %v2465
        %v2690 = vadd.f32 %v2578, %v2466
        %v2691 = vadd.f32 %v2579, %v2467
        %v2692 = vadd.f32 %v2580, %v2468
        %v2693 = vadd.f32 %v2581, %v2469
        %v2694 = vadd.f32 %v2582, %v2470
        %v2695 = vadd.f32 %v2583, %v2471
        %v2696 = vadd.f32 %v2584, %v2472
        %v2697 = vadd.f32 %v2585, %v2473
        %v2698 = vadd.f32 %v2586, %v2474
        %v2699 = vadd.f32 %v2587, %v2475
        %v2700 = vadd.f32 %v2588, %v2476
        %v2701 = vadd.f32 %v2589, %v2477
        %v2702 = vadd.f32 %v2590, %v2478
        %v2703 = vadd.f32 %v2591, %v2479
        %v2704 = vadd.f32 %v2592, %v2480
        %v2705 = vadd.f32 %v2593, %v2481
        %v2706 = vadd.f32 %v2594, %v2482
        %v2707 = vadd.f32 %v2595, %v2483
        %v2708 = vadd.f32 %v2596, %v2484
        %v2709 = vadd.f32 %v2597, %v2485
        %v2710 = vadd.f32 %v2598, %v2486
        %v2711 = vadd.f32 %v2599, %v2487
        %v2712 = vadd.f32 %v2600, %v2488
        %v2713 = vadd.f32 %v2601, %v2489
        %v2714 = vadd.f32 %v2602, %v2490
        %v2715 = vadd.f32 %v2603, %v2491
        %v2716 = vadd.f32 %v2604, %v2492
        %v2717 = vadd.f32 %v2605, %v2493
        %v2718 = vadd.f32 %v2606, %v2494
        %v2719 = vadd.f32 %v2607, %v2495
        %v2720 = vadd.f32 %v2608, %v2496
        %v2721 = vadd.f32 %v2609, %v2497
        %v2722 = vadd.f32 %v2610, %v2498
        %v2723 = vadd.f32 %v2611, %v2499
        %v2724 = vadd.f32 %v2612, %v2500
        %v2725 = vadd.f32 %v2613, %v2501
        %v2726 = vadd.f32 %v2614, %v2502
        %v2727 = vadd.f32 %v2615, %v2503
        %v2728 = vadd.f32 %v2616, %v2504
        %v2729 = vadd.f32 %v2617, %v2505
        %v2730 = vadd.f32 %v2618, %v2506
        %v2731 = vadd.f32 %v2619, %v2507
        %v2732 = vadd.f32 %v2620, %v2508
        %v2733 = vadd.f32 %v2621, %v2509
        %v2734 = vadd.f32 %v2622, %v2510
        %v2735 = vadd.f32 %v2623, %v2511
        %v2736 = vadd.f32 %v2624, %v2512
        %v2737 = vadd.f32 %v2625, %v2513
        %v2738 = vadd.f32 %v2626, %v2514
        %v2739 = vadd.f32 %v2627, %v2515
        %v2740 = vadd.f32 %v2628, %v2516
        %v2741 = vadd.f32 %v2629, %v2517
        %v2742 = vadd.f32 %v2630, %v2518
        %v2743 = vadd.f32 %v2631, %v2519
        %v2744 = vadd.f32 %v2632, %v2520
        %v2745 = vadd.f32 %v2633, %v2521
        %v2746 = vadd.f32 %v2634, %v2522
        %v2747 = vadd.f32 %v2635, %v2523
        %v2748 = vadd.f32 %v2636, %v2524
        %v2749 = vadd.f32 %v2637, %v2525
        %v2750 = vadd.f32 %v2638, %v2526
        %v2751 = vadd.f32 %v2639, %v2527
        %v2752 = vadd.f32 %v2640, %v2528
        %v2753 = vadd.f32 %v2641, %v2529
        %v2754 = vadd.f32 %v2642, %v2530
        %v2755 = vadd.f32 %v2643, %v2531
        %v2756 = vadd.f32 %v2644, %v2532
        %v2757 = vadd.f32 %v2645, %v2533
        %v2758 = vadd.f32 %v2646, %v2534
        %v2759 = vadd.f32 %v2647, %v2535
        %v2760 = vadd.f32 %v2648, %v2536
        %v2761 = vadd.f32 %v2649, %v2537
        %v2762 = vadd.f32 %v2650, %v2538
        %v2763 = vadd.f32 %v2651, %v2539
        %v2764 = vadd.f32 %v2652, %v2540
        %v2765 = vadd.f32 %v2653, %v2541
        %v2766 = vadd.f32 %v2654, %v2542
        %v2767 = vadd.f32 %v2655, %v2543
        %v2768 = vadd.f32 %v2656, %v2544
        %v2769 = vadd.f32 %v2657, %v2545
        %v2770 = vadd.f32 %v2658, %v2546
        %v2771 = vadd.f32 %v2659, %v2547
        %v2772 = vadd.f32 %v2660, %v2548
        %v2773 = vadd.f32 %v2661, %v2549
        %v2774 = vadd.f32 %v2662, %v2550
        %v2775 = vadd.f32 %v2663, %v2551
        %v2776 = vadd.f32 %v2664, %v2552
        %v2777 = vadd.f32 %v2665, %v2553
        %v2778 = vadd.f32 %v2666, %v2554
        %v2779 = vadd.f32 %v2667, %v2555
        %v2780 = vadd.f32 %v2668, %v2556
        %v2781 = vadd.f32 %v2669, %v2557
        %v2782 = vadd.f32 %v2670, %v2558
        %v2783 = vadd.f32 %v2671, %v2559
        %v2784 = vadd.f32 %v2672, %v2560
        %v2785 = vadd.f32 %v2673, %v2561
        %v2786 = vadd.f32 %v2674, %v2562
        %v2787 = vadd.f32 %v2675, %v2563
        %v2788 = vadd.f32 %v2676, %v2564
        %v2789 = vadd.f32 %v2677, %v2565
        %v2790 = vadd.f32 %v2678, %v2566
        %v2791 = vmul.f32 %v2679, 0.09329853
        %v2792 = vmul.f32 %v2680, 0.09329853
        %v2793 = vmul.f32 %v2681, 0.09329853
        %v2794 = vmul.f32 %v2682, 0.09329853
        %v2795 = vmul.f32 %v2683, 0.09329853
        %v2796 = vmul.f32 %v2684, 0.09329853
        %v2797 = vmul.f32 %v2685, 0.09329853
        %v2798 = vmul.f32 %v2686, 0.09329853
        %v2799 = vmul.f32 %v2687, 0.09329853
        %v2800 = vmul.f32 %v2688, 0.09329853
        %v2801 = vmul.f32 %v2689, 0.09329853
        %v2802 = vmul.f32 %v2690, 0.09329853
        %v2803 = vmul.f32 %v2691, 0.09329853
        %v2804 = vmul.f32 %v2692, 0.09329853
        %v2805 = vmul.f32 %v2693, 0.09329853
        %v2806 = vmul.f32 %v2694, 0.09329853
        %v2807 = vmul.f32 %v2695, 0.09329853
        %v2808 = vmul.f32 %v2696, 0.09329853
        %v2809 = vmul.f32 %v2697, 0.09329853
        %v2810 = vmul.f32 %v2698, 0.09329853
        %v2811 = vmul.f32 %v2699, 0.09329853
        %v2812 = vmul.f32 %v2700, 0.09329853
        %v2813 = vmul.f32 %v2701, 0.09329853
        %v2814 = vmul.f32 %v2702, 0.09329853
        %v2815 = vmul.f32 %v2703, 0.09329853
        %v2816 = vmul.f32 %v2704, 0.09329853
        %v2817 = vmul.f32 %v2705, 0.09329853
        %v2818 = vmul.f32 %v2706, 0.09329853
        %v2819 = vmul.f32 %v2707, 0.09329853
        %v2820 = vmul.f32 %v2708, 0.09329853
        %v2821 = vmul.f32 %v2709, 0.09329853
        %v2822 = vmul.f32 %v2710, 0.09329853
        %v2823 = vmul.f32 %v2711, 0.09329853
        %v2824 = vmul.f32 %v2712, 0.09329853
        %v2825 = vmul.f32 %v2713, 0.09329853
        %v2826 = vmul.f32 %v2714, 0.09329853
        %v2827 = vmul.f32 %v2715, 0.09329853
        %v2828 = vmul.f32 %v2716, 0.09329853
        %v2829 = vmul.f32 %v2717, 0.09329853
        %v2830 = vmul.f32 %v2718, 0.09329853
        %v2831 = vmul.f32 %v2719, 0.09329853
        %v2832 = vmul.f32 %v2720, 0.09329853
        %v2833 = vmul.f32 %v2721, 0.09329853
        %v2834 = vmul.f32 %v2722, 0.09329853
        %v2835 = vmul.f32 %v2723, 0.09329853
        %v2836 = vmul.f32 %v2724, 0.09329853
        %v2837 = vmul.f32 %v2725, 0.09329853
        %v2838 = vmul.f32 %v2726, 0.09329853
        %v2839 = vmul.f32 %v2727, 0.09329853
        %v2840 = vmul.f32 %v2728, 0.09329853
        %v2841 = vmul.f32 %v2729, 0.09329853
        %v2842 = vmul.f32 %v2730, 0.09329853
        %v2843 = vmul.f32 %v2731, 0.09329853
        %v2844 = vmul.f32 %v2732, 0.09329853
        %v2845 = vmul.f32 %v2733, 0.09329853
        %v2846 = vmul.f32 %v2734, 0.09329853
        %v2847 = vmul.f32 %v2735, 0.09329853
        %v2848 = vmul.f32 %v2736, 0.09329853
        %v2849 = vmul.f32 %v2737, 0.09329853
        %v2850 = vmul.f32 %v2738, 0.09329853
        %v2851 = vmul.f32 %v2739, 0.09329853
        %v2852 = vmul.f32 %v2740, 0.09329853
        %v2853 = vmul.f32 %v2741, 0.09329853
        %v2854 = vmul.f32 %v2742, 0.09329853
        %v2855 = vmul.f32 %v2743, 0.09329853
        %v2856 = vmul.f32 %v2744, 0.09329853
        %v2857 = vmul.f32 %v2745, 0.09329853
        %v2858 = vmul.f32 %v2746, 0.09329853
        %v2859 = vmul.f32 %v2747, 0.09329853
        %v2860 = vmul.f32 %v2748, 0.09329853
        %v2861 = vmul.f32 %v2749, 0.09329853
        %v2862 = vmul.f32 %v2750, 0.09329853
        %v2863 = vmul.f32 %v2751, 0.09329853
        %v2864 = vmul.f32 %v2752, 0.09329853
        %v2865 = vmul.f32 %v2753, 0.09329853
        %v2866 = vmul.f32 %v2754, 0.09329853
        %v2867 = vmul.f32 %v2755, 0.09329853
        %v2868 = vmul.f32 %v2756, 0.09329853
        %v2869 = vmul.f32 %v2757, 0.09329853
        %v2870 = vmul.f32 %v2758, 0.09329853
        %v2871 = vmul.f32 %v2759, 0.09329853
        %v2872 = vmul.f32 %v2760, 0.09329853
        %v2873 = vmul.f32 %v2761, 0.09329853
        %v2874 = vmul.f32 %v2762, 0.09329853
        %v2875 = vmul.f32 %v2763, 0.09329853
        %v2876 = vmul.f32 %v2764, 0.09329853
        %v2877 = vmul.f32 %v2765, 0.09329853
        %v2878 = vmul.f32 %v2766, 0.09329853
        %v2879 = vmul.f32 %v2767, 0.09329853
        %v2880 = vmul.f32 %v2768, 0.09329853
        %v2881 = vmul.f32 %v2769, 0.09329853
        %v2882 = vmul.f32 %v2770, 0.09329853
        %v2883 = vmul.f32 %v2771, 0.09329853
        %v2884 = vmul.f32 %v2772, 0.09329853
        %v2885 = vmul.f32 %v2773, 0.09329853
        %v2886 = vmul.f32 %v2774, 0.09329853
        %v2887 = vmul.f32 %v2775, 0.09329853
        %v2888 = vmul.f32 %v2776, 0.09329853
        %v2889 = vmul.f32 %v2777, 0.09329853
        %v2890 = vmul.f32 %v2778, 0.09329853
        %v2891 = vmul.f32 %v2779, 0.09329853
        %v2892 = vmul.f32 %v2780, 0.09329853
        %v2893 = vmul.f32 %v2781, 0.09329853
        %v2894 = vmul.f32 %v2782, 0.09329853
        %v2895 = vmul.f32 %v2783, 0.09329853
        %v2896 = vmul.f32 %v2784, 0.09329853
        %v2897 = vmul.f32 %v2785, 0.09329853
        %v2898 = vmul.f32 %v2786, 0.09329853
        %v2899 = vmul.f32 %v2787, 0.09329853
        %v2900 = vmul.f32 %v2788, 0.09329853
        %v2901 = vmul.f32 %v2789, 0.09329853
        %v2902 = vmul.f32 %v2790, 0.09329853
        %v2903 = vmul.f32 %v1967, 0.16031317
        %v2904 = vmul.f32 %v1968, 0.16031317
        %v2905 = vmul.f32 %v1969, 0.16031317
        %v2906 = vmul.f32 %v1970, 0.16031317
        %v2907 = vmul.f32 %v1971, 0.16031317
        %v2908 = vmul.f32 %v1972, 0.16031317
        %v2909 = vmul.f32 %v1973, 0.16031317
        %v2910 = vmul.f32 %v1974, 0.16031317
        %v2911 = vmul.f32 %v1975, 0.16031317
        %v2912 = vmul.f32 %v1976, 0.16031317
        %v2913 = vmul.f32 %v1977, 0.16031317
        %v2914 = vmul.f32 %v1978, 0.16031317
        %v2915 = vmul.f32 %v1979, 0.16031317
        %v2916 = vmul.f32 %v1980, 0.16031317
        %v2917 = vmul.f32 %v1981, 0.16031317
        %v2918 = vmul.f32 %v1982, 0.16031317
        %v2919 = vmul.f32 %v1983, 0.16031317
        %v2920 = vmul.f32 %v1984, 0.16031317
        %v2921 = vmul.f32 %v1985, 0.16031317
        %v2922 = vmul.f32 %v1986, 0.16031317
        %v2923 = vmul.f32 %v1987, 0.16031317
        %v2924 = vmul.f32 %v1988, 0.16031317
        %v2925 = vmul.f32 %v1989, 0.16031317
        %v2926 = vmul.f32 %v1990, 0.16031317
        %v2927 = vmul.f32 %v1991, 0.16031317
        %v2928 = vmul.f32 %v1992, 0.16031317
        %v2929 = vmul.f32 %v1993, 0.16031317
        %v2930 = vmul.f32 %v1994, 0.16031317
        %v2931 = vmul.f32 %v1995, 0.16031317
        %v2932 = vmul.f32 %v1996, 0.16031317
        %v2933 = vmul.f32 %v1997, 0.16031317
        %v2934 = vmul.f32 %v1998, 0.16031317
        %v2935 = vmul.f32 %v1999, 0.16031317
        %v2936 = vmul.f32 %v2000, 0.16031317
        %v2937 = vmul.f32 %v2001, 0.16031317
        %v2938 = vmul.f32 %v2002, 0.16031317
        %v2939 = vmul.f32 %v2003, 0.16031317
        %v2940 = vmul.f32 %v2004, 0.16031317
        %v2941 = vmul.f32 %v2005, 0.16031317
        %v2942 = vmul.f32 %v2006, 0.16031317
        %v2943 = vmul.f32 %v2007, 0.16031317
        %v2944 = vmul.f32 %v2008, 0.16031317
        %v2945 = vmul.f32 %v2009, 0.16031317
        %v2946 = vmul.f32 %v2010, 0.16031317
        %v2947 = vmul.f32 %v2011, 0.16031317
        %v2948 = vmul.f32 %v2012, 0.16031317
        %v2949 = vmul.f32 %v2013, 0.16031317
        %v2950 = vmul.f32 %v2014, 0.16031317
        %v2951 = vmul.f32 %v2015, 0.16031317
        %v2952 = vmul.f32 %v2016, 0.16031317
        %v2953 = vmul.f32 %v2017, 0.16031317
        %v2954 = vmul.f32 %v2018, 0.16031317
        %v2955 = vmul.f32 %v2019, 0.16031317
        %v2956 = vmul.f32 %v2020, 0.16031317
        %v2957 = vmul.f32 %v2021, 0.16031317
        %v2958 = vmul.f32 %v2022, 0.16031317
        %v2959 = vmul.f32 %v2023, 0.16031317
        %v2960 = vmul.f32 %v2024, 0.16031317
        %v2961 = vmul.f32 %v2025, 0.16031317
        %v2962 = vmul.f32 %v2026, 0.16031317
        %v2963 = vmul.f32 %v2027, 0.16031317
        %v2964 = vmul.f32 %v2028, 0.16031317
        %v2965 = vmul.f32 %v2029, 0.16031317
        %v2966 = vmul.f32 %v2030, 0.16031317
        %v2967 = vmul.f32 %v2031, 0.16031317
        %v2968 = vmul.f32 %v2032, 0.16031317
        %v2969 = vmul.f32 %v2033, 0.16031317
        %v2970 = vmul.f32 %v2034, 0.16031317
        %v2971 = vmul.f32 %v2035, 0.16031317
        %v2972 = vmul.f32 %v2036, 0.16031317
        %v2973 = vmul.f32 %v2037, 0.16031317
        %v2974 = vmul.f32 %v2038, 0.16031317
        %v2975 = vmul.f32 %v2039, 0.16031317
        %v2976 = vmul.f32 %v2040, 0.16031317
        %v2977 = vmul.f32 %v2041, 0.16031317
        %v2978 = vmul.f32 %v2042, 0.16031317
        %v2979 = vmul.f32 %v2043, 0.16031317
        %v2980 = vmul.f32 %v2044, 0.16031317
        %v2981 = vmul.f32 %v2045, 0.16031317
        %v2982 = vmul.f32 %v2046, 0.16031317
        %v2983 = vmul.f32 %v2047, 0.16031317
        %v2984 = vmul.f32 %v2048, 0.16031317
        %v2985 = vmul.f32 %v2049, 0.16031317
        %v2986 = vmul.f32 %v2050, 0.16031317
        %v2987 = vmul.f32 %v2051, 0.16031317
        %v2988 = vmul.f32 %v2052, 0.16031317
        %v2989 = vmul.f32 %v2053, 0.16031317
        %v2990 = vmul.f32 %v2054, 0.16031317
        %v2991 = vmul.f32 %v2055, 0.16031317
        %v2992 = vmul.f32 %v2056, 0.16031317
        %v2993 = vmul.f32 %v2057, 0.16031317
        %v2994 = vmul.f32 %v2058, 0.16031317
        %v2995 = vmul.f32 %v2059, 0.16031317
        %v2996 = vmul.f32 %v2060, 0.16031317
        %v2997 = vmul.f32 %v2061, 0.16031317
        %v2998 = vmul.f32 %v2062, 0.16031317
        %v2999 = vmul.f32 %v2063, 0.16031317
        %v3000 = vmul.f32 %v2064, 0.16031317
        %v3001 = vmul.f32 %v2065, 0.16031317
        %v3002 = vmul.f32 %v2066, 0.16031317
        %v3003 = vmul.f32 %v2067, 0.16031317
        %v3004 = vmul.f32 %v2068, 0.16031317
        %v3005 = vmul.f32 %v2069, 0.16031317
        %v3006 = vmul.f32 %v2070, 0.16031317
        %v3007 = vmul.f32 %v2071, 0.16031317
        %v3008 = vmul.f32 %v2072, 0.16031317
        %v3009 = vmul.f32 %v2073, 0.16031317
        %v3010 = vmul.f32 %v2074, 0.16031317
        %v3011 = vmul.f32 %v2075, 0.16031317
        %v3012 = vmul.f32 %v2076, 0.16031317
        %v3013 = vmul.f32 %v2077, 0.16031317
        %v3014 = vmul.f32 %v2078, 0.16031317
        %v3015 = vadd.f32 %v2791, %v2903
        %v3016 = vadd.f32 %v2792, %v2904
        %v3017 = vadd.f32 %v2793, %v2905
        %v3018 = vadd.f32 %v2794, %v2906
        %v3019 = vadd.f32 %v2795, %v2907
        %v3020 = vadd.f32 %v2796, %v2908
        %v3021 = vadd.f32 %v2797, %v2909
        %v3022 = vadd.f32 %v2798, %v2910
        %v3023 = vadd.f32 %v2799, %v2911
        %v3024 = vadd.f32 %v2800, %v2912
        %v3025 = vadd.f32 %v2801, %v2913
        %v3026 = vadd.f32 %v2802, %v2914
        %v3027 = vadd.f32 %v2803, %v2915
        %v3028 = vadd.f32 %v2804, %v2916
        %v3029 = vadd.f32 %v2805, %v2917
        %v3030 = vadd.f32 %v2806, %v2918
        %v3031 = vadd.f32 %v2807, %v2919
        %v3032 = vadd.f32 %v2808, %v2920
        %v3033 = vadd.f32 %v2809, %v2921
        %v3034 = vadd.f32 %v2810, %v2922
        %v3035 = vadd.f32 %v2811, %v2923
        %v3036 = vadd.f32 %v2812, %v2924
        %v3037 = vadd.f32 %v2813, %v2925
        %v3038 = vadd.f32 %v2814, %v2926
        %v3039 = vadd.f32 %v2815, %v2927
        %v3040 = vadd.f32 %v2816, %v2928
        %v3041 = vadd.f32 %v2817, %v2929
        %v3042 = vadd.f32 %v2818, %v2930
        %v3043 = vadd.f32 %v2819, %v2931
        %v3044 = vadd.f32 %v2820, %v2932
        %v3045 = vadd.f32 %v2821, %v2933
        %v3046 = vadd.f32 %v2822, %v2934
        %v3047 = vadd.f32 %v2823, %v2935
        %v3048 = vadd.f32 %v2824, %v2936
        %v3049 = vadd.f32 %v2825, %v2937
        %v3050 = vadd.f32 %v2826, %v2938
        %v3051 = vadd.f32 %v2827, %v2939
        %v3052 = vadd.f32 %v2828, %v2940
        %v3053 = vadd.f32 %v2829, %v2941
        %v3054 = vadd.f32 %v2830, %v2942
        %v3055 = vadd.f32 %v2831, %v2943
        %v3056 = vadd.f32 %v2832, %v2944
        %v3057 = vadd.f32 %v2833, %v2945
        %v3058 = vadd.f32 %v2834, %v2946
        %v3059 = vadd.f32 %v2835, %v2947
        %v3060 = vadd.f32 %v2836, %v2948
        %v3061 = vadd.f32 %v2837, %v2949
        %v3062 = vadd.f32 %v2838, %v2950
        %v3063 = vadd.f32 %v2839, %v2951
        %v3064 = vadd.f32 %v2840, %v2952
        %v3065 = vadd.f32 %v2841, %v2953
        %v3066 = vadd.f32 %v2842, %v2954
        %v3067 = vadd.f32 %v2843, %v2955
        %v3068 = vadd.f32 %v2844, %v2956
        %v3069 = vadd.f32 %v2845, %v2957
        %v3070 = vadd.f32 %v2846, %v2958
        %v3071 = vadd.f32 %v2847, %v2959
        %v3072 = vadd.f32 %v2848, %v2960
        %v3073 = vadd.f32 %v2849, %v2961
        %v3074 = vadd.f32 %v2850, %v2962
        %v3075 = vadd.f32 %v2851, %v2963
        %v3076 = vadd.f32 %v2852, %v2964
        %v3077 = vadd.f32 %v2853, %v2965
        %v3078 = vadd.f32 %v2854, %v2966
        %v3079 = vadd.f32 %v2855, %v2967
        %v3080 = vadd.f32 %v2856, %v2968
        %v3081 = vadd.f32 %v2857, %v2969
        %v3082 = vadd.f32 %v2858, %v2970
        %v3083 = vadd.f32 %v2859, %v2971
        %v3084 = vadd.f32 %v2860, %v2972
        %v3085 = vadd.f32 %v2861, %v2973
        %v3086 = vadd.f32 %v2862, %v2974
        %v3087 = vadd.f32 %v2863, %v2975
        %v3088 = vadd.f32 %v2864, %v2976
        %v3089 = vadd.f32 %v2865, %v2977
        %v3090 = vadd.f32 %v2866, %v2978
        %v3091 = vadd.f32 %v2867, %v2979
        %v3092 = vadd.f32 %v2868, %v2980
        %v3093 = vadd.f32 %v2869, %v2981
        %v3094 = vadd.f32 %v2870, %v2982
        %v3095 = vadd.f32 %v2871, %v2983
        %v3096 = vadd.f32 %v2872, %v2984
        %v3097 = vadd.f32 %v2873, %v2985
        %v3098 = vadd.f32 %v2874, %v2986
        %v3099 = vadd.f32 %v2875, %v2987
        %v3100 = vadd.f32 %v2876, %v2988
        %v3101 = vadd.f32 %v2877, %v2989
        %v3102 = vadd.f32 %v2878, %v2990
        %v3103 = vadd.f32 %v2879, %v2991
        %v3104 = vadd.f32 %v2880, %v2992
        %v3105 = vadd.f32 %v2881, %v2993
        %v3106 = vadd.f32 %v2882, %v2994
        %v3107 = vadd.f32 %v2883, %v2995
        %v3108 = vadd.f32 %v2884, %v2996
        %v3109 = vadd.f32 %v2885, %v2997
        %v3110 = vadd.f32 %v2886, %v2998
        %v3111 = vadd.f32 %v2887, %v2999
        %v3112 = vadd.f32 %v2888, %v3000
        %v3113 = vadd.f32 %v2889, %v3001
        %v3114 = vadd.f32 %v2890, %v3002
        %v3115 = vadd.f32 %v2891, %v3003
        %v3116 = vadd.f32 %v2892, %v3004
        %v3117 = vadd.f32 %v2893, %v3005
        %v3118 = vadd.f32 %v2894, %v3006
        %v3119 = vadd.f32 %v2895, %v3007
        %v3120 = vadd.f32 %v2896, %v3008
        %v3121 = vadd.f32 %v2897, %v3009
        %v3122 = vadd.f32 %v2898, %v3010
        %v3123 = vadd.f32 %v2899, %v3011
        %v3124 = vadd.f32 %v2900, %v3012
        %v3125 = vadd.f32 %v2901, %v3013
        %v3126 = vadd.f32 %v2902, %v3014
        %v3239 = vcombine.high %v3015, %v3015
        %v3240 = vcombine.high %v3016, %v3016
        %v3241 = vcombine.high %v3017, %v3017
        %v3242 = vcombine.high %v3019, %v3019
        %v3243 = vcombine.high %v3020, %v3020
        %v3244 = vcombine.high %v3021, %v3021
        %v3245 = vcombine.high %v3023, %v3023
        %v3246 = vcombine.high %v3024, %v3024
        %v3247 = vcombine.high %v3025, %v3025
        %v3248 = vcombine.high %v3027, %v3027
        %v3249 = vcombine.high %v3028, %v3028
        %v3250 = vcombine.high %v3029, %v3029
        %v3251 = vcombine.high %v3031, %v3031
        %v3252 = vcombine.high %v3032, %v3032
        %v3253 = vcombine.high %v3033, %v3033
        %v3254 = vcombine.high %v3035, %v3035
        %v3255 = vcombine.high %v3036, %v3036
        %v3256 = vcombine.high %v3037, %v3037
        %v3257 = vcombine.high %v3039, %v3039
        %v3258 = vcombine.high %v3040, %v3040
        %v3259 = vcombine.high %v3041, %v3041
        %v3260 = vcombine.high %v3043, %v3043
        %v3261 = vcombine.high %v3044, %v3044
        %v3262 = vcombine.high %v3045, %v3045
        %v3263 = vcombine.high %v3047, %v3047
        %v3264 = vcombine.high %v3048, %v3048
        %v3265 = vcombine.high %v3049, %v3049
        %v3266 = vcombine.high %v3051, %v3051
        %v3267 = vcombine.high %v3052, %v3052
        %v3268 = vcombine.high %v3053, %v3053
        %v3269 = vcombine.high %v3055, %v3055
        %v3270 = vcombine.high %v3056, %v3056
        %v3271 = vcombine.high %v3057, %v3057
        %v3272 = vcombine.high %v3059, %v3059
        %v3273 = vcombine.high %v3060, %v3060
        %v3274 = vcombine.high %v3061, %v3061
        %v3275 = vcombine.high %v3063, %v3063
        %v3276 = vcombine.high %v3064, %v3064
        %v3277 = vcombine.high %v3065, %v3065
        %v3278 = vcombine.high %v3067, %v3067
        %v3279 = vcombine.high %v3068, %v3068
        %v3280 = vcombine.high %v3069, %v3069
        %v3281 = vcombine.high %v3071, %v3071
        %v3282 = vcombine.high %v3072, %v3072
        %v3283 = vcombine.high %v3073, %v3073
        %v3284 = vcombine.high %v3075, %v3075
        %v3285 = vcombine.high %v3076, %v3076
        %v3286 = vcombine.high %v3077, %v3077
        %v3287 = vcombine.high %v3079, %v3079
        %v3288 = vcombine.high %v3080, %v3080
        %v3289 = vcombine.high %v3081, %v3081
        %v3290 = vcombine.high %v3083, %v3083
        %v3291 = vcombine.high %v3084, %v3084
        %v3292 = vcombine.high %v3085, %v3085
        %v3293 = vcombine.high %v3087, %v3087
        %v3294 = vcombine.high %v3088, %v3088
        %v3295 = vcombine.high %v3089, %v3089
        %v3296 = vcombine.high %v3091, %v3091
        %v3297 = vcombine.high %v3092, %v3092
        %v3298 = vcombine.high %v3093, %v3093
        %v3299 = vcombine.high %v3095, %v3095
        %v3300 = vcombine.high %v3096, %v3096
        %v3301 = vcombine.high %v3097, %v3097
        %v3302 = vcombine.high %v3099, %v3099
        %v3303 = vcombine.high %v3100, %v3100
        %v3304 = vcombine.high %v3101, %v3101
        %v3305 = vcombine.high %v3103, %v3103
        %v3306 = vcombine.high %v3104, %v3104
        %v3307 = vcombine.high %v3105, %v3105
        %v3308 = vcombine.high %v3107, %v3107
        %v3309 = vcombine.high %v3108, %v3108
        %v3310 = vcombine.high %v3109, %v3109
        %v3311 = vcombine.high %v3111, %v3111
        %v3312 = vcombine.high %v3112, %v3112
        %v3313 = vcombine.high %v3113, %v3113
        %v3314 = vcombine.high %v3115, %v3115
        %v3315 = vcombine.high %v3116, %v3116
        %v3316 = vcombine.high %v3117, %v3117
        %v3317 = vcombine.high %v3119, %v3119
        %v3318 = vcombine.high %v3120, %v3120
        %v3319 = vcombine.high %v3121, %v3121
        %v3320 = vcombine.high %v3123, %v3123
        %v3321 = vcombine.high %v3124, %v3124
        %v3322 = vcombine.high %v3125, %v3125
        %v3323 = vld [vmem:[%s3] sm:$0xff]
        %v3324 = vld [vmem:[%s3 + $0x8] sm:$0xff]
        %v3325 = vld [vmem:[%s3 + $0x10] sm:$0xff]
        %v3326 = vld [vmem:[%s3 + $0x18] sm:$0xff]
        %v3327 = vld [vmem:[%s4] sm:$0x1]
        %v3329 = vlaneseq
        %v3330 = vshrl.u32 %v3329, 7
        %v3331 = vsub.s32 0, %v3330
        %v3332 = vrot.slane %v3327, %v3331
        %v3334 = vcombine.low %v3015, %v3239
        %v3335 = vcombine.low %v3016, %v3240
        %v3336 = vcombine.low %v3017, %v3241
        %v3337 = vcombine.low %v3018, %v3019
        %v3338 = vcombine.low %v3242, %v3020
        %v3339 = vcombine.low %v3243, %v3021
        %v3340 = vcombine.low %v3244, %v3022
        %v3341 = vcombine.low %v3023, %v3245
        %v3342 = vcombine.low %v3024, %v3246
        %v3343 = vcombine.low %v3025, %v3247
        %v3344 = vcombine.low %v3026, %v3027
        %v3345 = vcombine.low %v3248, %v3028
        %v3346 = vcombine.low %v3249, %v3029
        %v3347 = vcombine.low %v3250, %v3030
        %v3348 = vcombine.low %v3031, %v3251
        %v3349 = vcombine.low %v3032, %v3252
        %v3350 = vcombine.low %v3033, %v3253
        %v3351 = vcombine.low %v3034, %v3035
        %v3352 = vcombine.low %v3254, %v3036
        %v3353 = vcombine.low %v3255, %v3037
        %v3354 = vcombine.low %v3256, %v3038
        %v3355 = vcombine.low %v3039, %v3257
        %v3356 = vcombine.low %v3040, %v3258
        %v3357 = vcombine.low %v3041, %v3259
        %v3358 = vcombine.low %v3042, %v3043
        %v3359 = vcombine.low %v3260, %v3044
        %v3360 = vcombine.low %v3261, %v3045
        %v3361 = vcombine.low %v3262, %v3046
        %v3362 = vcombine.low %v3047, %v3263
        %v3363 = vcombine.low %v3048, %v3264
        %v3364 = vcombine.low %v3049, %v3265
        %v3365 = vcombine.low %v3050, %v3051
        %v3366 = vcombine.low %v3266, %v3052
        %v3367 = vcombine.low %v3267, %v3053
        %v3368 = vcombine.low %v3268, %v3054
        %v3369 = vcombine.low %v3055, %v3269
        %v3370 = vcombine.low %v3056, %v3270
        %v3371 = vcombine.low %v3057, %v3271
        %v3372 = vcombine.low %v3058, %v3059
        %v3373 = vcombine.low %v3272, %v3060
        %v3374 = vcombine.low %v3273, %v3061
        %v3375 = vcombine.low %v3274, %v3062
        %v3376 = vcombine.low %v3063, %v3275
        %v3377 = vcombine.low %v3064, %v3276
        %v3378 = vcombine.low %v3065, %v3277
        %v3379 = vcombine.low %v3066, %v3067
        %v3380 = vcombine.low %v3278, %v3068
        %v3381 = vcombine.low %v3279, %v3069
        %v3382 = vcombine.low %v3280, %v3070
        %v3383 = vcombine.low %v3071, %v3281
        %v3384 = vcombine.low %v3072, %v3282
        %v3385 = vcombine.low %v3073, %v3283
        %v3386 = vcombine.low %v3074, %v3075
        %v3387 = vcombine.low %v3284, %v3076
        %v3388 = vcombine.low %v3285, %v3077
        %v3389 = vcombine.low %v3286, %v3078
        %v3390 = vcombine.low %v3079, %v3287
        %v3391 = vcombine.low %v3080, %v3288
        %v3392 = vcombine.low %v3081, %v3289
        %v3393 = vcombine.low %v3082, %v3083
        %v3394 = vcombine.low %v3290, %v3084
        %v3395 = vcombine.low %v3291, %v3085
        %v3396 = vcombine.low %v3292, %v3086
        %v3397 = vcombine.low %v3087, %v3293
        %v3398 = vcombine.low %v3088, %v3294
        %v3399 = vcombine.low %v3089, %v3295
        %v3400 = vcombine.low %v3090, %v3091
        %v3401 = vcombine.low %v3296, %v3092
        %v3402 = vcombine.low %v3297, %v3093
        %v3403 = vcombine.low %v3298, %v3094
        %v3404 = vcombine.low %v3095, %v3299
        %v3405 = vcombine.low %v3096, %v3300
        %v3406 = vcombine.low %v3097, %v3301
        %v3407 = vcombine.low %v3098, %v3099
        %v3408 = vcombine.low %v3302, %v3100
        %v3409 = vcombine.low %v3303, %v3101
        %v3410 = vcombine.low %v3304, %v3102
        %v3411 = vcombine.low %v3103, %v3305
        %v3412 = vcombine.low %v3104, %v3306
        %v3413 = vcombine.low %v3105, %v3307
        %v3414 = vcombine.low %v3106, %v3107
        %v3415 = vcombine.low %v3308, %v3108
        %v3416 = vcombine.low %v3309, %v3109
        %v3417 = vcombine.low %v3310, %v3110
        %v3418 = vcombine.low %v3111, %v3311
        %v3419 = vcombine.low %v3112, %v3312
        %v3420 = vcombine.low %v3113, %v3313
        %v3421 = vcombine.low %v3114, %v3115
        %v3422 = vcombine.low %v3314, %v3116
        %v3423 = vcombine.low %v3315, %v3117
        %v3424 = vcombine.low %v3316, %v3118
        %v3425 = vcombine.low %v3119, %v3317
        %v3426 = vcombine.low %v3120, %v3318
        %v3427 = vcombine.low %v3121, %v3319
        %v3428 = vcombine.low %v3122, %v3123
        %v3429 = vcombine.low %v3320, %v3124
        %v3430 = vcombine.low %v3321, %v3125
        %v3431 = vcombine.low %v3322, %v3126
        %v3432 = vsel %vm1353, %v3334, 0
        %v3434 = vsel %vm1353, %v3335, 0
        %v3436 = vsel %vm1353, %v3336, 0
        %v3438 = vsel %vm1353, %v3337, 0
        %v3440 = vsel %vm1353, %v3338, 0
        %v3442 = vsel %vm1353, %v3339, 0
        %v3444 = vsel %vm1353, %v3340, 0
        %v3446 = vsel %vm1353, %v3341, 0
        %v3448 = vsel %vm1353, %v3342, 0
        %v3450 = vsel %vm1353, %v3343, 0
        %v3452 = vsel %vm1353, %v3344, 0
        %v3454 = vsel %vm1353, %v3345, 0
        %v3456 = vsel %vm1353, %v3346, 0
        %v3458 = vsel %vm1353, %v3347, 0
        %v3460 = vsel %vm1353, %v3348, 0
        %v3462 = vsel %vm1353, %v3349, 0
        %v3464 = vsel %vm1353, %v3350, 0
        %v3466 = vsel %vm1353, %v3351, 0
        %v3468 = vsel %vm1353, %v3352, 0
        %v3470 = vsel %vm1353, %v3353, 0
        %v3472 = vsel %vm1353, %v3354, 0
        %v3474 = vsel %vm1353, %v3355, 0
        %v3476 = vsel %vm1353, %v3356, 0
        %v3478 = vsel %vm1353, %v3357, 0
        %v3480 = vsel %vm1353, %v3358, 0
        %v3482 = vsel %vm1353, %v3359, 0
        %v3484 = vsel %vm1353, %v3360, 0
        %v3486 = vsel %vm1353, %v3361, 0
        %v3488 = vsel %vm1353, %v3362, 0
        %v3490 = vsel %vm1353, %v3363, 0
        %v3492 = vsel %vm1353, %v3364, 0
        %v3494 = vsel %vm1353, %v3365, 0
        %v3496 = vsel %vm1353, %v3366, 0
        %v3498 = vsel %vm1353, %v3367, 0
        %v3500 = vsel %vm1353, %v3368, 0
        %v3502 = vsel %vm1353, %v3369, 0
        %v3504 = vsel %vm1353, %v3370, 0
        %v3506 = vsel %vm1353, %v3371, 0
        %v3508 = vsel %vm1353, %v3372, 0
        %v3510 = vsel %vm1353, %v3373, 0
        %v3512 = vsel %vm1353, %v3374, 0
        %v3514 = vsel %vm1353, %v3375, 0
        %v3516 = vsel %vm1353, %v3376, 0
        %v3518 = vsel %vm1353, %v3377, 0
        %v3520 = vsel %vm1353, %v3378, 0
        %v3522 = vsel %vm1353, %v3379, 0
        %v3524 = vsel %vm1353, %v3380, 0
        %v3526 = vsel %vm1353, %v3381, 0
        %v3528 = vsel %vm1353, %v3382, 0
        %v3530 = vsel %vm1353, %v3383, 0
        %v3532 = vsel %vm1353, %v3384, 0
        %v3534 = vsel %vm1353, %v3385, 0
        %v3536 = vsel %vm1353, %v3386, 0
        %v3538 = vsel %vm1353, %v3387, 0
        %v3540 = vsel %vm1353, %v3388, 0
        %v3542 = vsel %vm1353, %v3389, 0
        %v3544 = vsel %vm1353, %v3390, 0
        %v3546 = vsel %vm1353, %v3391, 0
        %v3548 = vsel %vm1353, %v3392, 0
        %v3550 = vsel %vm1353, %v3393, 0
        %v3552 = vsel %vm1353, %v3394, 0
        %v3554 = vsel %vm1353, %v3395, 0
        %v3556 = vsel %vm1353, %v3396, 0
        %v3558 = vsel %vm1353, %v3397, 0
        %v3560 = vsel %vm1353, %v3398, 0
        %v3562 = vsel %vm1353, %v3399, 0
        %v3564 = vsel %vm1353, %v3400, 0
        %v3566 = vsel %vm1353, %v3401, 0
        %v3568 = vsel %vm1353, %v3402, 0
        %v3570 = vsel %vm1353, %v3403, 0
        %v3572 = vsel %vm1353, %v3404, 0
        %v3574 = vsel %vm1353, %v3405, 0
        %v3576 = vsel %vm1353, %v3406, 0
        %v3578 = vsel %vm1353, %v3407, 0
        %v3580 = vsel %vm1353, %v3408, 0
        %v3582 = vsel %vm1353, %v3409, 0
        %v3584 = vsel %vm1353, %v3410, 0
        %v3586 = vsel %vm1353, %v3411, 0
        %v3588 = vsel %vm1353, %v3412, 0
        %v3590 = vsel %vm1353, %v3413, 0
        %v3592 = vsel %vm1353, %v3414, 0
        %v3594 = vsel %vm1353, %v3415, 0
        %v3596 = vsel %vm1353, %v3416, 0
        %v3598 = vsel %vm1353, %v3417, 0
        %v3600 = vsel %vm1353, %v3418, 0
        %v3602 = vsel %vm1353, %v3419, 0
        %v3604 = vsel %vm1353, %v3420, 0
        %v3606 = vsel %vm1353, %v3421, 0
        %v3608 = vsel %vm1353, %v3422, 0
        %v3610 = vsel %vm1353, %v3423, 0
        %v3612 = vsel %vm1353, %v3424, 0
        %v3614 = vsel %vm1353, %v3425, 0
        %v3616 = vsel %vm1353, %v3426, 0
        %v3618 = vsel %vm1353, %v3427, 0
        %v3620 = vsel %vm1353, %v3428, 0
        %v3622 = vsel %vm1353, %v3429, 0
        %v3624 = vsel %vm1353, %v3430, 0
        %v3626 = vsel %vm1353, %v3431, 0
        %3628 = vmatprep.subr.mxu0 0.0
        %3629 = vmatpush1.msra.mxu0 %v3323
        %3630 = vmatprep.subr.mxu0 0.0
        %3631 = vmatpush1.msra.mxu0 %v3324
        %3632 = vmatprep.subr.mxu0 0.0
        %3633 = vmatpush1.msra.mxu0 %v3325
        %3634 = vmatprep.subr.mxu0 0.0
        %3635 = vmatpush1.msra.mxu0 %v3326
        %3636 = vmatprep.subr.mxu0 0.0
        %3637 = vmatpush1.msra.mxu0 0.0
        %3638 = vmatprep.subr.mxu0 0.0
        %3639 = vmatpush1.msra.mxu0 0.0
        %3640 = vmatprep.subr.mxu0 0.0
        %3641 = vmatpush1.msra.mxu0 0.0
        %3642 = vmatprep.subr.mxu0 0.0
        %3643 = vmatpush1.msra.mxu0 0.0
        %3644 = vmatprep.subr.mxu0 0.0
        %3645 = vmatpush1.msra.mxu0 0.0
        %3646 = vmatprep.subr.mxu0 0.0
        %3647 = vmatpush1.msra.mxu0 0.0
        %3648 = vmatprep.subr.mxu0 0.0
        %3649 = vmatpush1.msra.mxu0 0.0
        %3650 = vmatprep.subr.mxu0 0.0
        %3651 = vmatpush1.msra.mxu0 0.0
        %3652 = vmatprep.subr.mxu0 0.0
        %3653 = vmatpush1.msra.mxu0 0.0
        %3654 = vmatprep.subr.mxu0 0.0
        %3655 = vmatpush1.msra.mxu0 0.0
        %3656 = vmatprep.subr.mxu0 0.0
        %3657 = vmatpush1.msra.mxu0 0.0
        %3658 = vmatprep.subr.mxu0 0.0
        %3659 = vmatpush1.msra.mxu0 0.0
        %3660 = vmatprep.subr.mxu0 0.0
        %3661 = vmatpush1.msra.mxu0 0.0
        %3662 = vmatprep.subr.mxu0 0.0
        %3663 = vmatpush1.msra.mxu0 0.0
        %3664 = vmatprep.subr.mxu0 0.0
        %3665 = vmatpush1.msra.mxu0 0.0
        %3666 = vmatprep.subr.mxu0 0.0
        %3667 = vmatpush1.msra.mxu0 0.0
        %3668 = vmatprep.subr.mxu0 0.0
        %3669 = vmatpush1.msra.mxu0 0.0
        %3670 = vmatprep.subr.mxu0 0.0
        %3671 = vmatpush1.msra.mxu0 0.0
        %3672 = vmatprep.subr.mxu0 0.0
        %3673 = vmatpush1.msra.mxu0 0.0
        %3674 = vmatprep.subr.mxu0 0.0
        %3675 = vmatpush1.msra.mxu0 0.0
        %3676 = vmatprep.subr.mxu0 0.0
        %3677 = vmatpush1.msra.mxu0 0.0
        %3678 = vmatprep.subr.mxu0 0.0
        %3679 = vmatpush1.msra.mxu0 0.0
        %3680 = vmatprep.subr.mxu0 0.0
        %3681 = vmatpush1.msra.mxu0 0.0
        %3682 = vmatprep.subr.mxu0 0.0
        %3683 = vmatpush1.msra.mxu0 0.0
        %3684 = vmatprep.subr.mxu0 0.0
        %3685 = vmatpush1.msra.mxu0 0.0
        %3686 = vmatprep.subr.mxu0 0.0
        %3687 = vmatpush1.msra.mxu0 0.0
        %3688 = vmatprep.subr.mxu0 0.0
        %3689 = vmatpush1.msra.mxu0 0.0
        %3690 = vmatprep.subr.mxu0 0.0
        %3691 = vmatpush1.msra.mxu0 0.0
        %3692 = vmatprep.mubr.f32.mxu0 0.0
        %3693 = vmatmul.mubr.f32.gmra.mrb[0].mxu0 %v3432
        %v3694 = vpop.f32.mrb[0].mxu0
        %v3695 = vadd.f32 %v3332, %v3694
        %v3696 = vpop.f32.mrb[0].mxu0
        %3697 = vmatprep.mubr.f32.mxu0 0.0
        %3698 = vmatmul.mubr.f32.gmra.mrb[0].mxu0 %v3434
        %v3699 = vpop.f32.mrb[0].mxu0
        %v3700 = vadd.f32 %v3332, %v3699
        %v3701 = vpop.f32.mrb[0].mxu0
        %3702 = vmatprep.mubr.f32.mxu0 0.0
        %3703 = vmatmul.mubr.f32.gmra.mrb[0].mxu0 %v3436
        %v3704 = vpop.f32.mrb[0].mxu0
        %v3705 = vadd.f32 %v3332, %v3704
        %v3706 = vpop.f32.mrb[0].mxu0
        %3707 = vmatprep.mubr.f32.mxu0 0.0
        %3708 = vmatmul.mubr.f32.gmra.mrb[0].mxu0 %v3438
        %v3709 = vpop.f32.mrb[0].mxu0
        %v3710 = vadd.f32 %v3332, %v3709
        %v3711 = vpop.f32.mrb[0].mxu0
        %3712 = vmatprep.mubr.f32.mxu0 0.0
        %3713 = vmatmul.mubr.f32.gmra.mrb[0].mxu0 %v3440
        %v3714 = vpop.f32.mrb[0].mxu0
        %v3715 = vadd.f32 %v3332, %v3714
        %v3716 = vpop.f32.mrb[0].mxu0
        %3717 = vmatprep.mubr.f32.mxu0 0.0
        %3718 = vmatmul.mubr.f32.gmra.mrb[0].mxu0 %v3442
        %v3719 = vpop.f32.mrb[0].mxu0
        %v3720 = vadd.f32 %v3332, %v3719
        %v3721 = vpop.f32.mrb[0].mxu0
        %3722 = vmatprep.mubr.f32.mxu0 0.0
        %3723 = vmatmul.mubr.f32.gmra.mrb[0].mxu0 %v3444
        %v3724 = vpop.f32.mrb[0].mxu0
        %v3725 = vadd.f32 %v3332, %v3724
        %v3726 = vpop.f32.mrb[0].mxu0
        %3727 = vmatprep.mubr.f32.mxu0 0.0
        %3728 = vmatmul.mubr.f32.gmra.mrb[0].mxu0 %v3446
        %v3729 = vpop.f32.mrb[0].mxu0
        %v3730 = vadd.f32 %v3332, %v3729
        %v3731 = vpop.f32.mrb[0].mxu0
        %3732 = vmatprep.mubr.f32.mxu0 0.0
        %3733 = vmatmul.mubr.f32.gmra.mrb[0].mxu0 %v3448
        %v3734 = vpop.f32.mrb[0].mxu0
        %v3735 = vadd.f32 %v3332, %v3734
        %v3736 = vpop.f32.mrb[0].mxu0
        %3737 = vmatprep.mubr.f32.mxu0 0.0
        %3738 = vmatmul.mubr.f32.gmra.mrb[0].mxu0 %v3450
        %v3739 = vpop.f32.mrb[0].mxu0
        %v3740 = vadd.f32 %v3332, %v3739
        %v3741 = vpop.f32.mrb[0].mxu0
        %3742 = vmatprep.mubr.f32.mxu0 0.0
        %3743 = vmatmul.mubr.f32.gmra.mrb[0].mxu0 %v3452
        %v3744 = vpop.f32.mrb[0].mxu0
        %v3745 = vadd.f32 %v3332, %v3744
        %v3746 = vpop.f32.mrb[0].mxu0
        %3747 = vmatprep.mubr.f32.mxu0 0.0
        %3748 = vmatmul.mubr.f32.gmra.mrb[0].mxu0 %v3454
        %v3749 = vpop.f32.mrb[0].mxu0
        %v3750 = vadd.f32 %v3332, %v3749
        %v3751 = vpop.f32.mrb[0].mxu0
        %3752 = vmatprep.mubr.f32.mxu0 0.0
        %3753 = vmatmul.mubr.f32.gmra.mrb[0].mxu0 %v3456
        %v3754 = vpop.f32.mrb[0].mxu0
        %v3755 = vadd.f32 %v3332, %v3754
        %v3756 = vpop.f32.mrb[0].mxu0
        %3757 = vmatprep.mubr.f32.mxu0 0.0
        %3758 = vmatmul.mubr.f32.gmra.mrb[0].mxu0 %v3458
        %v3759 = vpop.f32.mrb[0].mxu0
        %v3760 = vadd.f32 %v3332, %v3759
        %v3761 = vpop.f32.mrb[0].mxu0
        %3762 = vmatprep.mubr.f32.mxu0 0.0
        %3763 = vmatmul.mubr.f32.gmra.mrb[0].mxu0 %v3460
        %v3764 = vpop.f32.mrb[0].mxu0
        %v3765 = vadd.f32 %v3332, %v3764
        %v3766 = vpop.f32.mrb[0].mxu0
        %3767 = vmatprep.mubr.f32.mxu0 0.0
        %3768 = vmatmul.mubr.f32.gmra.mrb[0].mxu0 %v3462
        %v3769 = vpop.f32.mrb[0].mxu0
        %v3770 = vadd.f32 %v3332, %v3769
        %v3771 = vpop.f32.mrb[0].mxu0
        %3772 = vmatprep.mubr.f32.mxu0 0.0
        %3773 = vmatmul.mubr.f32.gmra.mrb[0].mxu0 %v3464
        %v3774 = vpop.f32.mrb[0].mxu0
        %v3775 = vadd.f32 %v3332, %v3774
        %v3776 = vpop.f32.mrb[0].mxu0
        %3777 = vmatprep.mubr.f32.mxu0 0.0
        %3778 = vmatmul.mubr.f32.gmra.mrb[0].mxu0 %v3466
        %v3779 = vpop.f32.mrb[0].mxu0
        %v3780 = vadd.f32 %v3332, %v3779
        %v3781 = vpop.f32.mrb[0].mxu0
        %3782 = vmatprep.mubr.f32.mxu0 0.0
        %3783 = vmatmul.mubr.f32.gmra.mrb[0].mxu0 %v3468
        %v3784 = vpop.f32.mrb[0].mxu0
        %v3785 = vadd.f32 %v3332, %v3784
        %v3786 = vpop.f32.mrb[0].mxu0
        %3787 = vmatprep.mubr.f32.mxu0 0.0
        %3788 = vmatmul.mubr.f32.gmra.mrb[0].mxu0 %v3470
        %v3789 = vpop.f32.mrb[0].mxu0
        %v3790 = vadd.f32 %v3332, %v3789
        %v3791 = vpop.f32.mrb[0].mxu0
        %3792 = vmatprep.mubr.f32.mxu0 0.0
        %3793 = vmatmul.mubr.f32.gmra.mrb[0].mxu0 %v3472
        %v3794 = vpop.f32.mrb[0].mxu0
        %v3795 = vadd.f32 %v3332, %v3794
        %v3796 = vpop.f32.mrb[0].mxu0
        %3797 = vmatprep.mubr.f32.mxu0 0.0
        %3798 = vmatmul.mubr.f32.gmra.mrb[0].mxu0 %v3474
        %v3799 = vpop.f32.mrb[0].mxu0
        %v3800 = vadd.f32 %v3332, %v3799
        %v3801 = vpop.f32.mrb[0].mxu0
        %3802 = vmatprep.mubr.f32.mxu0 0.0
        %3803 = vmatmul.mubr.f32.gmra.mrb[0].mxu0 %v3476
        %v3804 = vpop.f32.mrb[0].mxu0
        %v3805 = vadd.f32 %v3332, %v3804
        %v3806 = vpop.f32.mrb[0].mxu0
        %3807 = vmatprep.mubr.f32.mxu0 0.0
        %3808 = vmatmul.mubr.f32.gmra.mrb[0].mxu0 %v3478
        %v3809 = vpop.f32.mrb[0].mxu0
        %v3810 = vadd.f32 %v3332, %v3809
        %v3811 = vpop.f32.mrb[0].mxu0
        %3812 = vmatprep.mubr.f32.mxu0 0.0
        %3813 = vmatmul.mubr.f32.gmra.mrb[0].mxu0 %v3480
        %v3814 = vpop.f32.mrb[0].mxu0
        %v3815 = vadd.f32 %v3332, %v3814
        %v3816 = vpop.f32.mrb[0].mxu0
        %3817 = vmatprep.mubr.f32.mxu0 0.0
        %3818 = vmatmul.mubr.f32.gmra.mrb[0].mxu0 %v3482
        %v3819 = vpop.f32.mrb[0].mxu0
        %v3820 = vadd.f32 %v3332, %v3819
        %v3821 = vpop.f32.mrb[0].mxu0
        %3822 = vmatprep.mubr.f32.mxu0 0.0
        %3823 = vmatmul.mubr.f32.gmra.mrb[0].mxu0 %v3484
        %v3824 = vpop.f32.mrb[0].mxu0
        %v3825 = vadd.f32 %v3332, %v3824
        %v3826 = vpop.f32.mrb[0].mxu0
        %3827 = vmatprep.mubr.f32.mxu0 0.0
        %3828 = vmatmul.mubr.f32.gmra.mrb[0].mxu0 %v3486
        %v3829 = vpop.f32.mrb[0].mxu0
        %v3830 = vadd.f32 %v3332, %v3829
        %v3831 = vpop.f32.mrb[0].mxu0
        %3832 = vmatprep.mubr.f32.mxu0 0.0
        %3833 = vmatmul.mubr.f32.gmra.mrb[0].mxu0 %v3488
        %v3834 = vpop.f32.mrb[0].mxu0
        %v3835 = vadd.f32 %v3332, %v3834
        %v3836 = vpop.f32.mrb[0].mxu0
        %3837 = vmatprep.mubr.f32.mxu0 0.0
        %3838 = vmatmul.mubr.f32.gmra.mrb[0].mxu0 %v3490
        %v3839 = vpop.f32.mrb[0].mxu0
        %v3840 = vadd.f32 %v3332, %v3839
        %v3841 = vpop.f32.mrb[0].mxu0
        %3842 = vmatprep.mubr.f32.mxu0 0.0
        %3843 = vmatmul.mubr.f32.gmra.mrb[0].mxu0 %v3492
        %v3844 = vpop.f32.mrb[0].mxu0
        %v3845 = vadd.f32 %v3332, %v3844
        %v3846 = vpop.f32.mrb[0].mxu0
        %3847 = vmatprep.mubr.f32.mxu0 0.0
        %3848 = vmatmul.mubr.f32.gmra.mrb[0].mxu0 %v3494
        %v3849 = vpop.f32.mrb[0].mxu0
        %v3850 = vadd.f32 %v3332, %v3849
        %v3851 = vpop.f32.mrb[0].mxu0
        %3852 = vmatprep.mubr.f32.mxu0 0.0
        %3853 = vmatmul.mubr.f32.gmra.mrb[0].mxu0 %v3496
        %v3854 = vpop.f32.mrb[0].mxu0
        %v3855 = vadd.f32 %v3332, %v3854
        %v3856 = vpop.f32.mrb[0].mxu0
        %3857 = vmatprep.mubr.f32.mxu0 0.0
        %3858 = vmatmul.mubr.f32.gmra.mrb[0].mxu0 %v3498
        %v3859 = vpop.f32.mrb[0].mxu0
        %v3860 = vadd.f32 %v3332, %v3859
        %v3861 = vpop.f32.mrb[0].mxu0
        %3862 = vmatprep.mubr.f32.mxu0 0.0
        %3863 = vmatmul.mubr.f32.gmra.mrb[0].mxu0 %v3500
        %v3864 = vpop.f32.mrb[0].mxu0
        %v3865 = vadd.f32 %v3332, %v3864
        %v3866 = vpop.f32.mrb[0].mxu0
        %3867 = vmatprep.mubr.f32.mxu0 0.0
        %3868 = vmatmul.mubr.f32.gmra.mrb[0].mxu0 %v3502
        %v3869 = vpop.f32.mrb[0].mxu0
        %v3870 = vadd.f32 %v3332, %v3869
        %v3871 = vpop.f32.mrb[0].mxu0
        %3872 = vmatprep.mubr.f32.mxu0 0.0
        %3873 = vmatmul.mubr.f32.gmra.mrb[0].mxu0 %v3504
        %v3874 = vpop.f32.mrb[0].mxu0
        %v3875 = vadd.f32 %v3332, %v3874
        %v3876 = vpop.f32.mrb[0].mxu0
        %3877 = vmatprep.mubr.f32.mxu0 0.0
        %3878 = vmatmul.mubr.f32.gmra.mrb[0].mxu0 %v3506
        %v3879 = vpop.f32.mrb[0].mxu0
        %v3880 = vadd.f32 %v3332, %v3879
        %v3881 = vpop.f32.mrb[0].mxu0
        %3882 = vmatprep.mubr.f32.mxu0 0.0
        %3883 = vmatmul.mubr.f32.gmra.mrb[0].mxu0 %v3508
        %v3884 = vpop.f32.mrb[0].mxu0
        %v3885 = vadd.f32 %v3332, %v3884
        %v3886 = vpop.f32.mrb[0].mxu0
        %3887 = vmatprep.mubr.f32.mxu0 0.0
        %3888 = vmatmul.mubr.f32.gmra.mrb[0].mxu0 %v3510
        %v3889 = vpop.f32.mrb[0].mxu0
        %v3890 = vadd.f32 %v3332, %v3889
        %v3891 = vpop.f32.mrb[0].mxu0
        %3892 = vmatprep.mubr.f32.mxu0 0.0
        %3893 = vmatmul.mubr.f32.gmra.mrb[0].mxu0 %v3512
        %v3894 = vpop.f32.mrb[0].mxu0
        %v3895 = vadd.f32 %v3332, %v3894
        %v3896 = vpop.f32.mrb[0].mxu0
        %3897 = vmatprep.mubr.f32.mxu0 0.0
        %3898 = vmatmul.mubr.f32.gmra.mrb[0].mxu0 %v3514
        %v3899 = vpop.f32.mrb[0].mxu0
        %v3900 = vadd.f32 %v3332, %v3899
        %v3901 = vpop.f32.mrb[0].mxu0
        %3902 = vmatprep.mubr.f32.mxu0 0.0
        %3903 = vmatmul.mubr.f32.gmra.mrb[0].mxu0 %v3516
        %v3904 = vpop.f32.mrb[0].mxu0
        %v3905 = vadd.f32 %v3332, %v3904
        %v3906 = vpop.f32.mrb[0].mxu0
        %3907 = vmatprep.mubr.f32.mxu0 0.0
        %3908 = vmatmul.mubr.f32.gmra.mrb[0].mxu0 %v3518
        %v3909 = vpop.f32.mrb[0].mxu0
        %v3910 = vadd.f32 %v3332, %v3909
        %v3911 = vpop.f32.mrb[0].mxu0
        %3912 = vmatprep.mubr.f32.mxu0 0.0
        %3913 = vmatmul.mubr.f32.gmra.mrb[0].mxu0 %v3520
        %v3914 = vpop.f32.mrb[0].mxu0
        %v3915 = vadd.f32 %v3332, %v3914
        %v3916 = vpop.f32.mrb[0].mxu0
        %3917 = vmatprep.mubr.f32.mxu0 0.0
        %3918 = vmatmul.mubr.f32.gmra.mrb[0].mxu0 %v3522
        %v3919 = vpop.f32.mrb[0].mxu0
        %v3920 = vadd.f32 %v3332, %v3919
        %v3921 = vpop.f32.mrb[0].mxu0
        %3922 = vmatprep.mubr.f32.mxu0 0.0
        %3923 = vmatmul.mubr.f32.gmra.mrb[0].mxu0 %v3524
        %v3924 = vpop.f32.mrb[0].mxu0
        %v3925 = vadd.f32 %v3332, %v3924
        %v3926 = vpop.f32.mrb[0].mxu0
        %3927 = vmatprep.mubr.f32.mxu0 0.0
        %3928 = vmatmul.mubr.f32.gmra.mrb[0].mxu0 %v3526
        %v3929 = vpop.f32.mrb[0].mxu0
        %v3930 = vadd.f32 %v3332, %v3929
        %v3931 = vpop.f32.mrb[0].mxu0
        %3932 = vmatprep.mubr.f32.mxu0 0.0
        %3933 = vmatmul.mubr.f32.gmra.mrb[0].mxu0 %v3528
        %v3934 = vpop.f32.mrb[0].mxu0
        %v3935 = vadd.f32 %v3332, %v3934
        %v3936 = vpop.f32.mrb[0].mxu0
        %3937 = vmatprep.mubr.f32.mxu0 0.0
        %3938 = vmatmul.mubr.f32.gmra.mrb[0].mxu0 %v3530
        %v3939 = vpop.f32.mrb[0].mxu0
        %v3940 = vadd.f32 %v3332, %v3939
        %v3941 = vpop.f32.mrb[0].mxu0
        %3942 = vmatprep.mubr.f32.mxu0 0.0
        %3943 = vmatmul.mubr.f32.gmra.mrb[0].mxu0 %v3532
        %v3944 = vpop.f32.mrb[0].mxu0
        %v3945 = vadd.f32 %v3332, %v3944
        %v3946 = vpop.f32.mrb[0].mxu0
        %3947 = vmatprep.mubr.f32.mxu0 0.0
        %3948 = vmatmul.mubr.f32.gmra.mrb[0].mxu0 %v3534
        %v3949 = vpop.f32.mrb[0].mxu0
        %v3950 = vadd.f32 %v3332, %v3949
        %v3951 = vpop.f32.mrb[0].mxu0
        %3952 = vmatprep.mubr.f32.mxu0 0.0
        %3953 = vmatmul.mubr.f32.gmra.mrb[0].mxu0 %v3536
        %v3954 = vpop.f32.mrb[0].mxu0
        %v3955 = vadd.f32 %v3332, %v3954
        %v3956 = vpop.f32.mrb[0].mxu0
        %3957 = vmatprep.mubr.f32.mxu0 0.0
        %3958 = vmatmul.mubr.f32.gmra.mrb[0].mxu0 %v3538
        %v3959 = vpop.f32.mrb[0].mxu0
        %v3960 = vadd.f32 %v3332, %v3959
        %v3961 = vpop.f32.mrb[0].mxu0
        %3962 = vmatprep.mubr.f32.mxu0 0.0
        %3963 = vmatmul.mubr.f32.gmra.mrb[0].mxu0 %v3540
        %v3964 = vpop.f32.mrb[0].mxu0
        %v3965 = vadd.f32 %v3332, %v3964
        %v3966 = vpop.f32.mrb[0].mxu0
        %3967 = vmatprep.mubr.f32.mxu0 0.0
        %3968 = vmatmul.mubr.f32.gmra.mrb[0].mxu0 %v3542
        %v3969 = vpop.f32.mrb[0].mxu0
        %v3970 = vadd.f32 %v3332, %v3969
        %v3971 = vpop.f32.mrb[0].mxu0
        %3972 = vmatprep.mubr.f32.mxu0 0.0
        %3973 = vmatmul.mubr.f32.gmra.mrb[0].mxu0 %v3544
        %v3974 = vpop.f32.mrb[0].mxu0
        %v3975 = vadd.f32 %v3332, %v3974
        %v3976 = vpop.f32.mrb[0].mxu0
        %3977 = vmatprep.mubr.f32.mxu0 0.0
        %3978 = vmatmul.mubr.f32.gmra.mrb[0].mxu0 %v3546
        %v3979 = vpop.f32.mrb[0].mxu0
        %v3980 = vadd.f32 %v3332, %v3979
        %v3981 = vpop.f32.mrb[0].mxu0
        %3982 = vmatprep.mubr.f32.mxu0 0.0
        %3983 = vmatmul.mubr.f32.gmra.mrb[0].mxu0 %v3548
        %v3984 = vpop.f32.mrb[0].mxu0
        %v3985 = vadd.f32 %v3332, %v3984
        %v3986 = vpop.f32.mrb[0].mxu0
        %3987 = vmatprep.mubr.f32.mxu0 0.0
        %3988 = vmatmul.mubr.f32.gmra.mrb[0].mxu0 %v3550
        %v3989 = vpop.f32.mrb[0].mxu0
        %v3990 = vadd.f32 %v3332, %v3989
        %v3991 = vpop.f32.mrb[0].mxu0
        %3992 = vmatprep.mubr.f32.mxu0 0.0
        %3993 = vmatmul.mubr.f32.gmra.mrb[0].mxu0 %v3552
        %v3994 = vpop.f32.mrb[0].mxu0
        %v3995 = vadd.f32 %v3332, %v3994
        %v3996 = vpop.f32.mrb[0].mxu0
        %3997 = vmatprep.mubr.f32.mxu0 0.0
        %3998 = vmatmul.mubr.f32.gmra.mrb[0].mxu0 %v3554
        %v3999 = vpop.f32.mrb[0].mxu0
        %v4000 = vadd.f32 %v3332, %v3999
        %v4001 = vpop.f32.mrb[0].mxu0
        %4002 = vmatprep.mubr.f32.mxu0 0.0
        %4003 = vmatmul.mubr.f32.gmra.mrb[0].mxu0 %v3556
        %v4004 = vpop.f32.mrb[0].mxu0
        %v4005 = vadd.f32 %v3332, %v4004
        %v4006 = vpop.f32.mrb[0].mxu0
        %4007 = vmatprep.mubr.f32.mxu0 0.0
        %4008 = vmatmul.mubr.f32.gmra.mrb[0].mxu0 %v3558
        %v4009 = vpop.f32.mrb[0].mxu0
        %v4010 = vadd.f32 %v3332, %v4009
        %v4011 = vpop.f32.mrb[0].mxu0
        %4012 = vmatprep.mubr.f32.mxu0 0.0
        %4013 = vmatmul.mubr.f32.gmra.mrb[0].mxu0 %v3560
        %v4014 = vpop.f32.mrb[0].mxu0
        %v4015 = vadd.f32 %v3332, %v4014
        %v4016 = vpop.f32.mrb[0].mxu0
        %4017 = vmatprep.mubr.f32.mxu0 0.0
        %4018 = vmatmul.mubr.f32.gmra.mrb[0].mxu0 %v3562
        %v4019 = vpop.f32.mrb[0].mxu0
        %v4020 = vadd.f32 %v3332, %v4019
        %v4021 = vpop.f32.mrb[0].mxu0
        %4022 = vmatprep.mubr.f32.mxu0 0.0
        %4023 = vmatmul.mubr.f32.gmra.mrb[0].mxu0 %v3564
        %v4024 = vpop.f32.mrb[0].mxu0
        %v4025 = vadd.f32 %v3332, %v4024
        %v4026 = vpop.f32.mrb[0].mxu0
        %4027 = vmatprep.mubr.f32.mxu0 0.0
        %4028 = vmatmul.mubr.f32.gmra.mrb[0].mxu0 %v3566
        %v4029 = vpop.f32.mrb[0].mxu0
        %v4030 = vadd.f32 %v3332, %v4029
        %v4031 = vpop.f32.mrb[0].mxu0
        %4032 = vmatprep.mubr.f32.mxu0 0.0
        %4033 = vmatmul.mubr.f32.gmra.mrb[0].mxu0 %v3568
        %v4034 = vpop.f32.mrb[0].mxu0
        %v4035 = vadd.f32 %v3332, %v4034
        %v4036 = vpop.f32.mrb[0].mxu0
        %4037 = vmatprep.mubr.f32.mxu0 0.0
        %4038 = vmatmul.mubr.f32.gmra.mrb[0].mxu0 %v3570
        %v4039 = vpop.f32.mrb[0].mxu0
        %v4040 = vadd.f32 %v3332, %v4039
        %v4041 = vpop.f32.mrb[0].mxu0
        %4042 = vmatprep.mubr.f32.mxu0 0.0
        %4043 = vmatmul.mubr.f32.gmra.mrb[0].mxu0 %v3572
        %v4044 = vpop.f32.mrb[0].mxu0
        %v4045 = vadd.f32 %v3332, %v4044
        %v4046 = vpop.f32.mrb[0].mxu0
        %4047 = vmatprep.mubr.f32.mxu0 0.0
        %4048 = vmatmul.mubr.f32.gmra.mrb[0].mxu0 %v3574
        %v4049 = vpop.f32.mrb[0].mxu0
        %v4050 = vadd.f32 %v3332, %v4049
        %v4051 = vpop.f32.mrb[0].mxu0
        %4052 = vmatprep.mubr.f32.mxu0 0.0
        %4053 = vmatmul.mubr.f32.gmra.mrb[0].mxu0 %v3576
        %v4054 = vpop.f32.mrb[0].mxu0
        %v4055 = vadd.f32 %v3332, %v4054
        %v4056 = vpop.f32.mrb[0].mxu0
        %4057 = vmatprep.mubr.f32.mxu0 0.0
        %4058 = vmatmul.mubr.f32.gmra.mrb[0].mxu0 %v3578
        %v4059 = vpop.f32.mrb[0].mxu0
        %v4060 = vadd.f32 %v3332, %v4059
        %v4061 = vpop.f32.mrb[0].mxu0
        %4062 = vmatprep.mubr.f32.mxu0 0.0
        %4063 = vmatmul.mubr.f32.gmra.mrb[0].mxu0 %v3580
        %v4064 = vpop.f32.mrb[0].mxu0
        %v4065 = vadd.f32 %v3332, %v4064
        %v4066 = vpop.f32.mrb[0].mxu0
        %4067 = vmatprep.mubr.f32.mxu0 0.0
        %4068 = vmatmul.mubr.f32.gmra.mrb[0].mxu0 %v3582
        %v4069 = vpop.f32.mrb[0].mxu0
        %v4070 = vadd.f32 %v3332, %v4069
        %v4071 = vpop.f32.mrb[0].mxu0
        %4072 = vmatprep.mubr.f32.mxu0 0.0
        %4073 = vmatmul.mubr.f32.gmra.mrb[0].mxu0 %v3584
        %v4074 = vpop.f32.mrb[0].mxu0
        %v4075 = vadd.f32 %v3332, %v4074
        %v4076 = vpop.f32.mrb[0].mxu0
        %4077 = vmatprep.mubr.f32.mxu0 0.0
        %4078 = vmatmul.mubr.f32.gmra.mrb[0].mxu0 %v3586
        %v4079 = vpop.f32.mrb[0].mxu0
        %v4080 = vadd.f32 %v3332, %v4079
        %v4081 = vpop.f32.mrb[0].mxu0
        %4082 = vmatprep.mubr.f32.mxu0 0.0
        %4083 = vmatmul.mubr.f32.gmra.mrb[0].mxu0 %v3588
        %v4084 = vpop.f32.mrb[0].mxu0
        %v4085 = vadd.f32 %v3332, %v4084
        %v4086 = vpop.f32.mrb[0].mxu0
        %4087 = vmatprep.mubr.f32.mxu0 0.0
        %4088 = vmatmul.mubr.f32.gmra.mrb[0].mxu0 %v3590
        %v4089 = vpop.f32.mrb[0].mxu0
        %v4090 = vadd.f32 %v3332, %v4089
        %v4091 = vpop.f32.mrb[0].mxu0
        %4092 = vmatprep.mubr.f32.mxu0 0.0
        %4093 = vmatmul.mubr.f32.gmra.mrb[0].mxu0 %v3592
        %v4094 = vpop.f32.mrb[0].mxu0
        %v4095 = vadd.f32 %v3332, %v4094
        %v4096 = vpop.f32.mrb[0].mxu0
        %4097 = vmatprep.mubr.f32.mxu0 0.0
        %4098 = vmatmul.mubr.f32.gmra.mrb[0].mxu0 %v3594
        %v4099 = vpop.f32.mrb[0].mxu0
        %v4100 = vadd.f32 %v3332, %v4099
        %v4101 = vpop.f32.mrb[0].mxu0
        %4102 = vmatprep.mubr.f32.mxu0 0.0
        %4103 = vmatmul.mubr.f32.gmra.mrb[0].mxu0 %v3596
        %v4104 = vpop.f32.mrb[0].mxu0
        %v4105 = vadd.f32 %v3332, %v4104
        %v4106 = vpop.f32.mrb[0].mxu0
        %4107 = vmatprep.mubr.f32.mxu0 0.0
        %4108 = vmatmul.mubr.f32.gmra.mrb[0].mxu0 %v3598
        %v4109 = vpop.f32.mrb[0].mxu0
        %v4110 = vadd.f32 %v3332, %v4109
        %v4111 = vpop.f32.mrb[0].mxu0
        %4112 = vmatprep.mubr.f32.mxu0 0.0
        %4113 = vmatmul.mubr.f32.gmra.mrb[0].mxu0 %v3600
        %v4114 = vpop.f32.mrb[0].mxu0
        %v4115 = vadd.f32 %v3332, %v4114
        %v4116 = vpop.f32.mrb[0].mxu0
        %4117 = vmatprep.mubr.f32.mxu0 0.0
        %4118 = vmatmul.mubr.f32.gmra.mrb[0].mxu0 %v3602
        %v4119 = vpop.f32.mrb[0].mxu0
        %v4120 = vadd.f32 %v3332, %v4119
        %v4121 = vpop.f32.mrb[0].mxu0
        %4122 = vmatprep.mubr.f32.mxu0 0.0
        %4123 = vmatmul.mubr.f32.gmra.mrb[0].mxu0 %v3604
        %v4124 = vpop.f32.mrb[0].mxu0
        %v4125 = vadd.f32 %v3332, %v4124
        %v4126 = vpop.f32.mrb[0].mxu0
        %4127 = vmatprep.mubr.f32.mxu0 0.0
        %4128 = vmatmul.mubr.f32.gmra.mrb[0].mxu0 %v3606
        %v4129 = vpop.f32.mrb[0].mxu0
        %v4130 = vadd.f32 %v3332, %v4129
        %v4131 = vpop.f32.mrb[0].mxu0
        %4132 = vmatprep.mubr.f32.mxu0 0.0
        %4133 = vmatmul.mubr.f32.gmra.mrb[0].mxu0 %v3608
        %v4134 = vpop.f32.mrb[0].mxu0
        %v4135 = vadd.f32 %v3332, %v4134
        %v4136 = vpop.f32.mrb[0].mxu0
        %4137 = vmatprep.mubr.f32.mxu0 0.0
        %4138 = vmatmul.mubr.f32.gmra.mrb[0].mxu0 %v3610
        %v4139 = vpop.f32.mrb[0].mxu0
        %v4140 = vadd.f32 %v3332, %v4139
        %v4141 = vpop.f32.mrb[0].mxu0
        %4142 = vmatprep.mubr.f32.mxu0 0.0
        %4143 = vmatmul.mubr.f32.gmra.mrb[0].mxu0 %v3612
        %v4144 = vpop.f32.mrb[0].mxu0
        %v4145 = vadd.f32 %v3332, %v4144
        %v4146 = vpop.f32.mrb[0].mxu0
        %4147 = vmatprep.mubr.f32.mxu0 0.0
        %4148 = vmatmul.mubr.f32.gmra.mrb[0].mxu0 %v3614
        %v4149 = vpop.f32.mrb[0].mxu0
        %v4150 = vadd.f32 %v3332, %v4149
        %v4151 = vpop.f32.mrb[0].mxu0
        %4152 = vmatprep.mubr.f32.mxu0 0.0
        %4153 = vmatmul.mubr.f32.gmra.mrb[0].mxu0 %v3616
        %v4154 = vpop.f32.mrb[0].mxu0
        %v4155 = vadd.f32 %v3332, %v4154
        %v4156 = vpop.f32.mrb[0].mxu0
        %4157 = vmatprep.mubr.f32.mxu0 0.0
        %4158 = vmatmul.mubr.f32.gmra.mrb[0].mxu0 %v3618
        %v4159 = vpop.f32.mrb[0].mxu0
        %v4160 = vadd.f32 %v3332, %v4159
        %v4161 = vpop.f32.mrb[0].mxu0
        %4162 = vmatprep.mubr.f32.mxu0 0.0
        %4163 = vmatmul.mubr.f32.gmra.mrb[0].mxu0 %v3620
        %v4164 = vpop.f32.mrb[0].mxu0
        %v4165 = vadd.f32 %v3332, %v4164
        %v4166 = vpop.f32.mrb[0].mxu0
        %4167 = vmatprep.mubr.f32.mxu0 0.0
        %4168 = vmatmul.mubr.f32.gmra.mrb[0].mxu0 %v3622
        %v4169 = vpop.f32.mrb[0].mxu0
        %v4170 = vadd.f32 %v3332, %v4169
        %v4171 = vpop.f32.mrb[0].mxu0
        %4172 = vmatprep.mubr.f32.mxu0 0.0
        %4173 = vmatmul.mubr.f32.gmra.mrb[0].mxu0 %v3624
        %v4174 = vpop.f32.mrb[0].mxu0
        %v4175 = vadd.f32 %v3332, %v4174
        %v4176 = vpop.f32.mrb[0].mxu0
        %4177 = vmatprep.mubr.f32.mxu0 0.0
        %4178 = vmatmul.mubr.f32.gmra.mrb[0].mxu0 %v3626
        %v4179 = vpop.f32.mrb[0].mxu0
        %v4180 = vadd.f32 %v3332, %v4179
        %v4181 = vpop.f32.mrb[0].mxu0
        %4182 = vdwg.mxu0
        %v4183 = vsel %vm1353, %v3695, 0.0
        %v4184 = vsel %vm1353, %v3700, 0.0
        %v4185 = vadd.f32 %v4183, %v4184
        %v4186 = vsel %vm1353, %v3705, 0.0
        %v4187 = vadd.f32 %v4185, %v4186
        %v4188 = vsel %vm1353, %v3710, 0.0
        %v4189 = vadd.f32 %v4187, %v4188
        %v4190 = vsel %vm1353, %v3715, 0.0
        %v4191 = vadd.f32 %v4189, %v4190
        %v4192 = vsel %vm1353, %v3720, 0.0
        %v4193 = vadd.f32 %v4191, %v4192
        %v4194 = vsel %vm1353, %v3725, 0.0
        %v4195 = vadd.f32 %v4193, %v4194
        %v4196 = vsel %vm1353, %v3730, 0.0
        %v4197 = vadd.f32 %v4195, %v4196
        %v4198 = vsel %vm1353, %v3735, 0.0
        %v4199 = vadd.f32 %v4197, %v4198
        %v4200 = vsel %vm1353, %v3740, 0.0
        %v4201 = vadd.f32 %v4199, %v4200
        %v4202 = vsel %vm1353, %v3745, 0.0
        %v4203 = vadd.f32 %v4201, %v4202
        %v4204 = vsel %vm1353, %v3750, 0.0
        %v4205 = vadd.f32 %v4203, %v4204
        %v4206 = vsel %vm1353, %v3755, 0.0
        %v4207 = vadd.f32 %v4205, %v4206
        %v4208 = vsel %vm1353, %v3760, 0.0
        %v4209 = vadd.f32 %v4207, %v4208
        %v4210 = vsel %vm1353, %v3765, 0.0
        %v4211 = vadd.f32 %v4209, %v4210
        %v4212 = vsel %vm1353, %v3770, 0.0
        %v4213 = vadd.f32 %v4211, %v4212
        %v4214 = vsel %vm1353, %v3775, 0.0
        %v4215 = vadd.f32 %v4213, %v4214
        %v4216 = vsel %vm1353, %v3780, 0.0
        %v4217 = vadd.f32 %v4215, %v4216
        %v4218 = vsel %vm1353, %v3785, 0.0
        %v4219 = vadd.f32 %v4217, %v4218
        %v4220 = vsel %vm1353, %v3790, 0.0
        %v4221 = vadd.f32 %v4219, %v4220
        %v4222 = vsel %vm1353, %v3795, 0.0
        %v4223 = vadd.f32 %v4221, %v4222
        %v4224 = vsel %vm1353, %v3800, 0.0
        %v4225 = vadd.f32 %v4223, %v4224
        %v4226 = vsel %vm1353, %v3805, 0.0
        %v4227 = vadd.f32 %v4225, %v4226
        %v4228 = vsel %vm1353, %v3810, 0.0
        %v4229 = vadd.f32 %v4227, %v4228
        %v4230 = vsel %vm1353, %v3815, 0.0
        %v4231 = vadd.f32 %v4229, %v4230
        %v4232 = vsel %vm1353, %v3820, 0.0
        %v4233 = vadd.f32 %v4231, %v4232
        %v4234 = vsel %vm1353, %v3825, 0.0
        %v4235 = vadd.f32 %v4233, %v4234
        %v4236 = vsel %vm1353, %v3830, 0.0
        %v4237 = vadd.f32 %v4235, %v4236
        %v4238 = vsel %vm1353, %v3835, 0.0
        %v4239 = vadd.f32 %v4237, %v4238
        %v4240 = vsel %vm1353, %v3840, 0.0
        %v4241 = vadd.f32 %v4239, %v4240
        %v4242 = vsel %vm1353, %v3845, 0.0
        %v4243 = vadd.f32 %v4241, %v4242
        %v4244 = vsel %vm1353, %v3850, 0.0
        %v4245 = vadd.f32 %v4243, %v4244
        %v4246 = vsel %vm1353, %v3855, 0.0
        %v4247 = vadd.f32 %v4245, %v4246
        %v4248 = vsel %vm1353, %v3860, 0.0
        %v4249 = vadd.f32 %v4247, %v4248
        %v4250 = vsel %vm1353, %v3865, 0.0
        %v4251 = vadd.f32 %v4249, %v4250
        %v4252 = vsel %vm1353, %v3870, 0.0
        %v4253 = vadd.f32 %v4251, %v4252
        %v4254 = vsel %vm1353, %v3875, 0.0
        %v4255 = vadd.f32 %v4253, %v4254
        %v4256 = vsel %vm1353, %v3880, 0.0
        %v4257 = vadd.f32 %v4255, %v4256
        %v4258 = vsel %vm1353, %v3885, 0.0
        %v4259 = vadd.f32 %v4257, %v4258
        %v4260 = vsel %vm1353, %v3890, 0.0
        %v4261 = vadd.f32 %v4259, %v4260
        %v4262 = vsel %vm1353, %v3895, 0.0
        %v4263 = vadd.f32 %v4261, %v4262
        %v4264 = vsel %vm1353, %v3900, 0.0
        %v4265 = vadd.f32 %v4263, %v4264
        %v4266 = vsel %vm1353, %v3905, 0.0
        %v4267 = vadd.f32 %v4265, %v4266
        %v4268 = vsel %vm1353, %v3910, 0.0
        %v4269 = vadd.f32 %v4267, %v4268
        %v4270 = vsel %vm1353, %v3915, 0.0
        %v4271 = vadd.f32 %v4269, %v4270
        %v4272 = vsel %vm1353, %v3920, 0.0
        %v4273 = vadd.f32 %v4271, %v4272
        %v4274 = vsel %vm1353, %v3925, 0.0
        %v4275 = vadd.f32 %v4273, %v4274
        %v4276 = vsel %vm1353, %v3930, 0.0
        %v4277 = vadd.f32 %v4275, %v4276
        %v4278 = vsel %vm1353, %v3935, 0.0
        %v4279 = vadd.f32 %v4277, %v4278
        %v4280 = vsel %vm1353, %v3940, 0.0
        %v4281 = vadd.f32 %v4279, %v4280
        %v4282 = vsel %vm1353, %v3945, 0.0
        %v4283 = vadd.f32 %v4281, %v4282
        %v4284 = vsel %vm1353, %v3950, 0.0
        %v4285 = vadd.f32 %v4283, %v4284
        %v4286 = vsel %vm1353, %v3955, 0.0
        %v4287 = vadd.f32 %v4285, %v4286
        %v4288 = vsel %vm1353, %v3960, 0.0
        %v4289 = vadd.f32 %v4287, %v4288
        %v4290 = vsel %vm1353, %v3965, 0.0
        %v4291 = vadd.f32 %v4289, %v4290
        %v4292 = vsel %vm1353, %v3970, 0.0
        %v4293 = vadd.f32 %v4291, %v4292
        %v4294 = vsel %vm1353, %v3975, 0.0
        %v4295 = vadd.f32 %v4293, %v4294
        %v4296 = vsel %vm1353, %v3980, 0.0
        %v4297 = vadd.f32 %v4295, %v4296
        %v4298 = vsel %vm1353, %v3985, 0.0
        %v4299 = vadd.f32 %v4297, %v4298
        %v4300 = vsel %vm1353, %v3990, 0.0
        %v4301 = vadd.f32 %v4299, %v4300
        %v4302 = vsel %vm1353, %v3995, 0.0
        %v4303 = vadd.f32 %v4301, %v4302
        %v4304 = vsel %vm1353, %v4000, 0.0
        %v4305 = vadd.f32 %v4303, %v4304
        %v4306 = vsel %vm1353, %v4005, 0.0
        %v4307 = vadd.f32 %v4305, %v4306
        %v4308 = vsel %vm1353, %v4010, 0.0
        %v4309 = vadd.f32 %v4307, %v4308
        %v4310 = vsel %vm1353, %v4015, 0.0
        %v4311 = vadd.f32 %v4309, %v4310
        %v4312 = vsel %vm1353, %v4020, 0.0
        %v4313 = vadd.f32 %v4311, %v4312
        %v4314 = vsel %vm1353, %v4025, 0.0
        %v4315 = vadd.f32 %v4313, %v4314
        %v4316 = vsel %vm1353, %v4030, 0.0
        %v4317 = vadd.f32 %v4315, %v4316
        %v4318 = vsel %vm1353, %v4035, 0.0
        %v4319 = vadd.f32 %v4317, %v4318
        %v4320 = vsel %vm1353, %v4040, 0.0
        %v4321 = vadd.f32 %v4319, %v4320
        %v4322 = vsel %vm1353, %v4045, 0.0
        %v4323 = vadd.f32 %v4321, %v4322
        %v4324 = vsel %vm1353, %v4050, 0.0
        %v4325 = vadd.f32 %v4323, %v4324
        %v4326 = vsel %vm1353, %v4055, 0.0
        %v4327 = vadd.f32 %v4325, %v4326
        %v4328 = vsel %vm1353, %v4060, 0.0
        %v4329 = vadd.f32 %v4327, %v4328
        %v4330 = vsel %vm1353, %v4065, 0.0
        %v4331 = vadd.f32 %v4329, %v4330
        %v4332 = vsel %vm1353, %v4070, 0.0
        %v4333 = vadd.f32 %v4331, %v4332
        %v4334 = vsel %vm1353, %v4075, 0.0
        %v4335 = vadd.f32 %v4333, %v4334
        %v4336 = vsel %vm1353, %v4080, 0.0
        %v4337 = vadd.f32 %v4335, %v4336
        %v4338 = vsel %vm1353, %v4085, 0.0
        %v4339 = vadd.f32 %v4337, %v4338
        %v4340 = vsel %vm1353, %v4090, 0.0
        %v4341 = vadd.f32 %v4339, %v4340
        %v4342 = vsel %vm1353, %v4095, 0.0
        %v4343 = vadd.f32 %v4341, %v4342
        %v4344 = vsel %vm1353, %v4100, 0.0
        %v4345 = vadd.f32 %v4343, %v4344
        %v4346 = vsel %vm1353, %v4105, 0.0
        %v4347 = vadd.f32 %v4345, %v4346
        %v4348 = vsel %vm1353, %v4110, 0.0
        %v4349 = vadd.f32 %v4347, %v4348
        %v4350 = vsel %vm1353, %v4115, 0.0
        %v4351 = vadd.f32 %v4349, %v4350
        %v4352 = vsel %vm1353, %v4120, 0.0
        %v4353 = vadd.f32 %v4351, %v4352
        %v4354 = vsel %vm1353, %v4125, 0.0
        %v4355 = vadd.f32 %v4353, %v4354
        %v4356 = vsel %vm1353, %v4130, 0.0
        %v4357 = vadd.f32 %v4355, %v4356
        %v4358 = vsel %vm1353, %v4135, 0.0
        %v4359 = vadd.f32 %v4357, %v4358
        %v4360 = vsel %vm1353, %v4140, 0.0
        %v4361 = vadd.f32 %v4359, %v4360
        %v4362 = vsel %vm1353, %v4145, 0.0
        %v4363 = vadd.f32 %v4361, %v4362
        %v4364 = vsel %vm1353, %v4150, 0.0
        %v4365 = vadd.f32 %v4363, %v4364
        %v4366 = vsel %vm1353, %v4155, 0.0
        %v4367 = vadd.f32 %v4365, %v4366
        %v4368 = vsel %vm1353, %v4160, 0.0
        %v4369 = vadd.f32 %v4367, %v4368
        %v4370 = vsel %vm1353, %v4165, 0.0
        %v4371 = vadd.f32 %v4369, %v4370
        %v4372 = vsel %vm1353, %v4170, 0.0
        %v4373 = vadd.f32 %v4371, %v4372
        %v4374 = vsel %vm1353, %v4175, 0.0
        %v4375 = vadd.f32 %v4373, %v4374
        %v4376 = vsel %vm1353, %v4180, 0.0
        %v4377 = vadd.f32 %v4375, %v4376
        %v4378 = vrot.slane %v4377, 4
        %v4379 = vadd.f32 %v4377, %v4378
        %v4380 = vrot.slane %v4379, 2
        %v4381 = vadd.f32 %v4379, %v4380
        %v4382 = vrot.slane %v4381, 1
        %v4383 = vadd.f32 %v4381, %v4382
        %v4384 = vrcp.pop 784.0
        %v4385 = vmul.f32 %v4383, %v4384
        %v4386 = vld [vmem:[%s5] sm:$0xff]
        %v4387 = vld [vmem:[%s5 + $0x8] sm:$0xff]
        %v4388 = vld [vmem:[%s5 + $0x10] sm:$0xff]
        %v4389 = vld [vmem:[%s5 + $0x18] sm:$0xff]
        %v4390 = vld [vmem:[%s6] sm:$0x1]
        %v4392 = vsel %vm1353, %v4385, 0
        %4394 = vmatprep.subr.mxu0 0.0
        %4395 = vmatpush1.msra.mxu0 %v4386
        %4396 = vmatprep.subr.mxu0 0.0
        %4397 = vmatpush1.msra.mxu0 %v4387
        %4398 = vmatprep.subr.mxu0 0.0
        %4399 = vmatpush1.msra.mxu0 %v4388
        %4400 = vmatprep.subr.mxu0 0.0
        %4401 = vmatpush1.msra.mxu0 %v4389
        %4402 = vmatprep.subr.mxu0 0.0
        %4403 = vmatpush1.msra.mxu0 0.0
        %4404 = vmatprep.subr.mxu0 0.0
        %4405 = vmatpush1.msra.mxu0 0.0
        %4406 = vmatprep.subr.mxu0 0.0
        %4407 = vmatpush1.msra.mxu0 0.0
        %4408 = vmatprep.subr.mxu0 0.0
        %4409 = vmatpush1.msra.mxu0 0.0
        %4410 = vmatprep.subr.mxu0 0.0
        %4411 = vmatpush1.msra.mxu0 0.0
        %4412 = vmatprep.subr.mxu0 0.0
        %4413 = vmatpush1.msra.mxu0 0.0
        %4414 = vmatprep.subr.mxu0 0.0
        %4415 = vmatpush1.msra.mxu0 0.0
        %4416 = vmatprep.subr.mxu0 0.0
        %4417 = vmatpush1.msra.mxu0 0.0
        %4418 = vmatprep.subr.mxu0 0.0
        %4419 = vmatpush1.msra.mxu0 0.0
        %4420 = vmatprep.subr.mxu0 0.0
        %4421 = vmatpush1.msra.mxu0 0.0
        %4422 = vmatprep.subr.mxu0 0.0
        %4423 = vmatpush1.msra.mxu0 0.0
        %4424 = vmatprep.subr.mxu0 0.0
        %4425 = vmatpush1.msra.mxu0 0.0
        %4426 = vmatprep.subr.mxu0 0.0
        %4427 = vmatpush1.msra.mxu0 0.0
        %4428 = vmatprep.subr.mxu0 0.0
        %4429 = vmatpush1.msra.mxu0 0.0
        %4430 = vmatprep.subr.mxu0 0.0
        %4431 = vmatpush1.msra.mxu0 0.0
        %4432 = vmatprep.subr.mxu0 0.0
        %4433 = vmatpush1.msra.mxu0 0.0
        %4434 = vmatprep.subr.mxu0 0.0
        %4435 = vmatpush1.msra.mxu0 0.0
        %4436 = vmatprep.subr.mxu0 0.0
        %4437 = vmatpush1.msra.mxu0 0.0
        %4438 = vmatprep.subr.mxu0 0.0
        %4439 = vmatpush1.msra.mxu0 0.0
        %4440 = vmatprep.subr.mxu0 0.0
        %4441 = vmatpush1.msra.mxu0 0.0
        %4442 = vmatprep.subr.mxu0 0.0
        %4443 = vmatpush1.msra.mxu0 0.0
        %4444 = vmatprep.subr.mxu0 0.0
        %4445 = vmatpush1.msra.mxu0 0.0
        %4446 = vmatprep.subr.mxu0 0.0
        %4447 = vmatpush1.msra.mxu0 0.0
        %4448 = vmatprep.subr.mxu0 0.0
        %4449 = vmatpush1.msra.mxu0 0.0
        %4450 = vmatprep.subr.mxu0 0.0
        %4451 = vmatpush1.msra.mxu0 0.0
        %4452 = vmatprep.subr.mxu0 0.0
        %4453 = vmatpush1.msra.mxu0 0.0
        %4454 = vmatprep.subr.mxu0 0.0
        %4455 = vmatpush1.msra.mxu0 0.0
        %4456 = vmatprep.subr.mxu0 0.0
        %4457 = vmatpush1.msra.mxu0 0.0
        %4458 = vmatprep.mubr.f32.mxu0 0.0
        %4459 = vmatmul.mubr.f32.gmra.mrb[0].mxu0 %v4392
        %v4460 = vpop.f32.mrb[0].mxu0
        %v4461 = vadd.f32 %v4390, %v4460
        %v4462 = vpop.f32.mrb[0].mxu0
        %4463 = vdwg.mxu0
        %vm4464 = vcmask 16384
        %4465 = vst.msk [vmem:[%s270] sm:$0x1] %vm4464, %v4461
        %s4466 = sand.u32 %s181, 1
        %s4467 = scalar_lea.sflag [#allocation4], %s4466
        %s4468 = sand.u32 %s181, 1
        %s4469 = scalar_lea.vmem [#allocation3], %s4468
        // Predicated region
        $region49: #{mivolo_forward.3} parent=47 // pred_check
          %p4470 = pneg %p191
        $region50: #{mivolo_forward.3} parent=47 // pred_check_branch
          %4472 = sbr.rel (%p4470) target = $region52
        $region51: #{mivolo_forward.3} parent=47 // pred_region
          %s4474 = ssub.s32 16, 16
          %4475 = vsyncadd %s4467, %s4474
          %s4476 = smul.addr %s21, 16
          %s4477 = scalar_lea.hbm %s7, %s4476
          %s4479 = sshll.u32 %s4469, 4
          %s4480 = int_to_ptr.vmem [resolvable:$true] %s4479
          %4482 = dma.vmem_to_hbm [thread:$0]  %s4480, 16, %s4477, %s4467
        $region52: #{mivolo_forward.3} parent=47 // pred_fallthru
          _
      $region48: #{mivolo_forward.3} parent=5 // pred_fallthru
        _
      %p4483 = scmp.le.s32.totalorder 2, %s16
      // Predicated region
      $region53: #{mivolo_forward.3} parent=5 // pred_check
        %p4484 = pneg %p4483
      $region54: #{mivolo_forward.3} parent=5 // pred_check_branch
        %4486 = sbr.rel (%p4484) target = $region56
      $region55: #{mivolo_forward.3} parent=5 // pred_region
        %s4487 = ssub.s32 %s16, 2
        // Predicated region
        $region57: #{mivolo_forward.3} parent=55 // pred_check
          %p4488 = pneg %p197
        $region58: #{mivolo_forward.3} parent=55 // pred_check_branch
          %4490 = sbr.rel (%p4488) target = $region60
        $region59: #{mivolo_forward.3} parent=55 // pred_region
          %s4491 = sand.u32 %s182, 1
          %s4492 = scalar_lea.sflag [#allocation4], %s4491
          %s4493 = sand.u32 %s182, 1
          %s4494 = scalar_lea.vmem [#allocation3], %s4493
          %4495 = dma.done %s4492, 16
        $region60: #{mivolo_forward.3} parent=55 // pred_fallthru
          _
      $region56: #{mivolo_forward.3} parent=5 // pred_fallthru
        _
    $region6: #{mivolo_forward.3} parent=1 // loop_footer
      %s20 = sadd.s32 1, %s16
    $region7: #{mivolo_forward.3} parent=1 // loop_footer_branch
      %15 = sbr.rel target = $region3
    $region8: #{mivolo_forward.3} parent=1 // loop_exit
      _
    %4496 = vsyncpa [#allocation4], 1
    %s4497 = scalar_lea.sflag [#allocation4], 1
    %4498 = vsyncpa %s4497, 1

</llo_original>
